<compile_context>
chip_gen: v5e
topology: v5e:2x2
jax: 0.10.0
libtpu: 0.0.40
codegen_flags: <defaults>
</compile_context>

<pallas_src>
import functools
import math

import jax
import jax.numpy as jnp
from jax import lax
from jax.experimental import pallas as pl
from jax.experimental.pallas import tpu as pltpu

_EPS = 1e-5                       # nn.GroupNorm default
_INV_SQRT2 = 0.7071067811865476   # 1/sqrt(2), hoisted constant for exact GELU


def _fused_layer(h, w_ref, g_ref, b_ref):
    """One Conv1d(k=3, pad=1, bias=False) + GroupNorm(1, Cout) + exact GELU.

    h:      (Cin, L)  f32 activation, channels on sublanes, L on lanes.
    w_ref:  (3, Cout, Cin) per-tap conv weight: w_ref[t] == w_torch[:, :, t].
    g_ref:  (Cout, 1) GroupNorm weight.    b_ref: (Cout, 1) GroupNorm bias.
    returns (Cout, L) f32.
    """
    f32 = jnp.float32
    # Three small MXU matmuls (K = Cin <= 32).  No im2col concat, no padded copies.
    z0 = jnp.dot(w_ref[0], h, preferred_element_type=f32)   # pairs with x[l-1]
    z1 = jnp.dot(w_ref[1], h, preferred_element_type=f32)   # pairs with x[l]
    z2 = jnp.dot(w_ref[2], h, preferred_element_type=f32)   # pairs with x[l+1]
    cout, L = z1.shape

    # Conv by linearity: y[:, l] = z0[:, l-1] + z1[:, l] + z2[:, l+1], zero at the
    # boundaries.  pltpu.roll is an XLU lane rotation (the XLU slot is idle here);
    # the wrapped-around boundary column is zeroed with an iota mask (VPU select).
    lane = lax.broadcasted_iota(jnp.int32, (cout, L), 1)
    left = jnp.where(lane == 0, 0.0, pltpu.roll(z0, shift=1, axis=1))
    right = jnp.where(lane == L - 1, 0.0, pltpu.roll(z2, shift=L - 1, axis=1))
    y = left + z1 + right

    # GroupNorm(num_groups=1): two-pass mean / variance over the resident (Cout, L)
    # slab (matches PyTorch's E[(x-mean)^2]; free relative to the HBM roofline).
    mean = jnp.mean(y)
    centered = y - mean
    var = jnp.mean(centered * centered)
    y = centered * lax.rsqrt(var + _EPS)
    y = y * g_ref[...].astype(f32) + b_ref[...].astype(f32)  # (Cout,1) bcast over lanes

    # Exact GELU (PyTorch nn.GELU default): 0.5 * x * (1 + erf(x / sqrt(2)))
    return 0.5 * y * (1.0 + lax.erf(y * _INV_SQRT2))


def _text_conv_embed_kernel(x_ref, *refs, flip_in_kernel: bool):
    """Fused depth-N stack for one batch element.

    flip_in_kernel=True : x_ref is (1, L, Cin), o_ref is (1, L, embed_dim); the
                          channels-first flip happens on-chip (no wrapper transposes).
    flip_in_kernel=False: compatibility path, x_ref (1, Cin, L) / o_ref (1, E, L).
    """
    o_ref = refs[-1]
    param_refs = refs[:-1]

    if flip_in_kernel:
        # (L, Cin) -> (Cin, L): small on-chip transpose; L lands on the lane axis so
        # the tap shifts below are cheap lane rotations.
        h = jnp.transpose(x_ref[0].astype(jnp.float32))
    else:
        h = x_ref[0].astype(jnp.float32)                      # already (Cin, L)

    for i in range(0, len(param_refs), 3):                    # depth unrolled at trace time
        h = _fused_layer(h, param_refs[i], param_refs[i + 1], param_refs[i + 2])

    if flip_in_kernel:
        # (embed_dim, L) -> (L, embed_dim) and store straight to the channels-last
        # output block: lane width is embed_dim (masked vst), but there is no extra
        # XLA transpose op / HBM round trip afterwards.
        o_ref[0] = jnp.transpose(h).astype(o_ref.dtype)
    else:
        o_ref[0] = h.astype(o_ref.dtype)


def _vmem_limit_bytes(L, cin, embed_dim, io_itemsize):
    """Honest per-grid-step VMEM budget: double-buffered in/out blocks plus the peak
    live f32 slabs inside the body (activation + 3 tap products + GN temps at the
    widest layer).  ~1.2 KiB * L per step at these channel counts."""
    io_bytes = 2 * 2 * L * (cin + embed_dim) * io_itemsize     # double-buffered blocks
    live_bytes = 4 * L * (cin + 6 * embed_dim)                 # resident f32 intermediates
    need = io_bytes + live_bytes
    # Clamp to the 32 MiB scoped ceiling shared by v6e/v7x defaults (v5e default is only
    # 16 MiB, so being explicit matters there).  Beyond this, tile L (see TODO above).
    return int(min(max(2 * need + (1 << 20), 4 << 20), 32 << 20))


def _forward(x, params, *, flip_in_kernel):
    B, L, cin = x.shape
    embed_dim = params[-1][0].shape[1]                         # (3, Cout, Cin) -> Cout
    flat_params = [p for layer in params for p in layer]

    # Grid-invariant params: constant index_map => DMA'd once, not per step.
    param_specs = [pl.BlockSpec(p.shape, lambda b, nd=p.ndim: (0,) * nd)
                   for p in flat_params]
    compiler_params = pltpu.CompilerParams(
        # One step per batch element; "parallel" splits the batch over v7x's two TCs
        # (measured no-op on v5e/v6e).  TODO(synk): add an L-tile grid axis for long L.
        dimension_semantics=("parallel",),
        vmem_limit_bytes=_vmem_limit_bytes(L, cin, embed_dim, x.dtype.itemsize))

    if flip_in_kernel:
        # Preferred path: kernel reads/writes the channels-last HBM layout directly.
        return pl.pallas_call(
            functools.partial(_text_conv_embed_kernel, flip_in_kernel=True),
            out_shape=jax.ShapeDtypeStruct((B, L, embed_dim), x.dtype),
            grid=(B,),
            in_specs=[pl.BlockSpec((1, L, cin), lambda b: (b, 0, 0))] + param_specs,
            out_specs=pl.BlockSpec((1, L, embed_dim), lambda b: (b, 0, 0)),
            compiler_params=compiler_params,
        )(x, *flat_params)

    # Compatibility path (channels-first blocks + XLA transposes outside the kernel).
    # Costs two extra HBM round trips; only used if the in-kernel flip fails to lower.
    x_t = jnp.swapaxes(x, 1, 2)                                # (B, Cin, L)
    out_t = pl.pallas_call(
        functools.partial(_text_conv_embed_kernel, flip_in_kernel=False),
        out_shape=jax.ShapeDtypeStruct((B, embed_dim, L), x.dtype),
        grid=(B,),
        in_specs=[pl.BlockSpec((1, cin, L), lambda b: (b, 0, 0))] + param_specs,
        out_specs=pl.BlockSpec((1, embed_dim, L), lambda b: (b, 0, 0)),
        compiler_params=compiler_params,
    )(x_t, *flat_params)
    return jnp.swapaxes(out_t, 1, 2)                           # (B, L, embed_dim)


def text_conv_embed(x, params):
    """Forward pass. x: (B, L, input_dim) -> (B, L, embed_dim)."""
    try:
        return _forward(x, params, flip_in_kernel=True)
    except Exception:
        # TODO(synk): drop this fallback once the in-kernel (L,C)<->(C,L) transposes are
        # confirmed on all deployed Mosaic versions; semantics are identical either way.
        return _forward(x, params, flip_in_kernel=False)


def init_text_conv_embed_params(key, input_dim, embed_dim=32, depth=3,
                                dtype=jnp.float32):
    """Deterministic init matching the PyTorch module's shapes.

    Conv1d weights use PyTorch's default kaiming-uniform bound 1/sqrt(Cin*k) and are
    stored per-tap as (3, Cout, Cin): w_taps[t] == w_torch[:, :, t].
    GroupNorm affine params are stored as (Cout, 1) (weight=1, bias=0 defaults).
    """
    params = []
    for i in range(depth):
        cin = input_dim if i == 0 else embed_dim // 2 ** (depth - i)
        cout = embed_dim // 2 ** (depth - i - 1)
        key, sub = jax.random.split(key)
        bound = 1.0 / math.sqrt(cin * 3)
        w_torch = jax.random.uniform(sub, (cout, cin, 3), dtype=dtype,
                                     minval=-bound, maxval=bound)
        w_taps = jnp.transpose(w_torch, (2, 0, 1))             # (3, Cout, Cin)
        gamma = jnp.ones((cout, 1), dtype=dtype)
        beta = jnp.zeros((cout, 1), dtype=dtype)
        params.append((w_taps, gamma, beta))
    return params


# ---------------- pure-JAX reference (in-script correctness check) ----------------

def _reference(x, params):
    for (w_taps, gamma, beta) in params:
        cin = w_taps.shape[2]
        B, L, _ = x.shape
        zero = jnp.zeros((B, 1, cin), x.dtype)
        x_prev = jnp.concatenate([zero, x[:, :-1, :]], axis=1)
        x_next = jnp.concatenate([x[:, 1:, :], zero], axis=1)
        y = (jnp.einsum('blc,oc->blo', x_prev, w_taps[0])
             + jnp.einsum('blc,oc->blo', x, w_taps[1])
             + jnp.einsum('blc,oc->blo', x_next, w_taps[2]))
        mean = jnp.mean(y, axis=(1, 2), keepdims=True)
        var = jnp.mean((y - mean) ** 2, axis=(1, 2), keepdims=True)
        y = (y - mean) / jnp.sqrt(var + _EPS)
        y = y * gamma[:, 0] + beta[:, 0]
        x = 0.5 * y * (1.0 + jax.lax.erf(y / jnp.sqrt(2.0)))
    return x


if __name__ == "__main__":
    key = jax.random.PRNGKey(0)
    B, L, input_dim, embed_dim, depth = 2, 128, 8, 32, 3

    k_x, k_p = jax.random.split(key)
    x = jax.random.normal(k_x, (B, L, input_dim), dtype=jnp.float32)
    params = init_text_conv_embed_params(k_p, input_dim, embed_dim, depth)

    out = jax.block_until_ready(text_conv_embed(x, params))
    ref = _reference(x, params)

    assert out.shape == (B, L, embed_dim), out.shape
    max_err = float(jnp.max(jnp.abs(out - ref)))
    assert jnp.allclose(out, ref, atol=5e-4, rtol=5e-4), max_err

    print("KERNEL_OK")
</pallas_src>

<mosaic_0001>
module attributes {stable_mosaic.version = 11 : i64} {
  func.func @_text_conv_embed_kernel(%arg0: i32, %arg1: memref<1x128x8xf32, #tpu.memory_space<vmem>>, %arg2: memref<3x8x8xf32, #tpu.memory_space<vmem>>, %arg3: memref<8x1xf32, #tpu.memory_space<vmem>>, %arg4: memref<8x1xf32, #tpu.memory_space<vmem>>, %arg5: memref<3x16x8xf32, #tpu.memory_space<vmem>>, %arg6: memref<16x1xf32, #tpu.memory_space<vmem>>, %arg7: memref<16x1xf32, #tpu.memory_space<vmem>>, %arg8: memref<3x32x16xf32, #tpu.memory_space<vmem>>, %arg9: memref<32x1xf32, #tpu.memory_space<vmem>>, %arg10: memref<32x1xf32, #tpu.memory_space<vmem>>, %arg11: memref<1x128x32xf32, #tpu.memory_space<vmem>>) attributes {dimension_semantics = [#tpu.dimension_semantics<parallel>], iteration_bounds = array<i64: 2>, scalar_prefetch = 0 : i64, scratch_operands = 0 : i64, tpu.core_type = #tpu.core_type<tc>, window_params = [{transform_indices = @transform_0, window_bounds = array<i64: 1, 128, 8>}, {pipeline_mode = #tpu.pipeline_mode<synchronous>, transform_indices = @transform_1, window_bounds = array<i64: 3, 8, 8>}, {pipeline_mode = #tpu.pipeline_mode<synchronous>, transform_indices = @transform_2, window_bounds = array<i64: 8, 1>}, {pipeline_mode = #tpu.pipeline_mode<synchronous>, transform_indices = @transform_3, window_bounds = array<i64: 8, 1>}, {pipeline_mode = #tpu.pipeline_mode<synchronous>, transform_indices = @transform_4, window_bounds = array<i64: 3, 16, 8>}, {pipeline_mode = #tpu.pipeline_mode<synchronous>, transform_indices = @transform_5, window_bounds = array<i64: 16, 1>}, {pipeline_mode = #tpu.pipeline_mode<synchronous>, transform_indices = @transform_6, window_bounds = array<i64: 16, 1>}, {pipeline_mode = #tpu.pipeline_mode<synchronous>, transform_indices = @transform_7, window_bounds = array<i64: 3, 32, 16>}, {pipeline_mode = #tpu.pipeline_mode<synchronous>, transform_indices = @transform_8, window_bounds = array<i64: 32, 1>}, {pipeline_mode = #tpu.pipeline_mode<synchronous>, transform_indices = @transform_9, window_bounds = array<i64: 32, 1>}, {transform_indices = @transform_10, window_bounds = array<i64: 1, 128, 32>}]} {
    %c0 = arith.constant 0 : index
    %c0_0 = arith.constant 0 : index
    %c0_1 = arith.constant 0 : index
    %0 = vector.load %arg1[%c0, %c0_0, %c0_1] : memref<1x128x8xf32, #tpu.memory_space<vmem>>, vector<1x128x8xf32>
    %1 = vector.shape_cast %0 : vector<1x128x8xf32> to vector<128x8xf32>
    %2 = tpu.transpose %1, [1, 0] : vector<128x8xf32> -> vector<8x128xf32>
    %c0_2 = arith.constant 0 : index
    %c0_3 = arith.constant 0 : index
    %c0_4 = arith.constant 0 : index
    %3 = vector.load %arg2[%c0_2, %c0_3, %c0_4] : memref<3x8x8xf32, #tpu.memory_space<vmem>>, vector<1x8x8xf32>
    %4 = vector.shape_cast %3 : vector<1x8x8xf32> to vector<8x8xf32>
    %cst = arith.constant dense<0.000000e+00> : vector<8x128xf32>
    %5 = tpu.matmul %4, %2, %cst {dimension_numbers = #tpu.dot_dimension_numbers<[1], [0], [0], [1], [0, 0, 1, 1], [], []>} : vector<8x8xf32>, vector<8x128xf32>, vector<8x128xf32> -> vector<8x128xf32>
    %c1 = arith.constant 1 : index
    %c0_5 = arith.constant 0 : index
    %c0_6 = arith.constant 0 : index
    %6 = vector.load %arg2[%c1, %c0_5, %c0_6] : memref<3x8x8xf32, #tpu.memory_space<vmem>>, vector<1x8x8xf32>
    %7 = vector.shape_cast %6 : vector<1x8x8xf32> to vector<8x8xf32>
    %cst_7 = arith.constant dense<0.000000e+00> : vector<8x128xf32>
    %8 = tpu.matmul %7, %2, %cst_7 {dimension_numbers = #tpu.dot_dimension_numbers<[1], [0], [0], [1], [0, 0, 1, 1], [], []>} : vector<8x8xf32>, vector<8x128xf32>, vector<8x128xf32> -> vector<8x128xf32>
    %c2 = arith.constant 2 : index
    %c0_8 = arith.constant 0 : index
    %c0_9 = arith.constant 0 : index
    %9 = vector.load %arg2[%c2, %c0_8, %c0_9] : memref<3x8x8xf32, #tpu.memory_space<vmem>>, vector<1x8x8xf32>
    %10 = vector.shape_cast %9 : vector<1x8x8xf32> to vector<8x8xf32>
    %cst_10 = arith.constant dense<0.000000e+00> : vector<8x128xf32>
    %11 = tpu.matmul %10, %2, %cst_10 {dimension_numbers = #tpu.dot_dimension_numbers<[1], [0], [0], [1], [0, 0, 1, 1], [], []>} : vector<8x8xf32>, vector<8x128xf32>, vector<8x128xf32> -> vector<8x128xf32>
    %12 = tpu.iota {dimensions = array<i32: 1>} : vector<8x128xi32>
    %c0_i32 = arith.constant 0 : i32
    %13 = vector.broadcast %c0_i32 : i32 to vector<8x128xi32>
    %14 = arith.cmpi eq, %12, %13 : vector<8x128xi32>
    %c1_i32 = arith.constant 1 : i32
    %15 = tpu.dynamic_rotate %5 by %c1_i32 dim 1 : vector<8x128xf32>, i32 -> vector<8x128xf32>
    %cst_11 = arith.constant 0.000000e+00 : f32
    %16 = vector.broadcast %cst_11 : f32 to vector<8x128xf32>
    %17 = arith.select %14, %16, %15 : vector<8x128xi1>, vector<8x128xf32>
    %c127_i32 = arith.constant 127 : i32
    %18 = vector.broadcast %c127_i32 : i32 to vector<8x128xi32>
    %19 = arith.cmpi eq, %12, %18 : vector<8x128xi32>
    %c127_i32_12 = arith.constant 127 : i32
    %20 = tpu.dynamic_rotate %11 by %c127_i32_12 dim 1 : vector<8x128xf32>, i32 -> vector<8x128xf32>
    %cst_13 = arith.constant 0.000000e+00 : f32
    %21 = vector.broadcast %cst_13 : f32 to vector<8x128xf32>
    %22 = arith.select %19, %21, %20 : vector<8x128xi1>, vector<8x128xf32>
    %23 = arith.addf %17, %8 : vector<8x128xf32>
    %24 = arith.addf %23, %22 : vector<8x128xf32>
    %25 = vector.shape_cast %24 : vector<8x128xf32> to vector<1x8x128xf32>
    %cst_14 = arith.constant dense<0.000000e+00> : vector<1xf32>
    %26 = vector.multi_reduction <add>, %25, %cst_14 [1, 2] : vector<1x8x128xf32> to vector<1xf32>
    %27 = vector.shape_cast %26 : vector<1xf32> to vector<1x1x1xf32>
    %28 = vector.extract %27[0, 0, 0] : f32 from vector<1x1x1xf32>
    %cst_15 = arith.constant 1.024000e+03 : f32
    %29 = arith.divf %28, %cst_15 : f32
    %30 = vector.broadcast %29 : f32 to vector<8x128xf32>
    %31 = arith.subf %24, %30 : vector<8x128xf32>
    %32 = arith.mulf %31, %31 : vector<8x128xf32>
    %33 = vector.shape_cast %32 : vector<8x128xf32> to vector<1x8x128xf32>
    %cst_16 = arith.constant dense<0.000000e+00> : vector<1xf32>
    %34 = vector.multi_reduction <add>, %33, %cst_16 [1, 2] : vector<1x8x128xf32> to vector<1xf32>
    %35 = vector.shape_cast %34 : vector<1xf32> to vector<1x1x1xf32>
    %36 = vector.extract %35[0, 0, 0] : f32 from vector<1x1x1xf32>
    %cst_17 = arith.constant 1.024000e+03 : f32
    %37 = arith.divf %36, %cst_17 : f32
    %cst_18 = arith.constant 9.99999974E-6 : f32
    %38 = arith.addf %37, %cst_18 : f32
    %39 = math.rsqrt %38 : f32
    %40 = vector.broadcast %39 : f32 to vector<8x128xf32>
    %41 = arith.mulf %31, %40 : vector<8x128xf32>
    %c0_19 = arith.constant 0 : index
    %c0_20 = arith.constant 0 : index
    %42 = vector.load %arg3[%c0_19, %c0_20] : memref<8x1xf32, #tpu.memory_space<vmem>>, vector<8x1xf32>
    %43 = vector.broadcast %42 : vector<8x1xf32> to vector<8x128xf32>
    %44 = arith.mulf %41, %43 : vector<8x128xf32>
    %c0_21 = arith.constant 0 : index
    %c0_22 = arith.constant 0 : index
    %45 = vector.load %arg4[%c0_21, %c0_22] : memref<8x1xf32, #tpu.memory_space<vmem>>, vector<8x1xf32>
    %46 = vector.broadcast %45 : vector<8x1xf32> to vector<8x128xf32>
    %47 = arith.addf %44, %46 : vector<8x128xf32>
    %cst_23 = arith.constant 5.000000e-01 : f32
    %48 = vector.broadcast %cst_23 : f32 to vector<8x128xf32>
    %49 = arith.mulf %48, %47 : vector<8x128xf32>
    %cst_24 = arith.constant 0.707106769 : f32
    %50 = vector.broadcast %cst_24 : f32 to vector<8x128xf32>
    %51 = arith.mulf %47, %50 : vector<8x128xf32>
    %52 = math.erf %51 : vector<8x128xf32>
    %cst_25 = arith.constant 1.000000e+00 : f32
    %53 = vector.broadcast %cst_25 : f32 to vector<8x128xf32>
    %54 = arith.addf %53, %52 : vector<8x128xf32>
    %55 = arith.mulf %49, %54 : vector<8x128xf32>
    %c0_26 = arith.constant 0 : index
    %c0_27 = arith.constant 0 : index
    %c0_28 = arith.constant 0 : index
    %56 = vector.load %arg5[%c0_26, %c0_27, %c0_28] : memref<3x16x8xf32, #tpu.memory_space<vmem>>, vector<1x16x8xf32>
    %57 = vector.shape_cast %56 : vector<1x16x8xf32> to vector<16x8xf32>
    %cst_29 = arith.constant dense<0.000000e+00> : vector<16x128xf32>
    %58 = tpu.matmul %57, %55, %cst_29 {dimension_numbers = #tpu.dot_dimension_numbers<[1], [0], [0], [1], [0, 0, 1, 1], [], []>} : vector<16x8xf32>, vector<8x128xf32>, vector<16x128xf32> -> vector<16x128xf32>
    %c1_30 = arith.constant 1 : index
    %c0_31 = arith.constant 0 : index
    %c0_32 = arith.constant 0 : index
    %59 = vector.load %arg5[%c1_30, %c0_31, %c0_32] : memref<3x16x8xf32, #tpu.memory_space<vmem>>, vector<1x16x8xf32>
    %60 = vector.shape_cast %59 : vector<1x16x8xf32> to vector<16x8xf32>
    %cst_33 = arith.constant dense<0.000000e+00> : vector<16x128xf32>
    %61 = tpu.matmul %60, %55, %cst_33 {dimension_numbers = #tpu.dot_dimension_numbers<[1], [0], [0], [1], [0, 0, 1, 1], [], []>} : vector<16x8xf32>, vector<8x128xf32>, vector<16x128xf32> -> vector<16x128xf32>
    %c2_34 = arith.constant 2 : index
    %c0_35 = arith.constant 0 : index
    %c0_36 = arith.constant 0 : index
    %62 = vector.load %arg5[%c2_34, %c0_35, %c0_36] : memref<3x16x8xf32, #tpu.memory_space<vmem>>, vector<1x16x8xf32>
    %63 = vector.shape_cast %62 : vector<1x16x8xf32> to vector<16x8xf32>
    %cst_37 = arith.constant dense<0.000000e+00> : vector<16x128xf32>
    %64 = tpu.matmul %63, %55, %cst_37 {dimension_numbers = #tpu.dot_dimension_numbers<[1], [0], [0], [1], [0, 0, 1, 1], [], []>} : vector<16x8xf32>, vector<8x128xf32>, vector<16x128xf32> -> vector<16x128xf32>
    %65 = tpu.iota {dimensions = array<i32: 1>} : vector<16x128xi32>
    %c0_i32_38 = arith.constant 0 : i32
    %66 = vector.broadcast %c0_i32_38 : i32 to vector<16x128xi32>
    %67 = arith.cmpi eq, %65, %66 : vector<16x128xi32>
    %c1_i32_39 = arith.constant 1 : i32
    %68 = tpu.dynamic_rotate %58 by %c1_i32_39 dim 1 : vector<16x128xf32>, i32 -> vector<16x128xf32>
    %cst_40 = arith.constant 0.000000e+00 : f32
    %69 = vector.broadcast %cst_40 : f32 to vector<16x128xf32>
    %70 = arith.select %67, %69, %68 : vector<16x128xi1>, vector<16x128xf32>
    %c127_i32_41 = arith.constant 127 : i32
    %71 = vector.broadcast %c127_i32_41 : i32 to vector<16x128xi32>
    %72 = arith.cmpi eq, %65, %71 : vector<16x128xi32>
    %c127_i32_42 = arith.constant 127 : i32
    %73 = tpu.dynamic_rotate %64 by %c127_i32_42 dim 1 : vector<16x128xf32>, i32 -> vector<16x128xf32>
    %cst_43 = arith.constant 0.000000e+00 : f32
    %74 = vector.broadcast %cst_43 : f32 to vector<16x128xf32>
    %75 = arith.select %72, %74, %73 : vector<16x128xi1>, vector<16x128xf32>
    %76 = arith.addf %70, %61 : vector<16x128xf32>
    %77 = arith.addf %76, %75 : vector<16x128xf32>
    %78 = vector.shape_cast %77 : vector<16x128xf32> to vector<1x16x128xf32>
    %cst_44 = arith.constant dense<0.000000e+00> : vector<1xf32>
    %79 = vector.multi_reduction <add>, %78, %cst_44 [1, 2] : vector<1x16x128xf32> to vector<1xf32>
    %80 = vector.shape_cast %79 : vector<1xf32> to vector<1x1x1xf32>
    %81 = vector.extract %80[0, 0, 0] : f32 from vector<1x1x1xf32>
    %cst_45 = arith.constant 2.048000e+03 : f32
    %82 = arith.divf %81, %cst_45 : f32
    %83 = vector.broadcast %82 : f32 to vector<16x128xf32>
    %84 = arith.subf %77, %83 : vector<16x128xf32>
    %85 = arith.mulf %84, %84 : vector<16x128xf32>
    %86 = vector.shape_cast %85 : vector<16x128xf32> to vector<1x16x128xf32>
    %cst_46 = arith.constant dense<0.000000e+00> : vector<1xf32>
    %87 = vector.multi_reduction <add>, %86, %cst_46 [1, 2] : vector<1x16x128xf32> to vector<1xf32>
    %88 = vector.shape_cast %87 : vector<1xf32> to vector<1x1x1xf32>
    %89 = vector.extract %88[0, 0, 0] : f32 from vector<1x1x1xf32>
    %cst_47 = arith.constant 2.048000e+03 : f32
    %90 = arith.divf %89, %cst_47 : f32
    %cst_48 = arith.constant 9.99999974E-6 : f32
    %91 = arith.addf %90, %cst_48 : f32
    %92 = math.rsqrt %91 : f32
    %93 = vector.broadcast %92 : f32 to vector<16x128xf32>
    %94 = arith.mulf %84, %93 : vector<16x128xf32>
    %c0_49 = arith.constant 0 : index
    %c0_50 = arith.constant 0 : index
    %95 = vector.load %arg6[%c0_49, %c0_50] : memref<16x1xf32, #tpu.memory_space<vmem>>, vector<16x1xf32>
    %96 = vector.broadcast %95 : vector<16x1xf32> to vector<16x128xf32>
    %97 = arith.mulf %94, %96 : vector<16x128xf32>
    %c0_51 = arith.constant 0 : index
    %c0_52 = arith.constant 0 : index
    %98 = vector.load %arg7[%c0_51, %c0_52] : memref<16x1xf32, #tpu.memory_space<vmem>>, vector<16x1xf32>
    %99 = vector.broadcast %98 : vector<16x1xf32> to vector<16x128xf32>
    %100 = arith.addf %97, %99 : vector<16x128xf32>
    %cst_53 = arith.constant 5.000000e-01 : f32
    %101 = vector.broadcast %cst_53 : f32 to vector<16x128xf32>
    %102 = arith.mulf %101, %100 : vector<16x128xf32>
    %cst_54 = arith.constant 0.707106769 : f32
    %103 = vector.broadcast %cst_54 : f32 to vector<16x128xf32>
    %104 = arith.mulf %100, %103 : vector<16x128xf32>
    %105 = math.erf %104 : vector<16x128xf32>
    %cst_55 = arith.constant 1.000000e+00 : f32
    %106 = vector.broadcast %cst_55 : f32 to vector<16x128xf32>
    %107 = arith.addf %106, %105 : vector<16x128xf32>
    %108 = arith.mulf %102, %107 : vector<16x128xf32>
    %c0_56 = arith.constant 0 : index
    %c0_57 = arith.constant 0 : index
    %c0_58 = arith.constant 0 : index
    %109 = vector.load %arg8[%c0_56, %c0_57, %c0_58] : memref<3x32x16xf32, #tpu.memory_space<vmem>>, vector<1x32x16xf32>
    %110 = vector.shape_cast %109 : vector<1x32x16xf32> to vector<32x16xf32>
    %cst_59 = arith.constant dense<0.000000e+00> : vector<32x128xf32>
    %111 = tpu.matmul %110, %108, %cst_59 {dimension_numbers = #tpu.dot_dimension_numbers<[1], [0], [0], [1], [0, 0, 1, 1], [], []>} : vector<32x16xf32>, vector<16x128xf32>, vector<32x128xf32> -> vector<32x128xf32>
    %c1_60 = arith.constant 1 : index
    %c0_61 = arith.constant 0 : index
    %c0_62 = arith.constant 0 : index
    %112 = vector.load %arg8[%c1_60, %c0_61, %c0_62] : memref<3x32x16xf32, #tpu.memory_space<vmem>>, vector<1x32x16xf32>
    %113 = vector.shape_cast %112 : vector<1x32x16xf32> to vector<32x16xf32>
    %cst_63 = arith.constant dense<0.000000e+00> : vector<32x128xf32>
    %114 = tpu.matmul %113, %108, %cst_63 {dimension_numbers = #tpu.dot_dimension_numbers<[1], [0], [0], [1], [0, 0, 1, 1], [], []>} : vector<32x16xf32>, vector<16x128xf32>, vector<32x128xf32> -> vector<32x128xf32>
    %c2_64 = arith.constant 2 : index
    %c0_65 = arith.constant 0 : index
    %c0_66 = arith.constant 0 : index
    %115 = vector.load %arg8[%c2_64, %c0_65, %c0_66] : memref<3x32x16xf32, #tpu.memory_space<vmem>>, vector<1x32x16xf32>
    %116 = vector.shape_cast %115 : vector<1x32x16xf32> to vector<32x16xf32>
    %cst_67 = arith.constant dense<0.000000e+00> : vector<32x128xf32>
    %117 = tpu.matmul %116, %108, %cst_67 {dimension_numbers = #tpu.dot_dimension_numbers<[1], [0], [0], [1], [0, 0, 1, 1], [], []>} : vector<32x16xf32>, vector<16x128xf32>, vector<32x128xf32> -> vector<32x128xf32>
    %118 = tpu.iota {dimensions = array<i32: 1>} : vector<32x128xi32>
    %c0_i32_68 = arith.constant 0 : i32
    %119 = vector.broadcast %c0_i32_68 : i32 to vector<32x128xi32>
    %120 = arith.cmpi eq, %118, %119 : vector<32x128xi32>
    %c1_i32_69 = arith.constant 1 : i32
    %121 = tpu.dynamic_rotate %111 by %c1_i32_69 dim 1 : vector<32x128xf32>, i32 -> vector<32x128xf32>
    %cst_70 = arith.constant 0.000000e+00 : f32
    %122 = vector.broadcast %cst_70 : f32 to vector<32x128xf32>
    %123 = arith.select %120, %122, %121 : vector<32x128xi1>, vector<32x128xf32>
    %c127_i32_71 = arith.constant 127 : i32
    %124 = vector.broadcast %c127_i32_71 : i32 to vector<32x128xi32>
    %125 = arith.cmpi eq, %118, %124 : vector<32x128xi32>
    %c127_i32_72 = arith.constant 127 : i32
    %126 = tpu.dynamic_rotate %117 by %c127_i32_72 dim 1 : vector<32x128xf32>, i32 -> vector<32x128xf32>
    %cst_73 = arith.constant 0.000000e+00 : f32
    %127 = vector.broadcast %cst_73 : f32 to vector<32x128xf32>
    %128 = arith.select %125, %127, %126 : vector<32x128xi1>, vector<32x128xf32>
    %129 = arith.addf %123, %114 : vector<32x128xf32>
    %130 = arith.addf %129, %128 : vector<32x128xf32>
    %131 = vector.shape_cast %130 : vector<32x128xf32> to vector<1x32x128xf32>
    %cst_74 = arith.constant dense<0.000000e+00> : vector<1xf32>
    %132 = vector.multi_reduction <add>, %131, %cst_74 [1, 2] : vector<1x32x128xf32> to vector<1xf32>
    %133 = vector.shape_cast %132 : vector<1xf32> to vector<1x1x1xf32>
    %134 = vector.extract %133[0, 0, 0] : f32 from vector<1x1x1xf32>
    %cst_75 = arith.constant 4.096000e+03 : f32
    %135 = arith.divf %134, %cst_75 : f32
    %136 = vector.broadcast %135 : f32 to vector<32x128xf32>
    %137 = arith.subf %130, %136 : vector<32x128xf32>
    %138 = arith.mulf %137, %137 : vector<32x128xf32>
    %139 = vector.shape_cast %138 : vector<32x128xf32> to vector<1x32x128xf32>
    %cst_76 = arith.constant dense<0.000000e+00> : vector<1xf32>
    %140 = vector.multi_reduction <add>, %139, %cst_76 [1, 2] : vector<1x32x128xf32> to vector<1xf32>
    %141 = vector.shape_cast %140 : vector<1xf32> to vector<1x1x1xf32>
    %142 = vector.extract %141[0, 0, 0] : f32 from vector<1x1x1xf32>
    %cst_77 = arith.constant 4.096000e+03 : f32
    %143 = arith.divf %142, %cst_77 : f32
    %cst_78 = arith.constant 9.99999974E-6 : f32
    %144 = arith.addf %143, %cst_78 : f32
    %145 = math.rsqrt %144 : f32
    %146 = vector.broadcast %145 : f32 to vector<32x128xf32>
    %147 = arith.mulf %137, %146 : vector<32x128xf32>
    %c0_79 = arith.constant 0 : index
    %c0_80 = arith.constant 0 : index
    %148 = vector.load %arg9[%c0_79, %c0_80] : memref<32x1xf32, #tpu.memory_space<vmem>>, vector<32x1xf32>
    %149 = vector.broadcast %148 : vector<32x1xf32> to vector<32x128xf32>
    %150 = arith.mulf %147, %149 : vector<32x128xf32>
    %c0_81 = arith.constant 0 : index
    %c0_82 = arith.constant 0 : index
    %151 = vector.load %arg10[%c0_81, %c0_82] : memref<32x1xf32, #tpu.memory_space<vmem>>, vector<32x1xf32>
    %152 = vector.broadcast %151 : vector<32x1xf32> to vector<32x128xf32>
    %153 = arith.addf %150, %152 : vector<32x128xf32>
    %cst_83 = arith.constant 5.000000e-01 : f32
    %154 = vector.broadcast %cst_83 : f32 to vector<32x128xf32>
    %155 = arith.mulf %154, %153 : vector<32x128xf32>
    %cst_84 = arith.constant 0.707106769 : f32
    %156 = vector.broadcast %cst_84 : f32 to vector<32x128xf32>
    %157 = arith.mulf %153, %156 : vector<32x128xf32>
    %158 = math.erf %157 : vector<32x128xf32>
    %cst_85 = arith.constant 1.000000e+00 : f32
    %159 = vector.broadcast %cst_85 : f32 to vector<32x128xf32>
    %160 = arith.addf %159, %158 : vector<32x128xf32>
    %161 = arith.mulf %155, %160 : vector<32x128xf32>
    %162 = tpu.transpose %161, [1, 0] : vector<32x128xf32> -> vector<128x32xf32>
    %c0_86 = arith.constant 0 : index
    %c0_87 = arith.constant 0 : index
    %c0_88 = arith.constant 0 : index
    %163 = vector.load %arg11[%c0_86, %c0_87, %c0_88] : memref<1x128x32xf32, #tpu.memory_space<vmem>>, vector<1x128x32xf32>
    %164 = vector.shape_cast %163 : vector<1x128x32xf32> to vector<128x32xf32>
    %165 = vector.shape_cast %162 : vector<128x32xf32> to vector<1x128x32xf32>
    tpu.vector_store %arg11[%c0_86, %c0_87, %c0_88], %165 {strides = array<i32>} : memref<1x128x32xf32, #tpu.memory_space<vmem>>, vector<1x128x32xf32>,
    return
  }
  func.func @transform_0(%arg0: i32) -> (i32, i32, i32) {
    %c0_i32 = arith.constant 0 : i32
    %c0_i32_0 = arith.constant 0 : i32
    %c0_i32_1 = arith.constant 0 : i32
    return %arg0, %c0_i32, %c0_i32_0 : i32, i32, i32
  }
  func.func @transform_1(%arg0: i32) -> (i32, i32, i32) {
    %c0_i32 = arith.constant 0 : i32
    %c0_i32_0 = arith.constant 0 : i32
    %c0_i32_1 = arith.constant 0 : i32
    %c0_i32_2 = arith.constant 0 : i32
    return %c0_i32, %c0_i32_0, %c0_i32_1 : i32, i32, i32
  }
  func.func @transform_2(%arg0: i32) -> (i32, i32) {
    %c0_i32 = arith.constant 0 : i32
    %c0_i32_0 = arith.constant 0 : i32
    %c0_i32_1 = arith.constant 0 : i32
    return %c0_i32, %c0_i32_0 : i32, i32
  }
  func.func @transform_3(%arg0: i32) -> (i32, i32) {
    %c0_i32 = arith.constant 0 : i32
    %c0_i32_0 = arith.constant 0 : i32
    %c0_i32_1 = arith.constant 0 : i32
    return %c0_i32, %c0_i32_0 : i32, i32
  }
  func.func @transform_4(%arg0: i32) -> (i32, i32, i32) {
    %c0_i32 = arith.constant 0 : i32
    %c0_i32_0 = arith.constant 0 : i32
    %c0_i32_1 = arith.constant 0 : i32
    %c0_i32_2 = arith.constant 0 : i32
    return %c0_i32, %c0_i32_0, %c0_i32_1 : i32, i32, i32
  }
  func.func @transform_5(%arg0: i32) -> (i32, i32) {
    %c0_i32 = arith.constant 0 : i32
    %c0_i32_0 = arith.constant 0 : i32
    %c0_i32_1 = arith.constant 0 : i32
    return %c0_i32, %c0_i32_0 : i32, i32
  }
  func.func @transform_6(%arg0: i32) -> (i32, i32) {
    %c0_i32 = arith.constant 0 : i32
    %c0_i32_0 = arith.constant 0 : i32
    %c0_i32_1 = arith.constant 0 : i32
    return %c0_i32, %c0_i32_0 : i32, i32
  }
  func.func @transform_7(%arg0: i32) -> (i32, i32, i32) {
    %c0_i32 = arith.constant 0 : i32
    %c0_i32_0 = arith.constant 0 : i32
    %c0_i32_1 = arith.constant 0 : i32
    %c0_i32_2 = arith.constant 0 : i32
    return %c0_i32, %c0_i32_0, %c0_i32_1 : i32, i32, i32
  }
  func.func @transform_8(%arg0: i32) -> (i32, i32) {
    %c0_i32 = arith.constant 0 : i32
    %c0_i32_0 = arith.constant 0 : i32
    %c0_i32_1 = arith.constant 0 : i32
    return %c0_i32, %c0_i32_0 : i32, i32
  }
  func.func @transform_9(%arg0: i32) -> (i32, i32) {
    %c0_i32 = arith.constant 0 : i32
    %c0_i32_0 = arith.constant 0 : i32
    %c0_i32_1 = arith.constant 0 : i32
    return %c0_i32, %c0_i32_0 : i32, i32
  }
  func.func @transform_10(%arg0: i32) -> (i32, i32, i32) {
    %c0_i32 = arith.constant 0 : i32
    %c0_i32_0 = arith.constant 0 : i32
    %c0_i32_1 = arith.constant 0 : i32
    return %arg0, %c0_i32, %c0_i32_0 : i32, i32, i32
  }
}

module attributes {stable_mosaic.version = 11 : i64} {
  func.func @_text_conv_embed_kernel(%arg0: i32, %arg1: memref<1x8x128xf32, #tpu.memory_space<vmem>>, %arg2: memref<3x8x8xf32, #tpu.memory_space<vmem>>, %arg3: memref<8x1xf32, #tpu.memory_space<vmem>>, %arg4: memref<8x1xf32, #tpu.memory_space<vmem>>, %arg5: memref<3x16x8xf32, #tpu.memory_space<vmem>>, %arg6: memref<16x1xf32, #tpu.memory_space<vmem>>, %arg7: memref<16x1xf32, #tpu.memory_space<vmem>>, %arg8: memref<3x32x16xf32, #tpu.memory_space<vmem>>, %arg9: memref<32x1xf32, #tpu.memory_space<vmem>>, %arg10: memref<32x1xf32, #tpu.memory_space<vmem>>, %arg11: memref<1x32x128xf32, #tpu.memory_space<vmem>>) attributes {dimension_semantics = [#tpu.dimension_semantics<parallel>], iteration_bounds = array<i64: 2>, scalar_prefetch = 0 : i64, scratch_operands = 0 : i64, tpu.core_type = #tpu.core_type<tc>, window_params = [{transform_indices = @transform_0, window_bounds = array<i64: 1, 8, 128>}, {pipeline_mode = #tpu.pipeline_mode<synchronous>, transform_indices = @transform_1, window_bounds = array<i64: 3, 8, 8>}, {pipeline_mode = #tpu.pipeline_mode<synchronous>, transform_indices = @transform_2, window_bounds = array<i64: 8, 1>}, {pipeline_mode = #tpu.pipeline_mode<synchronous>, transform_indices = @transform_3, window_bounds = array<i64: 8, 1>}, {pipeline_mode = #tpu.pipeline_mode<synchronous>, transform_indices = @transform_4, window_bounds = array<i64: 3, 16, 8>}, {pipeline_mode = #tpu.pipeline_mode<synchronous>, transform_indices = @transform_5, window_bounds = array<i64: 16, 1>}, {pipeline_mode = #tpu.pipeline_mode<synchronous>, transform_indices = @transform_6, window_bounds = array<i64: 16, 1>}, {pipeline_mode = #tpu.pipeline_mode<synchronous>, transform_indices = @transform_7, window_bounds = array<i64: 3, 32, 16>}, {pipeline_mode = #tpu.pipeline_mode<synchronous>, transform_indices = @transform_8, window_bounds = array<i64: 32, 1>}, {pipeline_mode = #tpu.pipeline_mode<synchronous>, transform_indices = @transform_9, window_bounds = array<i64: 32, 1>}, {transform_indices = @transform_10, window_bounds = array<i64: 1, 32, 128>}]} {
    %c0 = arith.constant 0 : index
    %c0_0 = arith.constant 0 : index
    %c0_1 = arith.constant 0 : index
    %0 = vector.load %arg1[%c0, %c0_0, %c0_1] : memref<1x8x128xf32, #tpu.memory_space<vmem>>, vector<1x8x128xf32>
    %1 = vector.shape_cast %0 : vector<1x8x128xf32> to vector<8x128xf32>
    %c0_2 = arith.constant 0 : index
    %c0_3 = arith.constant 0 : index
    %c0_4 = arith.constant 0 : index
    %2 = vector.load %arg2[%c0_2, %c0_3, %c0_4] : memref<3x8x8xf32, #tpu.memory_space<vmem>>, vector<1x8x8xf32>
    %3 = vector.shape_cast %2 : vector<1x8x8xf32> to vector<8x8xf32>
    %cst = arith.constant dense<0.000000e+00> : vector<8x128xf32>
    %4 = tpu.matmul %3, %1, %cst {dimension_numbers = #tpu.dot_dimension_numbers<[1], [0], [0], [1], [0, 0, 1, 1], [], []>} : vector<8x8xf32>, vector<8x128xf32>, vector<8x128xf32> -> vector<8x128xf32>
    %c1 = arith.constant 1 : index
    %c0_5 = arith.constant 0 : index
    %c0_6 = arith.constant 0 : index
    %5 = vector.load %arg2[%c1, %c0_5, %c0_6] : memref<3x8x8xf32, #tpu.memory_space<vmem>>, vector<1x8x8xf32>
    %6 = vector.shape_cast %5 : vector<1x8x8xf32> to vector<8x8xf32>
    %cst_7 = arith.constant dense<0.000000e+00> : vector<8x128xf32>
    %7 = tpu.matmul %6, %1, %cst_7 {dimension_numbers = #tpu.dot_dimension_numbers<[1], [0], [0], [1], [0, 0, 1, 1], [], []>} : vector<8x8xf32>, vector<8x128xf32>, vector<8x128xf32> -> vector<8x128xf32>
    %c2 = arith.constant 2 : index
    %c0_8 = arith.constant 0 : index
    %c0_9 = arith.constant 0 : index
    %8 = vector.load %arg2[%c2, %c0_8, %c0_9] : memref<3x8x8xf32, #tpu.memory_space<vmem>>, vector<1x8x8xf32>
    %9 = vector.shape_cast %8 : vector<1x8x8xf32> to vector<8x8xf32>
    %cst_10 = arith.constant dense<0.000000e+00> : vector<8x128xf32>
    %10 = tpu.matmul %9, %1, %cst_10 {dimension_numbers = #tpu.dot_dimension_numbers<[1], [0], [0], [1], [0, 0, 1, 1], [], []>} : vector<8x8xf32>, vector<8x128xf32>, vector<8x128xf32> -> vector<8x128xf32>
    %11 = tpu.iota {dimensions = array<i32: 1>} : vector<8x128xi32>
    %c0_i32 = arith.constant 0 : i32
    %12 = vector.broadcast %c0_i32 : i32 to vector<8x128xi32>
    %13 = arith.cmpi eq, %11, %12 : vector<8x128xi32>
    %c1_i32 = arith.constant 1 : i32
    %14 = tpu.dynamic_rotate %4 by %c1_i32 dim 1 : vector<8x128xf32>, i32 -> vector<8x128xf32>
    %cst_11 = arith.constant 0.000000e+00 : f32
    %15 = vector.broadcast %cst_11 : f32 to vector<8x128xf32>
    %16 = arith.select %13, %15, %14 : vector<8x128xi1>, vector<8x128xf32>
    %c127_i32 = arith.constant 127 : i32
    %17 = vector.broadcast %c127_i32 : i32 to vector<8x128xi32>
    %18 = arith.cmpi eq, %11, %17 : vector<8x128xi32>
    %c127_i32_12 = arith.constant 127 : i32
    %19 = tpu.dynamic_rotate %10 by %c127_i32_12 dim 1 : vector<8x128xf32>, i32 -> vector<8x128xf32>
    %cst_13 = arith.constant 0.000000e+00 : f32
    %20 = vector.broadcast %cst_13 : f32 to vector<8x128xf32>
    %21 = arith.select %18, %20, %19 : vector<8x128xi1>, vector<8x128xf32>
    %22 = arith.addf %16, %7 : vector<8x128xf32>
    %23 = arith.addf %22, %21 : vector<8x128xf32>
    %24 = vector.shape_cast %23 : vector<8x128xf32> to vector<1x8x128xf32>
    %cst_14 = arith.constant dense<0.000000e+00> : vector<1xf32>
    %25 = vector.multi_reduction <add>, %24, %cst_14 [1, 2] : vector<1x8x128xf32> to vector<1xf32>
    %26 = vector.shape_cast %25 : vector<1xf32> to vector<1x1x1xf32>
    %27 = vector.extract %26[0, 0, 0] : f32 from vector<1x1x1xf32>
    %cst_15 = arith.constant 1.024000e+03 : f32
    %28 = arith.divf %27, %cst_15 : f32
    %29 = vector.broadcast %28 : f32 to vector<8x128xf32>
    %30 = arith.subf %23, %29 : vector<8x128xf32>
    %31 = arith.mulf %30, %30 : vector<8x128xf32>
    %32 = vector.shape_cast %31 : vector<8x128xf32> to vector<1x8x128xf32>
    %cst_16 = arith.constant dense<0.000000e+00> : vector<1xf32>
    %33 = vector.multi_reduction <add>, %32, %cst_16 [1, 2] : vector<1x8x128xf32> to vector<1xf32>
    %34 = vector.shape_cast %33 : vector<1xf32> to vector<1x1x1xf32>
    %35 = vector.extract %34[0, 0, 0] : f32 from vector<1x1x1xf32>
    %cst_17 = arith.constant 1.024000e+03 : f32
    %36 = arith.divf %35, %cst_17 : f32
    %cst_18 = arith.constant 9.99999974E-6 : f32
    %37 = arith.addf %36, %cst_18 : f32
    %38 = math.rsqrt %37 : f32
    %39 = vector.broadcast %38 : f32 to vector<8x128xf32>
    %40 = arith.mulf %30, %39 : vector<8x128xf32>
    %c0_19 = arith.constant 0 : index
    %c0_20 = arith.constant 0 : index
    %41 = vector.load %arg3[%c0_19, %c0_20] : memref<8x1xf32, #tpu.memory_space<vmem>>, vector<8x1xf32>
    %42 = vector.broadcast %41 : vector<8x1xf32> to vector<8x128xf32>
    %43 = arith.mulf %40, %42 : vector<8x128xf32>
    %c0_21 = arith.constant 0 : index
    %c0_22 = arith.constant 0 : index
    %44 = vector.load %arg4[%c0_21, %c0_22] : memref<8x1xf32, #tpu.memory_space<vmem>>, vector<8x1xf32>
    %45 = vector.broadcast %44 : vector<8x1xf32> to vector<8x128xf32>
    %46 = arith.addf %43, %45 : vector<8x128xf32>
    %cst_23 = arith.constant 5.000000e-01 : f32
    %47 = vector.broadcast %cst_23 : f32 to vector<8x128xf32>
    %48 = arith.mulf %47, %46 : vector<8x128xf32>
    %cst_24 = arith.constant 0.707106769 : f32
    %49 = vector.broadcast %cst_24 : f32 to vector<8x128xf32>
    %50 = arith.mulf %46, %49 : vector<8x128xf32>
    %51 = math.erf %50 : vector<8x128xf32>
    %cst_25 = arith.constant 1.000000e+00 : f32
    %52 = vector.broadcast %cst_25 : f32 to vector<8x128xf32>
    %53 = arith.addf %52, %51 : vector<8x128xf32>
    %54 = arith.mulf %48, %53 : vector<8x128xf32>
    %c0_26 = arith.constant 0 : index
    %c0_27 = arith.constant 0 : index
    %c0_28 = arith.constant 0 : index
    %55 = vector.load %arg5[%c0_26, %c0_27, %c0_28] : memref<3x16x8xf32, #tpu.memory_space<vmem>>, vector<1x16x8xf32>
    %56 = vector.shape_cast %55 : vector<1x16x8xf32> to vector<16x8xf32>
    %cst_29 = arith.constant dense<0.000000e+00> : vector<16x128xf32>
    %57 = tpu.matmul %56, %54, %cst_29 {dimension_numbers = #tpu.dot_dimension_numbers<[1], [0], [0], [1], [0, 0, 1, 1], [], []>} : vector<16x8xf32>, vector<8x128xf32>, vector<16x128xf32> -> vector<16x128xf32>
    %c1_30 = arith.constant 1 : index
    %c0_31 = arith.constant 0 : index
    %c0_32 = arith.constant 0 : index
    %58 = vector.load %arg5[%c1_30, %c0_31, %c0_32] : memref<3x16x8xf32, #tpu.memory_space<vmem>>, vector<1x16x8xf32>
    %59 = vector.shape_cast %58 : vector<1x16x8xf32> to vector<16x8xf32>
    %cst_33 = arith.constant dense<0.000000e+00> : vector<16x128xf32>
    %60 = tpu.matmul %59, %54, %cst_33 {dimension_numbers = #tpu.dot_dimension_numbers<[1], [0], [0], [1], [0, 0, 1, 1], [], []>} : vector<16x8xf32>, vector<8x128xf32>, vector<16x128xf32> -> vector<16x128xf32>
    %c2_34 = arith.constant 2 : index
    %c0_35 = arith.constant 0 : index
    %c0_36 = arith.constant 0 : index
    %61 = vector.load %arg5[%c2_34, %c0_35, %c0_36] : memref<3x16x8xf32, #tpu.memory_space<vmem>>, vector<1x16x8xf32>
    %62 = vector.shape_cast %61 : vector<1x16x8xf32> to vector<16x8xf32>
    %cst_37 = arith.constant dense<0.000000e+00> : vector<16x128xf32>
    %63 = tpu.matmul %62, %54, %cst_37 {dimension_numbers = #tpu.dot_dimension_numbers<[1], [0], [0], [1], [0, 0, 1, 1], [], []>} : vector<16x8xf32>, vector<8x128xf32>, vector<16x128xf32> -> vector<16x128xf32>
    %64 = tpu.iota {dimensions = array<i32: 1>} : vector<16x128xi32>
    %c0_i32_38 = arith.constant 0 : i32
    %65 = vector.broadcast %c0_i32_38 : i32 to vector<16x128xi32>
    %66 = arith.cmpi eq, %64, %65 : vector<16x128xi32>
    %c1_i32_39 = arith.constant 1 : i32
    %67 = tpu.dynamic_rotate %57 by %c1_i32_39 dim 1 : vector<16x128xf32>, i32 -> vector<16x128xf32>
    %cst_40 = arith.constant 0.000000e+00 : f32
    %68 = vector.broadcast %cst_40 : f32 to vector<16x128xf32>
    %69 = arith.select %66, %68, %67 : vector<16x128xi1>, vector<16x128xf32>
    %c127_i32_41 = arith.constant 127 : i32
    %70 = vector.broadcast %c127_i32_41 : i32 to vector<16x128xi32>
    %71 = arith.cmpi eq, %64, %70 : vector<16x128xi32>
    %c127_i32_42 = arith.constant 127 : i32
    %72 = tpu.dynamic_rotate %63 by %c127_i32_42 dim 1 : vector<16x128xf32>, i32 -> vector<16x128xf32>
    %cst_43 = arith.constant 0.000000e+00 : f32
    %73 = vector.broadcast %cst_43 : f32 to vector<16x128xf32>
    %74 = arith.select %71, %73, %72 : vector<16x128xi1>, vector<16x128xf32>
    %75 = arith.addf %69, %60 : vector<16x128xf32>
    %76 = arith.addf %75, %74 : vector<16x128xf32>
    %77 = vector.shape_cast %76 : vector<16x128xf32> to vector<1x16x128xf32>
    %cst_44 = arith.constant dense<0.000000e+00> : vector<1xf32>
    %78 = vector.multi_reduction <add>, %77, %cst_44 [1, 2] : vector<1x16x128xf32> to vector<1xf32>
    %79 = vector.shape_cast %78 : vector<1xf32> to vector<1x1x1xf32>
    %80 = vector.extract %79[0, 0, 0] : f32 from vector<1x1x1xf32>
    %cst_45 = arith.constant 2.048000e+03 : f32
    %81 = arith.divf %80, %cst_45 : f32
    %82 = vector.broadcast %81 : f32 to vector<16x128xf32>
    %83 = arith.subf %76, %82 : vector<16x128xf32>
    %84 = arith.mulf %83, %83 : vector<16x128xf32>
    %85 = vector.shape_cast %84 : vector<16x128xf32> to vector<1x16x128xf32>
    %cst_46 = arith.constant dense<0.000000e+00> : vector<1xf32>
    %86 = vector.multi_reduction <add>, %85, %cst_46 [1, 2] : vector<1x16x128xf32> to vector<1xf32>
    %87 = vector.shape_cast %86 : vector<1xf32> to vector<1x1x1xf32>
    %88 = vector.extract %87[0, 0, 0] : f32 from vector<1x1x1xf32>
    %cst_47 = arith.constant 2.048000e+03 : f32
    %89 = arith.divf %88, %cst_47 : f32
    %cst_48 = arith.constant 9.99999974E-6 : f32
    %90 = arith.addf %89, %cst_48 : f32
    %91 = math.rsqrt %90 : f32
    %92 = vector.broadcast %91 : f32 to vector<16x128xf32>
    %93 = arith.mulf %83, %92 : vector<16x128xf32>
    %c0_49 = arith.constant 0 : index
    %c0_50 = arith.constant 0 : index
    %94 = vector.load %arg6[%c0_49, %c0_50] : memref<16x1xf32, #tpu.memory_space<vmem>>, vector<16x1xf32>
    %95 = vector.broadcast %94 : vector<16x1xf32> to vector<16x128xf32>
    %96 = arith.mulf %93, %95 : vector<16x128xf32>
    %c0_51 = arith.constant 0 : index
    %c0_52 = arith.constant 0 : index
    %97 = vector.load %arg7[%c0_51, %c0_52] : memref<16x1xf32, #tpu.memory_space<vmem>>, vector<16x1xf32>
    %98 = vector.broadcast %97 : vector<16x1xf32> to vector<16x128xf32>
    %99 = arith.addf %96, %98 : vector<16x128xf32>
    %cst_53 = arith.constant 5.000000e-01 : f32
    %100 = vector.broadcast %cst_53 : f32 to vector<16x128xf32>
    %101 = arith.mulf %100, %99 : vector<16x128xf32>
    %cst_54 = arith.constant 0.707106769 : f32
    %102 = vector.broadcast %cst_54 : f32 to vector<16x128xf32>
    %103 = arith.mulf %99, %102 : vector<16x128xf32>
    %104 = math.erf %103 : vector<16x128xf32>
    %cst_55 = arith.constant 1.000000e+00 : f32
    %105 = vector.broadcast %cst_55 : f32 to vector<16x128xf32>
    %106 = arith.addf %105, %104 : vector<16x128xf32>
    %107 = arith.mulf %101, %106 : vector<16x128xf32>
    %c0_56 = arith.constant 0 : index
    %c0_57 = arith.constant 0 : index
    %c0_58 = arith.constant 0 : index
    %108 = vector.load %arg8[%c0_56, %c0_57, %c0_58] : memref<3x32x16xf32, #tpu.memory_space<vmem>>, vector<1x32x16xf32>
    %109 = vector.shape_cast %108 : vector<1x32x16xf32> to vector<32x16xf32>
    %cst_59 = arith.constant dense<0.000000e+00> : vector<32x128xf32>
    %110 = tpu.matmul %109, %107, %cst_59 {dimension_numbers = #tpu.dot_dimension_numbers<[1], [0], [0], [1], [0, 0, 1, 1], [], []>} : vector<32x16xf32>, vector<16x128xf32>, vector<32x128xf32> -> vector<32x128xf32>
    %c1_60 = arith.constant 1 : index
    %c0_61 = arith.constant 0 : index
    %c0_62 = arith.constant 0 : index
    %111 = vector.load %arg8[%c1_60, %c0_61, %c0_62] : memref<3x32x16xf32, #tpu.memory_space<vmem>>, vector<1x32x16xf32>
    %112 = vector.shape_cast %111 : vector<1x32x16xf32> to vector<32x16xf32>
    %cst_63 = arith.constant dense<0.000000e+00> : vector<32x128xf32>
    %113 = tpu.matmul %112, %107, %cst_63 {dimension_numbers = #tpu.dot_dimension_numbers<[1], [0], [0], [1], [0, 0, 1, 1], [], []>} : vector<32x16xf32>, vector<16x128xf32>, vector<32x128xf32> -> vector<32x128xf32>
    %c2_64 = arith.constant 2 : index
    %c0_65 = arith.constant 0 : index
    %c0_66 = arith.constant 0 : index
    %114 = vector.load %arg8[%c2_64, %c0_65, %c0_66] : memref<3x32x16xf32, #tpu.memory_space<vmem>>, vector<1x32x16xf32>
    %115 = vector.shape_cast %114 : vector<1x32x16xf32> to vector<32x16xf32>
    %cst_67 = arith.constant dense<0.000000e+00> : vector<32x128xf32>
    %116 = tpu.matmul %115, %107, %cst_67 {dimension_numbers = #tpu.dot_dimension_numbers<[1], [0], [0], [1], [0, 0, 1, 1], [], []>} : vector<32x16xf32>, vector<16x128xf32>, vector<32x128xf32> -> vector<32x128xf32>
    %117 = tpu.iota {dimensions = array<i32: 1>} : vector<32x128xi32>
    %c0_i32_68 = arith.constant 0 : i32
    %118 = vector.broadcast %c0_i32_68 : i32 to vector<32x128xi32>
    %119 = arith.cmpi eq, %117, %118 : vector<32x128xi32>
    %c1_i32_69 = arith.constant 1 : i32
    %120 = tpu.dynamic_rotate %110 by %c1_i32_69 dim 1 : vector<32x128xf32>, i32 -> vector<32x128xf32>
    %cst_70 = arith.constant 0.000000e+00 : f32
    %121 = vector.broadcast %cst_70 : f32 to vector<32x128xf32>
    %122 = arith.select %119, %121, %120 : vector<32x128xi1>, vector<32x128xf32>
    %c127_i32_71 = arith.constant 127 : i32
    %123 = vector.broadcast %c127_i32_71 : i32 to vector<32x128xi32>
    %124 = arith.cmpi eq, %117, %123 : vector<32x128xi32>
    %c127_i32_72 = arith.constant 127 : i32
    %125 = tpu.dynamic_rotate %116 by %c127_i32_72 dim 1 : vector<32x128xf32>, i32 -> vector<32x128xf32>
    %cst_73 = arith.constant 0.000000e+00 : f32
    %126 = vector.broadcast %cst_73 : f32 to vector<32x128xf32>
    %127 = arith.select %124, %126, %125 : vector<32x128xi1>, vector<32x128xf32>
    %128 = arith.addf %122, %113 : vector<32x128xf32>
    %129 = arith.addf %128, %127 : vector<32x128xf32>
    %130 = vector.shape_cast %129 : vector<32x128xf32> to vector<1x32x128xf32>
    %cst_74 = arith.constant dense<0.000000e+00> : vector<1xf32>
    %131 = vector.multi_reduction <add>, %130, %cst_74 [1, 2] : vector<1x32x128xf32> to vector<1xf32>
    %132 = vector.shape_cast %131 : vector<1xf32> to vector<1x1x1xf32>
    %133 = vector.extract %132[0, 0, 0] : f32 from vector<1x1x1xf32>
    %cst_75 = arith.constant 4.096000e+03 : f32
    %134 = arith.divf %133, %cst_75 : f32
    %135 = vector.broadcast %134 : f32 to vector<32x128xf32>
    %136 = arith.subf %129, %135 : vector<32x128xf32>
    %137 = arith.mulf %136, %136 : vector<32x128xf32>
    %138 = vector.shape_cast %137 : vector<32x128xf32> to vector<1x32x128xf32>
    %cst_76 = arith.constant dense<0.000000e+00> : vector<1xf32>
    %139 = vector.multi_reduction <add>, %138, %cst_76 [1, 2] : vector<1x32x128xf32> to vector<1xf32>
    %140 = vector.shape_cast %139 : vector<1xf32> to vector<1x1x1xf32>
    %141 = vector.extract %140[0, 0, 0] : f32 from vector<1x1x1xf32>
    %cst_77 = arith.constant 4.096000e+03 : f32
    %142 = arith.divf %141, %cst_77 : f32
    %cst_78 = arith.constant 9.99999974E-6 : f32
    %143 = arith.addf %142, %cst_78 : f32
    %144 = math.rsqrt %143 : f32
    %145 = vector.broadcast %144 : f32 to vector<32x128xf32>
    %146 = arith.mulf %136, %145 : vector<32x128xf32>
    %c0_79 = arith.constant 0 : index
    %c0_80 = arith.constant 0 : index
    %147 = vector.load %arg9[%c0_79, %c0_80] : memref<32x1xf32, #tpu.memory_space<vmem>>, vector<32x1xf32>
    %148 = vector.broadcast %147 : vector<32x1xf32> to vector<32x128xf32>
    %149 = arith.mulf %146, %148 : vector<32x128xf32>
    %c0_81 = arith.constant 0 : index
    %c0_82 = arith.constant 0 : index
    %150 = vector.load %arg10[%c0_81, %c0_82] : memref<32x1xf32, #tpu.memory_space<vmem>>, vector<32x1xf32>
    %151 = vector.broadcast %150 : vector<32x1xf32> to vector<32x128xf32>
    %152 = arith.addf %149, %151 : vector<32x128xf32>
    %cst_83 = arith.constant 5.000000e-01 : f32
    %153 = vector.broadcast %cst_83 : f32 to vector<32x128xf32>
    %154 = arith.mulf %153, %152 : vector<32x128xf32>
    %cst_84 = arith.constant 0.707106769 : f32
    %155 = vector.broadcast %cst_84 : f32 to vector<32x128xf32>
    %156 = arith.mulf %152, %155 : vector<32x128xf32>
    %157 = math.erf %156 : vector<32x128xf32>
    %cst_85 = arith.constant 1.000000e+00 : f32
    %158 = vector.broadcast %cst_85 : f32 to vector<32x128xf32>
    %159 = arith.addf %158, %157 : vector<32x128xf32>
    %160 = arith.mulf %154, %159 : vector<32x128xf32>
    %c0_86 = arith.constant 0 : index
    %c0_87 = arith.constant 0 : index
    %c0_88 = arith.constant 0 : index
    %161 = vector.load %arg11[%c0_86, %c0_87, %c0_88] : memref<1x32x128xf32, #tpu.memory_space<vmem>>, vector<1x32x128xf32>
    %162 = vector.shape_cast %161 : vector<1x32x128xf32> to vector<32x128xf32>
    %163 = vector.shape_cast %160 : vector<32x128xf32> to vector<1x32x128xf32>
    tpu.vector_store %arg11[%c0_86, %c0_87, %c0_88], %163 {strides = array<i32>} : memref<1x32x128xf32, #tpu.memory_space<vmem>>, vector<1x32x128xf32>,
    return
  }
  func.func @transform_0(%arg0: i32) -> (i32, i32, i32) {
    %c0_i32 = arith.constant 0 : i32
    %c0_i32_0 = arith.constant 0 : i32
    %c0_i32_1 = arith.constant 0 : i32
    return %arg0, %c0_i32, %c0_i32_0 : i32, i32, i32
  }
  func.func @transform_1(%arg0: i32) -> (i32, i32, i32) {
    %c0_i32 = arith.constant 0 : i32
    %c0_i32_0 = arith.constant 0 : i32
    %c0_i32_1 = arith.constant 0 : i32
    %c0_i32_2 = arith.constant 0 : i32
    return %c0_i32, %c0_i32_0, %c0_i32_1 : i32, i32, i32
  }
  func.func @transform_2(%arg0: i32) -> (i32, i32) {
    %c0_i32 = arith.constant 0 : i32
    %c0_i32_0 = arith.constant 0 : i32
    %c0_i32_1 = arith.constant 0 : i32
    return %c0_i32, %c0_i32_0 : i32, i32
  }
  func.func @transform_3(%arg0: i32) -> (i32, i32) {
    %c0_i32 = arith.constant 0 : i32
    %c0_i32_0 = arith.constant 0 : i32
    %c0_i32_1 = arith.constant 0 : i32
    return %c0_i32, %c0_i32_0 : i32, i32
  }
  func.func @transform_4(%arg0: i32) -> (i32, i32, i32) {
    %c0_i32 = arith.constant 0 : i32
    %c0_i32_0 = arith.constant 0 : i32
    %c0_i32_1 = arith.constant 0 : i32
    %c0_i32_2 = arith.constant 0 : i32
    return %c0_i32, %c0_i32_0, %c0_i32_1 : i32, i32, i32
  }
  func.func @transform_5(%arg0: i32) -> (i32, i32) {
    %c0_i32 = arith.constant 0 : i32
    %c0_i32_0 = arith.constant 0 : i32
    %c0_i32_1 = arith.constant 0 : i32
    return %c0_i32, %c0_i32_0 : i32, i32
  }
  func.func @transform_6(%arg0: i32) -> (i32, i32) {
    %c0_i32 = arith.constant 0 : i32
    %c0_i32_0 = arith.constant 0 : i32
    %c0_i32_1 = arith.constant 0 : i32
    return %c0_i32, %c0_i32_0 : i32, i32
  }
  func.func @transform_7(%arg0: i32) -> (i32, i32, i32) {
    %c0_i32 = arith.constant 0 : i32
    %c0_i32_0 = arith.constant 0 : i32
    %c0_i32_1 = arith.constant 0 : i32
    %c0_i32_2 = arith.constant 0 : i32
    return %c0_i32, %c0_i32_0, %c0_i32_1 : i32, i32, i32
  }
  func.func @transform_8(%arg0: i32) -> (i32, i32) {
    %c0_i32 = arith.constant 0 : i32
    %c0_i32_0 = arith.constant 0 : i32
    %c0_i32_1 = arith.constant 0 : i32
    return %c0_i32, %c0_i32_0 : i32, i32
  }
  func.func @transform_9(%arg0: i32) -> (i32, i32) {
    %c0_i32 = arith.constant 0 : i32
    %c0_i32_0 = arith.constant 0 : i32
    %c0_i32_1 = arith.constant 0 : i32
    return %c0_i32, %c0_i32_0 : i32, i32
  }
  func.func @transform_10(%arg0: i32) -> (i32, i32, i32) {
    %c0_i32 = arith.constant 0 : i32
    %c0_i32_0 = arith.constant 0 : i32
    %c0_i32_1 = arith.constant 0 : i32
    return %arg0, %c0_i32, %c0_i32_0 : i32, i32, i32
  }
}

</mosaic_0001>

<llo_original>
// kernel: tpu_custom_call.1
$region0: #{tpu_custom_call.1}
  #allocation0 [shape = 'u32[]', space=smem, size = 0x4, offset = 0x4, fixed_abs, tag = 'smem constant byte address 0x4 - core index']
  #allocation1 [shape = 'u32[72,128]{1,0:T(1,128)}', space=vmem, size = 0x9000, scoped, tag = 'internal scratch']
  %s0 = inlined_call_operand.vmem [shape: f32[2,128,8], index: 0, kind: input, shape index: {}]
  %s1 = inlined_call_operand.vmem [shape: f32[3,8,8], index: 1, kind: input, shape index: {}]
  %s2 = inlined_call_operand.vmem [shape: f32[8,1], index: 2, kind: input, shape index: {}]
  %s3 = inlined_call_operand.vmem [shape: f32[8,1], index: 3, kind: input, shape index: {}]
  %s4 = inlined_call_operand.vmem [shape: f32[3,16,8], index: 4, kind: input, shape index: {}]
  %s5 = inlined_call_operand.vmem [shape: f32[16,1], index: 5, kind: input, shape index: {}]
  %s6 = inlined_call_operand.vmem [shape: f32[16,1], index: 6, kind: input, shape index: {}]
  %s7 = inlined_call_operand.vmem [shape: f32[3,32,16], index: 7, kind: input, shape index: {}]
  %s8 = inlined_call_operand.vmem [shape: f32[32,1], index: 8, kind: input, shape index: {}]
  %s9 = inlined_call_operand.vmem [shape: f32[32,1], index: 9, kind: input, shape index: {}]
  %s10 = inlined_call_operand.vmem [shape: f32[2,128,32], index: 10, kind: output, shape index: {}]
  %s11 = sld [smem:[#allocation0]]
  $region73: #{tpu_custom_call.1} parent=0
    _
  %s13 = ssub.s32 1, %s11
  %s14 = scalar_select 0, %s13, %s11
  loop: start=0, step=1, limit=4
  $region2: #{tpu_custom_call.1} parent=0 // loop_pre_header
    _
  $region3: #{tpu_custom_call.1} parent=0 // loop_header
    %s16 = sphi 0, %s20
    %p17 = scmp.ge.s32.totalorder %s16, 4
    %s26 = sphi 0, %s28
    %s29 = sphi 0, %s26
    %s30 = sphi 0, %s29
    %s46 = sphi 0, %s30
    %s50 = sphi 0, %s50
    %s52 = sphi 0, %s50
    %s53 = sphi 0, %s52
    %s67 = sphi 0, %s53
    %s71 = sphi 0, %s71
    %s73 = sphi 0, %s71
    %s74 = sphi 0, %s73
    %s88 = sphi 0, %s74
    %s92 = sphi 0, %s92
    %s94 = sphi 0, %s92
    %s95 = sphi 0, %s94
    %s109 = sphi 0, %s95
    %s113 = sphi 0, %s113
    %s115 = sphi 0, %s113
    %s116 = sphi 0, %s115
    %s130 = sphi 0, %s116
    %s134 = sphi 0, %s134
    %s136 = sphi 0, %s134
    %s137 = sphi 0, %s136
    %s151 = sphi 0, %s137
    %s155 = sphi 0, %s155
    %s157 = sphi 0, %s155
    %s158 = sphi 0, %s157
    %s172 = sphi 0, %s158
    %s176 = sphi 0, %s176
    %s178 = sphi 0, %s176
    %s179 = sphi 0, %s178
    %s193 = sphi 0, %s179
    %s197 = sphi 0, %s197
    %s199 = sphi 0, %s197
    %s200 = sphi 0, %s199
    %s214 = sphi 0, %s200
    %s218 = sphi 0, %s218
    %s220 = sphi 0, %s218
    %s221 = sphi 0, %s220
    %s235 = sphi 0, %s221
    %s241 = sphi 0, %s243
    %s244 = sphi 0, %s241
    %s245 = sphi 0, %s244
    %s261 = sphi 0, %s245
  $region4: #{tpu_custom_call.1} parent=0 // loop_header_branch
    %19 = sbr.rel (%p17) target = $region8
  $region5: #{tpu_custom_call.1} parent=0 // loop_body
    %s21 = ssub.s32 %s16, 1
    %s22 = ssub.s32 %s16, 2
    %s23 = sadd.s32 %s16, 1
    %s24 = ssub.s32 %s16, %s23
    %p25 = scmp.eq.s32.totalorder %s24, 0
    %s27 = sadd.s32 %s26, 1
    %s28 = scalar_select %p25, %s26, %s27
    %p31 = pneg %p25
    %p32 = scmp.eq.s32.totalorder %s16, 1
    %p33 = por %p31, %p32
    %p34 = scmp.ne.s32.totalorder %s26, %s29
    %p35 = scmp.eq.s32.totalorder %s16, 0
    %p36 = por %p34, %p35
    %p37 = scmp.ne.s32.totalorder %s26, %s29
    %p38 = scmp.eq.s32.totalorder %s21, 1
    %p39 = por %p37, %p38
    %p40 = scmp.ne.s32.totalorder %s29, %s30
    %p41 = scmp.eq.s32.totalorder %s21, 0
    %p42 = por %p40, %p41
    %p43 = scmp.ne.s32.totalorder %s29, %s30
    %p44 = scmp.eq.s32.totalorder %s22, 1
    %p45 = por %p43, %p44
    %p47 = scmp.ne.s32.totalorder %s30, %s46
    %p48 = scmp.eq.s32.totalorder %s22, 0
    %p49 = por %p47, %p48
    %s51 = sadd.s32 %s50, 1
    %p54 = scmp.eq.s32.totalorder %s16, 1
    %p55 = scmp.ne.s32.totalorder %s50, %s52
    %p56 = scmp.eq.s32.totalorder %s16, 0
    %p57 = por %p55, %p56
    %p58 = scmp.ne.s32.totalorder %s50, %s52
    %p59 = scmp.eq.s32.totalorder %s21, 1
    %p60 = por %p58, %p59
    %p61 = scmp.ne.s32.totalorder %s52, %s53
    %p62 = scmp.eq.s32.totalorder %s21, 0
    %p63 = por %p61, %p62
    %p64 = scmp.ne.s32.totalorder %s52, %s53
    %p65 = scmp.eq.s32.totalorder %s22, 1
    %p66 = por %p64, %p65
    %p68 = scmp.ne.s32.totalorder %s53, %s67
    %p69 = scmp.eq.s32.totalorder %s22, 0
    %p70 = por %p68, %p69
    %s72 = sadd.s32 %s71, 1
    %p75 = scmp.eq.s32.totalorder %s16, 1
    %p76 = scmp.ne.s32.totalorder %s71, %s73
    %p77 = scmp.eq.s32.totalorder %s16, 0
    %p78 = por %p76, %p77
    %p79 = scmp.ne.s32.totalorder %s71, %s73
    %p80 = scmp.eq.s32.totalorder %s21, 1
    %p81 = por %p79, %p80
    %p82 = scmp.ne.s32.totalorder %s73, %s74
    %p83 = scmp.eq.s32.totalorder %s21, 0
    %p84 = por %p82, %p83
    %p85 = scmp.ne.s32.totalorder %s73, %s74
    %p86 = scmp.eq.s32.totalorder %s22, 1
    %p87 = por %p85, %p86
    %p89 = scmp.ne.s32.totalorder %s74, %s88
    %p90 = scmp.eq.s32.totalorder %s22, 0
    %p91 = por %p89, %p90
    %s93 = sadd.s32 %s92, 1
    %p96 = scmp.eq.s32.totalorder %s16, 1
    %p97 = scmp.ne.s32.totalorder %s92, %s94
    %p98 = scmp.eq.s32.totalorder %s16, 0
    %p99 = por %p97, %p98
    %p100 = scmp.ne.s32.totalorder %s92, %s94
    %p101 = scmp.eq.s32.totalorder %s21, 1
    %p102 = por %p100, %p101
    %p103 = scmp.ne.s32.totalorder %s94, %s95
    %p104 = scmp.eq.s32.totalorder %s21, 0
    %p105 = por %p103, %p104
    %p106 = scmp.ne.s32.totalorder %s94, %s95
    %p107 = scmp.eq.s32.totalorder %s22, 1
    %p108 = por %p106, %p107
    %p110 = scmp.ne.s32.totalorder %s95, %s109
    %p111 = scmp.eq.s32.totalorder %s22, 0
    %p112 = por %p110, %p111
    %s114 = sadd.s32 %s113, 1
    %p117 = scmp.eq.s32.totalorder %s16, 1
    %p118 = scmp.ne.s32.totalorder %s113, %s115
    %p119 = scmp.eq.s32.totalorder %s16, 0
    %p120 = por %p118, %p119
    %p121 = scmp.ne.s32.totalorder %s113, %s115
    %p122 = scmp.eq.s32.totalorder %s21, 1
    %p123 = por %p121, %p122
    %p124 = scmp.ne.s32.totalorder %s115, %s116
    %p125 = scmp.eq.s32.totalorder %s21, 0
    %p126 = por %p124, %p125
    %p127 = scmp.ne.s32.totalorder %s115, %s116
    %p128 = scmp.eq.s32.totalorder %s22, 1
    %p129 = por %p127, %p128
    %p131 = scmp.ne.s32.totalorder %s116, %s130
    %p132 = scmp.eq.s32.totalorder %s22, 0
    %p133 = por %p131, %p132
    %s135 = sadd.s32 %s134, 1
    %p138 = scmp.eq.s32.totalorder %s16, 1
    %p139 = scmp.ne.s32.totalorder %s134, %s136
    %p140 = scmp.eq.s32.totalorder %s16, 0
    %p141 = por %p139, %p140
    %p142 = scmp.ne.s32.totalorder %s134, %s136
    %p143 = scmp.eq.s32.totalorder %s21, 1
    %p144 = por %p142, %p143
    %p145 = scmp.ne.s32.totalorder %s136, %s137
    %p146 = scmp.eq.s32.totalorder %s21, 0
    %p147 = por %p145, %p146
    %p148 = scmp.ne.s32.totalorder %s136, %s137
    %p149 = scmp.eq.s32.totalorder %s22, 1
    %p150 = por %p148, %p149
    %p152 = scmp.ne.s32.totalorder %s137, %s151
    %p153 = scmp.eq.s32.totalorder %s22, 0
    %p154 = por %p152, %p153
    %s156 = sadd.s32 %s155, 1
    %p159 = scmp.eq.s32.totalorder %s16, 1
    %p160 = scmp.ne.s32.totalorder %s155, %s157
    %p161 = scmp.eq.s32.totalorder %s16, 0
    %p162 = por %p160, %p161
    %p163 = scmp.ne.s32.totalorder %s155, %s157
    %p164 = scmp.eq.s32.totalorder %s21, 1
    %p165 = por %p163, %p164
    %p166 = scmp.ne.s32.totalorder %s157, %s158
    %p167 = scmp.eq.s32.totalorder %s21, 0
    %p168 = por %p166, %p167
    %p169 = scmp.ne.s32.totalorder %s157, %s158
    %p170 = scmp.eq.s32.totalorder %s22, 1
    %p171 = por %p169, %p170
    %p173 = scmp.ne.s32.totalorder %s158, %s172
    %p174 = scmp.eq.s32.totalorder %s22, 0
    %p175 = por %p173, %p174
    %s177 = sadd.s32 %s176, 1
    %p180 = scmp.eq.s32.totalorder %s16, 1
    %p181 = scmp.ne.s32.totalorder %s176, %s178
    %p182 = scmp.eq.s32.totalorder %s16, 0
    %p183 = por %p181, %p182
    %p184 = scmp.ne.s32.totalorder %s176, %s178
    %p185 = scmp.eq.s32.totalorder %s21, 1
    %p186 = por %p184, %p185
    %p187 = scmp.ne.s32.totalorder %s178, %s179
    %p188 = scmp.eq.s32.totalorder %s21, 0
    %p189 = por %p187, %p188
    %p190 = scmp.ne.s32.totalorder %s178, %s179
    %p191 = scmp.eq.s32.totalorder %s22, 1
    %p192 = por %p190, %p191
    %p194 = scmp.ne.s32.totalorder %s179, %s193
    %p195 = scmp.eq.s32.totalorder %s22, 0
    %p196 = por %p194, %p195
    %s198 = sadd.s32 %s197, 1
    %p201 = scmp.eq.s32.totalorder %s16, 1
    %p202 = scmp.ne.s32.totalorder %s197, %s199
    %p203 = scmp.eq.s32.totalorder %s16, 0
    %p204 = por %p202, %p203
    %p205 = scmp.ne.s32.totalorder %s197, %s199
    %p206 = scmp.eq.s32.totalorder %s21, 1
    %p207 = por %p205, %p206
    %p208 = scmp.ne.s32.totalorder %s199, %s200
    %p209 = scmp.eq.s32.totalorder %s21, 0
    %p210 = por %p208, %p209
    %p211 = scmp.ne.s32.totalorder %s199, %s200
    %p212 = scmp.eq.s32.totalorder %s22, 1
    %p213 = por %p211, %p212
    %p215 = scmp.ne.s32.totalorder %s200, %s214
    %p216 = scmp.eq.s32.totalorder %s22, 0
    %p217 = por %p215, %p216
    %s219 = sadd.s32 %s218, 1
    %p222 = scmp.eq.s32.totalorder %s16, 1
    %p223 = scmp.ne.s32.totalorder %s218, %s220
    %p224 = scmp.eq.s32.totalorder %s16, 0
    %p225 = por %p223, %p224
    %p226 = scmp.ne.s32.totalorder %s218, %s220
    %p227 = scmp.eq.s32.totalorder %s21, 1
    %p228 = por %p226, %p227
    %p229 = scmp.ne.s32.totalorder %s220, %s221
    %p230 = scmp.eq.s32.totalorder %s21, 0
    %p231 = por %p229, %p230
    %p232 = scmp.ne.s32.totalorder %s220, %s221
    %p233 = scmp.eq.s32.totalorder %s22, 1
    %p234 = por %p232, %p233
    %p236 = scmp.ne.s32.totalorder %s221, %s235
    %p237 = scmp.eq.s32.totalorder %s22, 0
    %p238 = por %p236, %p237
    %s239 = ssub.s32 %s16, %s23
    %p240 = scmp.eq.s32.totalorder %s239, 0
    %s242 = sadd.s32 %s241, 1
    %s243 = scalar_select %p240, %s241, %s242
    %p246 = pneg %p240
    %p247 = scmp.eq.s32.totalorder %s16, 1
    %p248 = por %p246, %p247
    %p249 = scmp.ne.s32.totalorder %s241, %s244
    %p250 = scmp.eq.s32.totalorder %s16, 0
    %p251 = por %p249, %p250
    %p252 = scmp.ne.s32.totalorder %s241, %s244
    %p253 = scmp.eq.s32.totalorder %s21, 1
    %p254 = por %p252, %p253
    %p255 = scmp.ne.s32.totalorder %s244, %s245
    %p256 = scmp.eq.s32.totalorder %s21, 0
    %p257 = por %p255, %p256
    %p258 = scmp.ne.s32.totalorder %s244, %s245
    %p259 = scmp.eq.s32.totalorder %s22, 1
    %p260 = por %p258, %p259
    %p262 = scmp.ne.s32.totalorder %s245, %s261
    %p263 = scmp.eq.s32.totalorder %s22, 0
    %p264 = por %p262, %p263
    %p265 = scmp.le.s32.totalorder 1, %s16
    %p266 = scmp.lt.s32.totalorder %s16, 3
    %p267 = pnand %p265, %p266
    %p268 = pneg %p267
    // Predicated region
    $region9: #{tpu_custom_call.1} parent=5 // pred_check
      _
    $region10: #{tpu_custom_call.1} parent=5 // pred_check_branch
      %270 = sbr.rel (%p267) target = $region12
    $region11: #{tpu_custom_call.1} parent=5 // pred_region
      %s271 = ssub.s32 %s16, 1
      // Predicated region
      $region13: #{tpu_custom_call.1} parent=11 // pred_check
        %p272 = pneg %p63
      $region14: #{tpu_custom_call.1} parent=11 // pred_check_branch
        %274 = sbr.rel (%p272) target = $region16
      $region15: #{tpu_custom_call.1} parent=11 // pred_region
        _
      $region16: #{tpu_custom_call.1} parent=11 // pred_fallthru
        _
      // Predicated region
      $region17: #{tpu_custom_call.1} parent=11 // pred_check
        %p275 = pneg %p84
      $region18: #{tpu_custom_call.1} parent=11 // pred_check_branch
        %277 = sbr.rel (%p275) target = $region20
      $region19: #{tpu_custom_call.1} parent=11 // pred_region
        _
      $region20: #{tpu_custom_call.1} parent=11 // pred_fallthru
        _
      // Predicated region
      $region21: #{tpu_custom_call.1} parent=11 // pred_check
        %p278 = pneg %p105
      $region22: #{tpu_custom_call.1} parent=11 // pred_check_branch
        %280 = sbr.rel (%p278) target = $region24
      $region23: #{tpu_custom_call.1} parent=11 // pred_region
        _
      $region24: #{tpu_custom_call.1} parent=11 // pred_fallthru
        _
      // Predicated region
      $region25: #{tpu_custom_call.1} parent=11 // pred_check
        %p281 = pneg %p126
      $region26: #{tpu_custom_call.1} parent=11 // pred_check_branch
        %283 = sbr.rel (%p281) target = $region28
      $region27: #{tpu_custom_call.1} parent=11 // pred_region
        _
      $region28: #{tpu_custom_call.1} parent=11 // pred_fallthru
        _
      // Predicated region
      $region29: #{tpu_custom_call.1} parent=11 // pred_check
        %p284 = pneg %p147
      $region30: #{tpu_custom_call.1} parent=11 // pred_check_branch
        %286 = sbr.rel (%p284) target = $region32
      $region31: #{tpu_custom_call.1} parent=11 // pred_region
        _
      $region32: #{tpu_custom_call.1} parent=11 // pred_fallthru
        _
      // Predicated region
      $region33: #{tpu_custom_call.1} parent=11 // pred_check
        %p287 = pneg %p168
      $region34: #{tpu_custom_call.1} parent=11 // pred_check_branch
        %289 = sbr.rel (%p287) target = $region36
      $region35: #{tpu_custom_call.1} parent=11 // pred_region
        _
      $region36: #{tpu_custom_call.1} parent=11 // pred_fallthru
        _
      // Predicated region
      $region37: #{tpu_custom_call.1} parent=11 // pred_check
        %p290 = pneg %p189
      $region38: #{tpu_custom_call.1} parent=11 // pred_check_branch
        %292 = sbr.rel (%p290) target = $region40
      $region39: #{tpu_custom_call.1} parent=11 // pred_region
        _
      $region40: #{tpu_custom_call.1} parent=11 // pred_fallthru
        _
      // Predicated region
      $region41: #{tpu_custom_call.1} parent=11 // pred_check
        %p293 = pneg %p210
      $region42: #{tpu_custom_call.1} parent=11 // pred_check_branch
        %295 = sbr.rel (%p293) target = $region44
      $region43: #{tpu_custom_call.1} parent=11 // pred_region
        _
      $region44: #{tpu_custom_call.1} parent=11 // pred_fallthru
        _
      // Predicated region
      $region45: #{tpu_custom_call.1} parent=11 // pred_check
        %p296 = pneg %p231
      $region46: #{tpu_custom_call.1} parent=11 // pred_check_branch
        %298 = sbr.rel (%p296) target = $region48
      $region47: #{tpu_custom_call.1} parent=11 // pred_region
        _
      $region48: #{tpu_custom_call.1} parent=11 // pred_fallthru
        _
    $region12: #{tpu_custom_call.1} parent=5 // pred_fallthru
      _
    %p299 = scmp.lt.s32.totalorder %s16, 2
    // Predicated region
    $region49: #{tpu_custom_call.1} parent=5 // pred_check
      %p300 = pneg %p299
    $region50: #{tpu_custom_call.1} parent=5 // pred_check_branch
      %302 = sbr.rel (%p300) target = $region52
    $region51: #{tpu_custom_call.1} parent=5 // pred_region
      // Predicated region
      $region53: #{tpu_custom_call.1} parent=51 // pred_check
        %p303 = pneg %p36
      $region54: #{tpu_custom_call.1} parent=51 // pred_check_branch
        %305 = sbr.rel (%p303) target = $region56
      $region55: #{tpu_custom_call.1} parent=51 // pred_region
        %p306 = scmp.lt.s32.totalorder %s16, 1
        %s307 = scalar_select %p306, %s16, 1
        %s308 = smul.addr %s307, 16
        %s309 = smul.addr %s308, 8
        %s310 = scalar_lea.vmem %s0, %s309
      $region56: #{tpu_custom_call.1} parent=51 // pred_fallthru
        _
    $region52: #{tpu_custom_call.1} parent=5 // pred_fallthru
      _
    %p311 = scmp.le.s32.totalorder 1, %s16
    %p312 = scmp.lt.s32.totalorder %s16, 3
    %p313 = pnand %p311, %p312
    %p314 = pneg %p313
    // Predicated region
    $region57: #{tpu_custom_call.1} parent=5 // pred_check
      _
    $region58: #{tpu_custom_call.1} parent=5 // pred_check_branch
      %316 = sbr.rel (%p313) target = $region60
    $region59: #{tpu_custom_call.1} parent=5 // pred_region
      %s317 = ssub.s32 %s16, 1
      %p318 = scmp.lt.s32.totalorder %s21, 1
      %s319 = scalar_select %p318, %s21, 1
      %s320 = smul.addr %s319, 16
      %s321 = smul.addr %s320, 8
      %s322 = scalar_lea.vmem %s0, %s321
      %p323 = pneg %p42
      %p324 = pneg %p39
      %p325 = pneg %p63
      %p326 = pneg %p60
      %p327 = pneg %p84
      %p328 = pneg %p81
      %p329 = pneg %p105
      %p330 = pneg %p102
      %p331 = pneg %p126
      %p332 = pneg %p123
      %p333 = pneg %p147
      %p334 = pneg %p144
      %p335 = pneg %p168
      %p336 = pneg %p165
      %p337 = pneg %p189
      %p338 = pneg %p186
      %p339 = pneg %p210
      %p340 = pneg %p207
      %p341 = pneg %p231
      %p342 = pneg %p228
      %p343 = pneg %p257
      %p344 = pneg %p254
      %p345 = scmp.lt.s32.totalorder %s21, 1
      %s346 = scalar_select %p345, %s21, 1
      %s347 = smul.addr %s346, 16
      %s348 = smul.addr %s347, 8
      %s349 = scalar_lea.vmem %s10, %s348
      %p350 = scmp.lt.s32.totalorder %s21, 1
      %s351 = scalar_select %p350, %s21, 1
      %s352 = smul.addr %s351, 16
      %s353 = smul.addr %s352, 8
      %s354 = scalar_lea.vmem %s0, %s353
      %p355 = scmp.lt.s32.totalorder %s21, 1
      %s356 = scalar_select %p355, %s21, 1
      %s357 = smul.addr %s356, 16
      %s358 = smul.addr %s357, 8
      %s359 = scalar_lea.vmem %s10, %s358
      %v360 = vld [vmem:[%s354] sm:$0xff]
      %v361 = vld [vmem:[%s354 + $0x8] sm:$0xff]
      %v362 = vld [vmem:[%s354 + $0x10] sm:$0xff]
      %v363 = vld [vmem:[%s354 + $0x18] sm:$0xff]
      %v364 = vld [vmem:[%s354 + $0x20] sm:$0xff]
      %v365 = vld [vmem:[%s354 + $0x28] sm:$0xff]
      %v366 = vld [vmem:[%s354 + $0x30] sm:$0xff]
      %v367 = vld [vmem:[%s354 + $0x38] sm:$0xff]
      %v368 = vld [vmem:[%s354 + $0x40] sm:$0xff]
      %v369 = vld [vmem:[%s354 + $0x48] sm:$0xff]
      %v370 = vld [vmem:[%s354 + $0x50] sm:$0xff]
      %v371 = vld [vmem:[%s354 + $0x58] sm:$0xff]
      %v372 = vld [vmem:[%s354 + $0x60] sm:$0xff]
      %v373 = vld [vmem:[%s354 + $0x68] sm:$0xff]
      %v374 = vld [vmem:[%s354 + $0x70] sm:$0xff]
      %v375 = vld [vmem:[%s354 + $0x78] sm:$0xff]
      %v376 = vld [vmem:[%s1] sm:$0xff]
      %vm377 = vcmask 64512
      %v379 = vsel %vm377, %v376, 0
      %v382 = vsel %vm377, %v360, 0
      %v385 = vsel %vm377, %v361, 0
      %v388 = vsel %vm377, %v362, 0
      %v391 = vsel %vm377, %v363, 0
      %v394 = vsel %vm377, %v364, 0
      %v397 = vsel %vm377, %v365, 0
      %v400 = vsel %vm377, %v366, 0
      %v403 = vsel %vm377, %v367, 0
      %v406 = vsel %vm377, %v368, 0
      %v409 = vsel %vm377, %v369, 0
      %v412 = vsel %vm377, %v370, 0
      %v415 = vsel %vm377, %v371, 0
      %v418 = vsel %vm377, %v372, 0
      %v421 = vsel %vm377, %v373, 0
      %v424 = vsel %vm377, %v374, 0
      %v427 = vsel %vm377, %v375, 0
      %429 = vmatpush.xpose.msra.mxu0 %v427
      %430 = vmatpush.xpose.msra.mxu0 %v424
      %431 = vmatpush.xpose.msra.mxu0 %v421
      %432 = vmatpush.xpose.msra.mxu0 %v418
      %433 = vmatpush.xpose.msra.mxu0 %v415
      %434 = vmatpush.xpose.msra.mxu0 %v412
      %435 = vmatpush.xpose.msra.mxu0 %v409
      %436 = vmatpush.xpose.msra.mxu0 %v406
      %437 = vmatpush.xpose.msra.mxu0 %v403
      %438 = vmatpush.xpose.msra.mxu0 %v400
      %439 = vmatpush.xpose.msra.mxu0 %v397
      %440 = vmatpush.xpose.msra.mxu0 %v394
      %441 = vmatpush.xpose.msra.mxu0 %v391
      %442 = vmatpush.xpose.msra.mxu0 %v388
      %443 = vmatpush.xpose.msra.mxu0 %v385
      %444 = vmatpush.xpose.msra.mxu0 %v382
      %445 = vmatmul.f32.gmra.mxu0 %v379
      %v446 = vpop.f32.mrf.mxu0
      %v447 = vadd.f32 0.0, %v446
      %448 = vdwg.mxu0
      %s449 = scalar_lea.vmem %s1, 8
      %v450 = vld [vmem:[%s449] sm:$0xff]
      %v452 = vsel %vm377, %v450, 0
      %454 = vmatpush.xpose.msra.mxu0 %v427
      %455 = vmatpush.xpose.msra.mxu0 %v424
      %456 = vmatpush.xpose.msra.mxu0 %v421
      %457 = vmatpush.xpose.msra.mxu0 %v418
      %458 = vmatpush.xpose.msra.mxu0 %v415
      %459 = vmatpush.xpose.msra.mxu0 %v412
      %460 = vmatpush.xpose.msra.mxu0 %v409
      %461 = vmatpush.xpose.msra.mxu0 %v406
      %462 = vmatpush.xpose.msra.mxu0 %v403
      %463 = vmatpush.xpose.msra.mxu0 %v400
      %464 = vmatpush.xpose.msra.mxu0 %v397
      %465 = vmatpush.xpose.msra.mxu0 %v394
      %466 = vmatpush.xpose.msra.mxu0 %v391
      %467 = vmatpush.xpose.msra.mxu0 %v388
      %468 = vmatpush.xpose.msra.mxu0 %v385
      %469 = vmatpush.xpose.msra.mxu0 %v382
      %470 = vmatmul.f32.gmra.mxu0 %v452
      %v471 = vpop.f32.mrf.mxu0
      %v472 = vadd.f32 0.0, %v471
      %473 = vdwg.mxu0
      %s474 = scalar_lea.vmem %s1, 16
      %v475 = vld [vmem:[%s474] sm:$0xff]
      %v477 = vsel %vm377, %v475, 0
      %479 = vmatpush.xpose.msra.mxu0 %v427
      %480 = vmatpush.xpose.msra.mxu0 %v424
      %481 = vmatpush.xpose.msra.mxu0 %v421
      %482 = vmatpush.xpose.msra.mxu0 %v418
      %483 = vmatpush.xpose.msra.mxu0 %v415
      %484 = vmatpush.xpose.msra.mxu0 %v412
      %485 = vmatpush.xpose.msra.mxu0 %v409
      %486 = vmatpush.xpose.msra.mxu0 %v406
      %487 = vmatpush.xpose.msra.mxu0 %v403
      %488 = vmatpush.xpose.msra.mxu0 %v400
      %489 = vmatpush.xpose.msra.mxu0 %v397
      %490 = vmatpush.xpose.msra.mxu0 %v394
      %491 = vmatpush.xpose.msra.mxu0 %v391
      %492 = vmatpush.xpose.msra.mxu0 %v388
      %493 = vmatpush.xpose.msra.mxu0 %v385
      %494 = vmatpush.xpose.msra.mxu0 %v382
      %495 = vmatmul.f32.gmra.mxu0 %v477
      %v496 = vpop.f32.mrf.mxu0
      %v497 = vadd.f32 0.0, %v496
      %498 = vdwg.mxu0
      %v499 = vlaneseq
      %v500 = vand.u32 %v499, 127
      %vm501 = vcmp.eq.s32.totalorder %v500, 0
      %502 = vrot.lane.b32.xlu0 %v447, 1
      %v503 = vpop.permute.xlu0 %502
      %v504 = vsel %vm501, 0.0, %v503
      %vm505 = vcmp.eq.s32.totalorder %v500, 127
      %506 = vrot.lane.b32.xlu0 %v497, 127
      %v507 = vpop.permute.xlu0 %506
      %v508 = vsel %vm505, 0.0, %v507
      %v509 = vadd.f32 %v504, %v472
      %v510 = vadd.f32 %v509, %v508
      %511 = vadd.xlane.f32.xlu0 %v510
      %v512 = vpop.xlane.xlu0 %511
      %v513 = vrot.slane %v512, 4
      %v514 = vadd.f32 %v512, %v513
      %v515 = vrot.slane %v514, 2
      %v516 = vadd.f32 %v514, %v515
      %v517 = vrot.slane %v516, 1
      %v518 = vadd.f32 %v516, %v517
      %s519 = vtos %v518
      %v520 = vrcp.pop 1024.0
      %v521 = vmul.f32 1024.0, %v520
      %v522 = vsub.f32 1.0, %v521
      %v523 = vmul.f32 %v520, %v522
      %v524 = vadd.f32 %v520, %v523
      %vm525 = vweird.f32 %v520
      %v526 = vsel %vm525, %v520, %v524
      %s527 = vtos %v526
      %s528 = smul.f32 %s519, %s527
      %v529 = vstv %s528
      %v530 = vsub.f32 %v510, %v529
      %v531 = vmul.f32 %v530, %v530
      %532 = vadd.xlane.f32.xlu0 %v531
      %v533 = vpop.xlane.xlu0 %532
      %v534 = vrot.slane %v533, 4
      %v535 = vadd.f32 %v533, %v534
      %v536 = vrot.slane %v535, 2
      %v537 = vadd.f32 %v535, %v536
      %v538 = vrot.slane %v537, 1
      %v539 = vadd.f32 %v537, %v538
      %s540 = vtos %v539
      %v541 = vrcp.pop 1024.0
      %v542 = vmul.f32 1024.0, %v541
      %v543 = vsub.f32 1.0, %v542
      %v544 = vmul.f32 %v541, %v543
      %v545 = vadd.f32 %v541, %v544
      %vm546 = vweird.f32 %v541
      %v547 = vsel %vm546, %v541, %v545
      %s548 = vtos %v547
      %s549 = smul.f32 %s540, %s548
      %s550 = sadd.f32 %s549, 1e-05
      %v551 = vstv %s550
      %v552 = vrsqrt.pop %v551
      %v553 = vmul.f32 %v552, %v551
      %v554 = vmul.f32 %v553, %v552
      %v555 = vmul.f32 0.5, %v554
      %v556 = vsub.f32 1.5, %v555
      %v557 = vmul.f32 %v552, %v556
      %vm558 = vweird.f32 %v551
      %vm559 = vweird.f32 %v552
      %vm560 = vmor %vm558, %vm559
      %v561 = vsel %vm560, %v552, %v557
      %s562 = vtos %v561
      %v563 = vstv %s562
      %v564 = vmul.f32 %v530, %v563
      %v565 = vld [vmem:[%s2] sm:$0xff]
      %567 = vset.pattern.permute.xlu0 0
      %568 = vperm.xlu0 %567, %v565
      %v569 = vpop.permute.xlu0 %568
      %v571 = vmul.f32 %v564, %v569
      %v572 = vld [vmem:[%s3] sm:$0xff]
      %574 = vset.pattern.permute.xlu0 0
      %575 = vperm.xlu0 %574, %v572
      %v576 = vpop.permute.xlu0 %575
      %v578 = vadd.f32 %v571, %v576
      %v579 = vmul.f32 %v578, 0.5
      %v580 = vmul.f32 %v578, 0.70710677
      %v581 = vmul.f32 %v580, %v580
      %v582 = vmin.f32 16.0, %v581
      %v583 = vmul.f32 %v582, 2.1237322e-06
      %v584 = vadd.f32 %v583, 0.00028619796
      %v585 = vmul.f32 %v582, %v584
      %v586 = vadd.f32 %v585, 0.0036580483
      %v587 = vmul.f32 %v582, %v586
      %v588 = vadd.f32 %v587, 0.05243302
      %v589 = vmul.f32 %v582, %v588
      %v590 = vadd.f32 %v589, 0.18741608
      %v591 = vmul.f32 %v582, %v590
      %v592 = vadd.f32 %v591, 1.1283791
      %v593 = vmul.f32 %v580, %v592
      %v594 = vmul.f32 %v582, 3.8918573e-05
      %v595 = vadd.f32 %v594, 0.001143296
      %v596 = vmul.f32 %v582, %v595
      %v597 = vadd.f32 %v596, 0.014752088
      %v598 = vmul.f32 %v582, %v597
      %v599 = vadd.f32 %v598, 0.112945676
      %v600 = vmul.f32 %v582, %v599
      %v601 = vadd.f32 %v600, 0.4994258
      %v602 = vmul.f32 %v582, %v601
      %v603 = vadd.f32 %v602, 1.0
      %v604 = vrcp.pop %v603
      %v605 = vmul.f32 %v603, %v604
      %v606 = vsub.f32 1.0, %v605
      %v607 = vmul.f32 %v604, %v606
      %v608 = vadd.f32 %v604, %v607
      %vm609 = vweird.f32 %v603
      %vm610 = vweird.f32 %v604
      %vm611 = vmor %vm609, %vm610
      %v612 = vsel %vm611, %v604, %v608
      %v613 = vand.u32 2147483647, %v603
      %vm614 = vcmp.eq.f32.partialorder %v613, 8.507059e+37
      %v615 = vand.u32 %v603, 2147483648
      %v616 = vor.u32 1.1754944e-38, %v615
      %v617 = vsel %vm614, %v616, %v612
      %v618 = vmul.f32 %v593, %v617
      %v619 = vmin.f32 %v618, 1.0
      %v620 = vmax.f32 %v619, -1.0
      %v621 = vadd.f32 %v620, 1.0
      %v622 = vmul.f32 %v579, %v621
      %v623 = vld [vmem:[%s4] sm:$0xff]
      %v624 = vld [vmem:[%s4 + $0x8] sm:$0xff]
      %v626 = vsel %vm377, %v623, 0
      %v629 = vsel %vm377, %v624, 0
      %631 = vmatpush.msra.mxu0 0.0
      %632 = vmatpush.msra.mxu0 0.0
      %633 = vmatpush.msra.mxu0 0.0
      %634 = vmatpush.msra.mxu0 0.0
      %635 = vmatpush.msra.mxu0 0.0
      %636 = vmatpush.msra.mxu0 0.0
      %637 = vmatpush.msra.mxu0 0.0
      %638 = vmatpush.msra.mxu0 0.0
      %639 = vmatpush.msra.mxu0 0.0
      %640 = vmatpush.msra.mxu0 0.0
      %641 = vmatpush.msra.mxu0 0.0
      %642 = vmatpush.msra.mxu0 0.0
      %643 = vmatpush.msra.mxu0 0.0
      %644 = vmatpush.msra.mxu0 0.0
      %645 = vmatpush.msra.mxu0 0.0
      %646 = vmatpush.msra.mxu0 %v622
      %647 = vmatmul.f32.gmra.mxu0 %v626
      %v648 = vpop.f32.mrf.mxu0
      %v649 = vadd.f32 0.0, %v648
      %650 = vmatmul.f32.gmra.mxu0 %v629
      %v651 = vpop.f32.mrf.mxu0
      %v652 = vadd.f32 0.0, %v651
      %653 = vdwg.mxu0
      %s654 = scalar_lea.vmem %s4, 16
      %v655 = vld [vmem:[%s654] sm:$0xff]
      %v656 = vld [vmem:[%s654 + $0x8] sm:$0xff]
      %v658 = vsel %vm377, %v655, 0
      %v661 = vsel %vm377, %v656, 0
      %663 = vmatpush.msra.mxu0 0.0
      %664 = vmatpush.msra.mxu0 0.0
      %665 = vmatpush.msra.mxu0 0.0
      %666 = vmatpush.msra.mxu0 0.0
      %667 = vmatpush.msra.mxu0 0.0
      %668 = vmatpush.msra.mxu0 0.0
      %669 = vmatpush.msra.mxu0 0.0
      %670 = vmatpush.msra.mxu0 0.0
      %671 = vmatpush.msra.mxu0 0.0
      %672 = vmatpush.msra.mxu0 0.0
      %673 = vmatpush.msra.mxu0 0.0
      %674 = vmatpush.msra.mxu0 0.0
      %675 = vmatpush.msra.mxu0 0.0
      %676 = vmatpush.msra.mxu0 0.0
      %677 = vmatpush.msra.mxu0 0.0
      %678 = vmatpush.msra.mxu0 %v622
      %679 = vmatmul.f32.gmra.mxu0 %v658
      %v680 = vpop.f32.mrf.mxu0
      %v681 = vadd.f32 0.0, %v680
      %682 = vmatmul.f32.gmra.mxu0 %v661
      %v683 = vpop.f32.mrf.mxu0
      %v684 = vadd.f32 0.0, %v683
      %685 = vdwg.mxu0
      %s686 = scalar_lea.vmem %s4, 32
      %v687 = vld [vmem:[%s686] sm:$0xff]
      %v688 = vld [vmem:[%s686 + $0x8] sm:$0xff]
      %v690 = vsel %vm377, %v687, 0
      %v693 = vsel %vm377, %v688, 0
      %695 = vmatpush.msra.mxu0 0.0
      %696 = vmatpush.msra.mxu0 0.0
      %697 = vmatpush.msra.mxu0 0.0
      %698 = vmatpush.msra.mxu0 0.0
      %699 = vmatpush.msra.mxu0 0.0
      %700 = vmatpush.msra.mxu0 0.0
      %701 = vmatpush.msra.mxu0 0.0
      %702 = vmatpush.msra.mxu0 0.0
      %703 = vmatpush.msra.mxu0 0.0
      %704 = vmatpush.msra.mxu0 0.0
      %705 = vmatpush.msra.mxu0 0.0
      %706 = vmatpush.msra.mxu0 0.0
      %707 = vmatpush.msra.mxu0 0.0
      %708 = vmatpush.msra.mxu0 0.0
      %709 = vmatpush.msra.mxu0 0.0
      %710 = vmatpush.msra.mxu0 %v622
      %711 = vmatmul.f32.gmra.mxu0 %v690
      %v712 = vpop.f32.mrf.mxu0
      %v713 = vadd.f32 0.0, %v712
      %714 = vmatmul.f32.gmra.mxu0 %v693
      %v715 = vpop.f32.mrf.mxu0
      %v716 = vadd.f32 0.0, %v715
      %717 = vdwg.mxu0
      %718 = vrot.lane.b32.xlu0 %v649, 1
      %v719 = vpop.permute.xlu0 %718
      %720 = vrot.lane.b32.xlu0 %v652, 1
      %v721 = vpop.permute.xlu0 %720
      %v722 = vsel %vm501, 0.0, %v719
      %v723 = vsel %vm501, 0.0, %v721
      %724 = vrot.lane.b32.xlu0 %v713, 127
      %v725 = vpop.permute.xlu0 %724
      %726 = vrot.lane.b32.xlu0 %v716, 127
      %v727 = vpop.permute.xlu0 %726
      %v728 = vsel %vm505, 0.0, %v725
      %v729 = vsel %vm505, 0.0, %v727
      %v730 = vadd.f32 %v722, %v681
      %v731 = vadd.f32 %v723, %v684
      %v732 = vadd.f32 %v730, %v728
      %v733 = vadd.f32 %v731, %v729
      %v734 = vadd.f32 %v732, %v733
      %735 = vadd.xlane.f32.xlu0 %v734
      %v736 = vpop.xlane.xlu0 %735
      %v737 = vrot.slane %v736, 4
      %v738 = vadd.f32 %v736, %v737
      %v739 = vrot.slane %v738, 2
      %v740 = vadd.f32 %v738, %v739
      %v741 = vrot.slane %v740, 1
      %v742 = vadd.f32 %v740, %v741
      %s743 = vtos %v742
      %v744 = vrcp.pop 2048.0
      %v745 = vmul.f32 2048.0, %v744
      %v746 = vsub.f32 1.0, %v745
      %v747 = vmul.f32 %v744, %v746
      %v748 = vadd.f32 %v744, %v747
      %vm749 = vweird.f32 %v744
      %v750 = vsel %vm749, %v744, %v748
      %s751 = vtos %v750
      %s752 = smul.f32 %s743, %s751
      %v753 = vstv %s752
      %v754 = vsub.f32 %v732, %v753
      %v755 = vsub.f32 %v733, %v753
      %v756 = vmul.f32 %v754, %v754
      %v757 = vmul.f32 %v755, %v755
      %v758 = vadd.f32 %v756, %v757
      %759 = vadd.xlane.f32.xlu0 %v758
      %v760 = vpop.xlane.xlu0 %759
      %v761 = vrot.slane %v760, 4
      %v762 = vadd.f32 %v760, %v761
      %v763 = vrot.slane %v762, 2
      %v764 = vadd.f32 %v762, %v763
      %v765 = vrot.slane %v764, 1
      %v766 = vadd.f32 %v764, %v765
      %s767 = vtos %v766
      %v768 = vrcp.pop 2048.0
      %v769 = vmul.f32 2048.0, %v768
      %v770 = vsub.f32 1.0, %v769
      %v771 = vmul.f32 %v768, %v770
      %v772 = vadd.f32 %v768, %v771
      %vm773 = vweird.f32 %v768
      %v774 = vsel %vm773, %v768, %v772
      %s775 = vtos %v774
      %s776 = smul.f32 %s767, %s775
      %s777 = sadd.f32 %s776, 1e-05
      %v778 = vstv %s777
      %v779 = vrsqrt.pop %v778
      %v780 = vmul.f32 %v779, %v778
      %v781 = vmul.f32 %v780, %v779
      %v782 = vmul.f32 0.5, %v781
      %v783 = vsub.f32 1.5, %v782
      %v784 = vmul.f32 %v779, %v783
      %vm785 = vweird.f32 %v778
      %vm786 = vweird.f32 %v779
      %vm787 = vmor %vm785, %vm786
      %v788 = vsel %vm787, %v779, %v784
      %s789 = vtos %v788
      %v790 = vstv %s789
      %v791 = vmul.f32 %v754, %v790
      %v792 = vmul.f32 %v755, %v790
      %v793 = vld [vmem:[%s5] sm:$0xff]
      %v794 = vld [vmem:[%s5 + $0x8] sm:$0xff]
      %796 = vset.pattern.permute.xlu0 0
      %797 = vperm.xlu0 %796, %v793
      %v798 = vpop.permute.xlu0 %797
      %801 = vset.pattern.permute.xlu0 0
      %802 = vperm.xlu0 %801, %v794
      %v803 = vpop.permute.xlu0 %802
      %v805 = vmul.f32 %v791, %v798
      %v806 = vmul.f32 %v792, %v803
      %v807 = vld [vmem:[%s6] sm:$0xff]
      %v808 = vld [vmem:[%s6 + $0x8] sm:$0xff]
      %810 = vset.pattern.permute.xlu0 0
      %811 = vperm.xlu0 %810, %v807
      %v812 = vpop.permute.xlu0 %811
      %815 = vset.pattern.permute.xlu0 0
      %816 = vperm.xlu0 %815, %v808
      %v817 = vpop.permute.xlu0 %816
      %v819 = vadd.f32 %v805, %v812
      %v820 = vadd.f32 %v806, %v817
      %v821 = vmul.f32 %v819, 0.5
      %v822 = vmul.f32 %v820, 0.5
      %v823 = vmul.f32 %v819, 0.70710677
      %v824 = vmul.f32 %v820, 0.70710677
      %v825 = vmul.f32 %v823, %v823
      %v826 = vmin.f32 16.0, %v825
      %v827 = vmul.f32 %v826, 2.1237322e-06
      %v828 = vadd.f32 %v827, 0.00028619796
      %v829 = vmul.f32 %v826, %v828
      %v830 = vadd.f32 %v829, 0.0036580483
      %v831 = vmul.f32 %v826, %v830
      %v832 = vadd.f32 %v831, 0.05243302
      %v833 = vmul.f32 %v826, %v832
      %v834 = vadd.f32 %v833, 0.18741608
      %v835 = vmul.f32 %v826, %v834
      %v836 = vadd.f32 %v835, 1.1283791
      %v837 = vmul.f32 %v823, %v836
      %v838 = vmul.f32 %v826, 3.8918573e-05
      %v839 = vadd.f32 %v838, 0.001143296
      %v840 = vmul.f32 %v826, %v839
      %v841 = vadd.f32 %v840, 0.014752088
      %v842 = vmul.f32 %v826, %v841
      %v843 = vadd.f32 %v842, 0.112945676
      %v844 = vmul.f32 %v826, %v843
      %v845 = vadd.f32 %v844, 0.4994258
      %v846 = vmul.f32 %v826, %v845
      %v847 = vadd.f32 %v846, 1.0
      %v848 = vrcp.pop %v847
      %v849 = vmul.f32 %v847, %v848
      %v850 = vsub.f32 1.0, %v849
      %v851 = vmul.f32 %v848, %v850
      %v852 = vadd.f32 %v848, %v851
      %vm853 = vweird.f32 %v847
      %vm854 = vweird.f32 %v848
      %vm855 = vmor %vm853, %vm854
      %v856 = vsel %vm855, %v848, %v852
      %v857 = vand.u32 2147483647, %v847
      %vm858 = vcmp.eq.f32.partialorder %v857, 8.507059e+37
      %v859 = vand.u32 %v847, 2147483648
      %v860 = vor.u32 1.1754944e-38, %v859
      %v861 = vsel %vm858, %v860, %v856
      %v862 = vmul.f32 %v837, %v861
      %v863 = vmin.f32 %v862, 1.0
      %v864 = vmax.f32 %v863, -1.0
      %v865 = vmul.f32 %v824, %v824
      %v866 = vmin.f32 16.0, %v865
      %v867 = vmul.f32 %v866, 2.1237322e-06
      %v868 = vadd.f32 %v867, 0.00028619796
      %v869 = vmul.f32 %v866, %v868
      %v870 = vadd.f32 %v869, 0.0036580483
      %v871 = vmul.f32 %v866, %v870
      %v872 = vadd.f32 %v871, 0.05243302
      %v873 = vmul.f32 %v866, %v872
      %v874 = vadd.f32 %v873, 0.18741608
      %v875 = vmul.f32 %v866, %v874
      %v876 = vadd.f32 %v875, 1.1283791
      %v877 = vmul.f32 %v824, %v876
      %v878 = vmul.f32 %v866, 3.8918573e-05
      %v879 = vadd.f32 %v878, 0.001143296
      %v880 = vmul.f32 %v866, %v879
      %v881 = vadd.f32 %v880, 0.014752088
      %v882 = vmul.f32 %v866, %v881
      %v883 = vadd.f32 %v882, 0.112945676
      %v884 = vmul.f32 %v866, %v883
      %v885 = vadd.f32 %v884, 0.4994258
      %v886 = vmul.f32 %v866, %v885
      %v887 = vadd.f32 %v886, 1.0
      %v888 = vrcp.pop %v887
      %v889 = vmul.f32 %v887, %v888
      %v890 = vsub.f32 1.0, %v889
      %v891 = vmul.f32 %v888, %v890
      %v892 = vadd.f32 %v888, %v891
      %vm893 = vweird.f32 %v887
      %vm894 = vweird.f32 %v888
      %vm895 = vmor %vm893, %vm894
      %v896 = vsel %vm895, %v888, %v892
      %v897 = vand.u32 2147483647, %v887
      %vm898 = vcmp.eq.f32.partialorder %v897, 8.507059e+37
      %v899 = vand.u32 %v887, 2147483648
      %v900 = vor.u32 1.1754944e-38, %v899
      %v901 = vsel %vm898, %v900, %v896
      %v902 = vmul.f32 %v877, %v901
      %v903 = vmin.f32 %v902, 1.0
      %v904 = vmax.f32 %v903, -1.0
      %v905 = vadd.f32 %v864, 1.0
      %v906 = vadd.f32 %v904, 1.0
      %v907 = vmul.f32 %v821, %v905
      %v908 = vmul.f32 %v822, %v906
      %v909 = vld [vmem:[%s7] sm:$0xff]
      %v910 = vld [vmem:[%s7 + $0x8] sm:$0xff]
      %v911 = vld [vmem:[%s7 + $0x10] sm:$0xff]
      %v912 = vld [vmem:[%s7 + $0x18] sm:$0xff]
      %vm913 = vcmask 130048
      %v915 = vsel %vm913, %v909, 0
      %v918 = vsel %vm913, %v910, 0
      %v921 = vsel %vm913, %v911, 0
      %v924 = vsel %vm913, %v912, 0
      %926 = vmatpush.msra.mxu0 0.0
      %927 = vmatpush.msra.mxu0 0.0
      %928 = vmatpush.msra.mxu0 0.0
      %929 = vmatpush.msra.mxu0 0.0
      %930 = vmatpush.msra.mxu0 0.0
      %931 = vmatpush.msra.mxu0 0.0
      %932 = vmatpush.msra.mxu0 0.0
      %933 = vmatpush.msra.mxu0 0.0
      %934 = vmatpush.msra.mxu0 0.0
      %935 = vmatpush.msra.mxu0 0.0
      %936 = vmatpush.msra.mxu0 0.0
      %937 = vmatpush.msra.mxu0 0.0
      %938 = vmatpush.msra.mxu0 0.0
      %939 = vmatpush.msra.mxu0 0.0
      %940 = vmatpush.msra.mxu0 %v908
      %941 = vmatpush.msra.mxu0 %v907
      %942 = vmatmul.f32.gmra.mxu0 %v915
      %v943 = vpop.f32.mrf.mxu0
      %v944 = vadd.f32 0.0, %v943
      %945 = vmatmul.f32.gmra.mxu0 %v918
      %v946 = vpop.f32.mrf.mxu0
      %v947 = vadd.f32 0.0, %v946
      %948 = vmatmul.f32.gmra.mxu0 %v921
      %v949 = vpop.f32.mrf.mxu0
      %v950 = vadd.f32 0.0, %v949
      %951 = vmatmul.f32.gmra.mxu0 %v924
      %v952 = vpop.f32.mrf.mxu0
      %v953 = vadd.f32 0.0, %v952
      %954 = vdwg.mxu0
      %s955 = scalar_lea.vmem %s7, 32
      %v956 = vld [vmem:[%s955] sm:$0xff]
      %v957 = vld [vmem:[%s955 + $0x8] sm:$0xff]
      %v958 = vld [vmem:[%s955 + $0x10] sm:$0xff]
      %v959 = vld [vmem:[%s955 + $0x18] sm:$0xff]
      %v961 = vsel %vm913, %v956, 0
      %v964 = vsel %vm913, %v957, 0
      %v967 = vsel %vm913, %v958, 0
      %v970 = vsel %vm913, %v959, 0
      %972 = vmatpush.msra.mxu0 0.0
      %973 = vmatpush.msra.mxu0 0.0
      %974 = vmatpush.msra.mxu0 0.0
      %975 = vmatpush.msra.mxu0 0.0
      %976 = vmatpush.msra.mxu0 0.0
      %977 = vmatpush.msra.mxu0 0.0
      %978 = vmatpush.msra.mxu0 0.0
      %979 = vmatpush.msra.mxu0 0.0
      %980 = vmatpush.msra.mxu0 0.0
      %981 = vmatpush.msra.mxu0 0.0
      %982 = vmatpush.msra.mxu0 0.0
      %983 = vmatpush.msra.mxu0 0.0
      %984 = vmatpush.msra.mxu0 0.0
      %985 = vmatpush.msra.mxu0 0.0
      %986 = vmatpush.msra.mxu0 %v908
      %987 = vmatpush.msra.mxu0 %v907
      %988 = vmatmul.f32.gmra.mxu0 %v961
      %v989 = vpop.f32.mrf.mxu0
      %v990 = vadd.f32 0.0, %v989
      %991 = vmatmul.f32.gmra.mxu0 %v964
      %v992 = vpop.f32.mrf.mxu0
      %v993 = vadd.f32 0.0, %v992
      %994 = vmatmul.f32.gmra.mxu0 %v967
      %v995 = vpop.f32.mrf.mxu0
      %v996 = vadd.f32 0.0, %v995
      %997 = vmatmul.f32.gmra.mxu0 %v970
      %v998 = vpop.f32.mrf.mxu0
      %v999 = vadd.f32 0.0, %v998
      %1000 = vdwg.mxu0
      %s1001 = scalar_lea.vmem %s7, 64
      %v1002 = vld [vmem:[%s1001] sm:$0xff]
      %v1003 = vld [vmem:[%s1001 + $0x8] sm:$0xff]
      %v1004 = vld [vmem:[%s1001 + $0x10] sm:$0xff]
      %v1005 = vld [vmem:[%s1001 + $0x18] sm:$0xff]
      %v1007 = vsel %vm913, %v1002, 0
      %v1010 = vsel %vm913, %v1003, 0
      %v1013 = vsel %vm913, %v1004, 0
      %v1016 = vsel %vm913, %v1005, 0
      %1018 = vmatpush.msra.mxu0 0.0
      %1019 = vmatpush.msra.mxu0 0.0
      %1020 = vmatpush.msra.mxu0 0.0
      %1021 = vmatpush.msra.mxu0 0.0
      %1022 = vmatpush.msra.mxu0 0.0
      %1023 = vmatpush.msra.mxu0 0.0
      %1024 = vmatpush.msra.mxu0 0.0
      %1025 = vmatpush.msra.mxu0 0.0
      %1026 = vmatpush.msra.mxu0 0.0
      %1027 = vmatpush.msra.mxu0 0.0
      %1028 = vmatpush.msra.mxu0 0.0
      %1029 = vmatpush.msra.mxu0 0.0
      %1030 = vmatpush.msra.mxu0 0.0
      %1031 = vmatpush.msra.mxu0 0.0
      %1032 = vmatpush.msra.mxu0 %v908
      %1033 = vmatpush.msra.mxu0 %v907
      %1034 = vmatmul.f32.gmra.mxu0 %v1007
      %v1035 = vpop.f32.mrf.mxu0
      %v1036 = vadd.f32 0.0, %v1035
      %1037 = vmatmul.f32.gmra.mxu0 %v1010
      %v1038 = vpop.f32.mrf.mxu0
      %v1039 = vadd.f32 0.0, %v1038
      %1040 = vmatmul.f32.gmra.mxu0 %v1013
      %v1041 = vpop.f32.mrf.mxu0
      %v1042 = vadd.f32 0.0, %v1041
      %1043 = vmatmul.f32.gmra.mxu0 %v1016
      %v1044 = vpop.f32.mrf.mxu0
      %v1045 = vadd.f32 0.0, %v1044
      %1046 = vdwg.mxu0
      %1047 = vrot.lane.b32.xlu0 %v944, 1
      %v1048 = vpop.permute.xlu0 %1047
      %1049 = vrot.lane.b32.xlu0 %v947, 1
      %v1050 = vpop.permute.xlu0 %1049
      %1051 = vrot.lane.b32.xlu0 %v950, 1
      %v1052 = vpop.permute.xlu0 %1051
      %1053 = vrot.lane.b32.xlu0 %v953, 1
      %v1054 = vpop.permute.xlu0 %1053
      %v1055 = vsel %vm501, 0.0, %v1048
      %v1056 = vsel %vm501, 0.0, %v1050
      %v1057 = vsel %vm501, 0.0, %v1052
      %v1058 = vsel %vm501, 0.0, %v1054
      %1059 = vrot.lane.b32.xlu0 %v1036, 127
      %v1060 = vpop.permute.xlu0 %1059
      %1061 = vrot.lane.b32.xlu0 %v1039, 127
      %v1062 = vpop.permute.xlu0 %1061
      %1063 = vrot.lane.b32.xlu0 %v1042, 127
      %v1064 = vpop.permute.xlu0 %1063
      %1065 = vrot.lane.b32.xlu0 %v1045, 127
      %v1066 = vpop.permute.xlu0 %1065
      %v1067 = vsel %vm505, 0.0, %v1060
      %v1068 = vsel %vm505, 0.0, %v1062
      %v1069 = vsel %vm505, 0.0, %v1064
      %v1070 = vsel %vm505, 0.0, %v1066
      %v1071 = vadd.f32 %v1055, %v990
      %v1072 = vadd.f32 %v1056, %v993
      %v1073 = vadd.f32 %v1057, %v996
      %v1074 = vadd.f32 %v1058, %v999
      %v1075 = vadd.f32 %v1071, %v1067
      %v1076 = vadd.f32 %v1072, %v1068
      %v1077 = vadd.f32 %v1073, %v1069
      %v1078 = vadd.f32 %v1074, %v1070
      %v1079 = vadd.f32 %v1075, %v1076
      %v1080 = vadd.f32 %v1079, %v1077
      %v1081 = vadd.f32 %v1080, %v1078
      %1082 = vadd.xlane.f32.xlu0 %v1081
      %v1083 = vpop.xlane.xlu0 %1082
      %v1084 = vrot.slane %v1083, 4
      %v1085 = vadd.f32 %v1083, %v1084
      %v1086 = vrot.slane %v1085, 2
      %v1087 = vadd.f32 %v1085, %v1086
      %v1088 = vrot.slane %v1087, 1
      %v1089 = vadd.f32 %v1087, %v1088
      %s1090 = vtos %v1089
      %v1091 = vrcp.pop 4096.0
      %v1092 = vmul.f32 4096.0, %v1091
      %v1093 = vsub.f32 1.0, %v1092
      %v1094 = vmul.f32 %v1091, %v1093
      %v1095 = vadd.f32 %v1091, %v1094
      %vm1096 = vweird.f32 %v1091
      %v1097 = vsel %vm1096, %v1091, %v1095
      %s1098 = vtos %v1097
      %s1099 = smul.f32 %s1090, %s1098
      %v1100 = vstv %s1099
      %v1101 = vsub.f32 %v1075, %v1100
      %v1102 = vsub.f32 %v1076, %v1100
      %v1103 = vsub.f32 %v1077, %v1100
      %v1104 = vsub.f32 %v1078, %v1100
      %v1105 = vmul.f32 %v1101, %v1101
      %v1106 = vmul.f32 %v1102, %v1102
      %v1107 = vmul.f32 %v1103, %v1103
      %v1108 = vmul.f32 %v1104, %v1104
      %v1109 = vadd.f32 %v1105, %v1106
      %v1110 = vadd.f32 %v1109, %v1107
      %v1111 = vadd.f32 %v1110, %v1108
      %1112 = vadd.xlane.f32.xlu0 %v1111
      %v1113 = vpop.xlane.xlu0 %1112
      %v1114 = vrot.slane %v1113, 4
      %v1115 = vadd.f32 %v1113, %v1114
      %v1116 = vrot.slane %v1115, 2
      %v1117 = vadd.f32 %v1115, %v1116
      %v1118 = vrot.slane %v1117, 1
      %v1119 = vadd.f32 %v1117, %v1118
      %s1120 = vtos %v1119
      %v1121 = vrcp.pop 4096.0
      %v1122 = vmul.f32 4096.0, %v1121
      %v1123 = vsub.f32 1.0, %v1122
      %v1124 = vmul.f32 %v1121, %v1123
      %v1125 = vadd.f32 %v1121, %v1124
      %vm1126 = vweird.f32 %v1121
      %v1127 = vsel %vm1126, %v1121, %v1125
      %s1128 = vtos %v1127
      %s1129 = smul.f32 %s1120, %s1128
      %s1130 = sadd.f32 %s1129, 1e-05
      %v1131 = vstv %s1130
      %v1132 = vrsqrt.pop %v1131
      %v1133 = vmul.f32 %v1132, %v1131
      %v1134 = vmul.f32 %v1133, %v1132
      %v1135 = vmul.f32 0.5, %v1134
      %v1136 = vsub.f32 1.5, %v1135
      %v1137 = vmul.f32 %v1132, %v1136
      %vm1138 = vweird.f32 %v1131
      %vm1139 = vweird.f32 %v1132
      %vm1140 = vmor %vm1138, %vm1139
      %v1141 = vsel %vm1140, %v1132, %v1137
      %s1142 = vtos %v1141
      %v1143 = vstv %s1142
      %v1144 = vmul.f32 %v1101, %v1143
      %v1145 = vmul.f32 %v1102, %v1143
      %v1146 = vmul.f32 %v1103, %v1143
      %v1147 = vmul.f32 %v1104, %v1143
      %v1148 = vld [vmem:[%s8] sm:$0xff]
      %v1149 = vld [vmem:[%s8 + $0x8] sm:$0xff]
      %v1150 = vld [vmem:[%s8 + $0x10] sm:$0xff]
      %v1151 = vld [vmem:[%s8 + $0x18] sm:$0xff]
      %1153 = vset.pattern.permute.xlu0 0
      %1154 = vperm.xlu0 %1153, %v1148
      %v1155 = vpop.permute.xlu0 %1154
      %1158 = vset.pattern.permute.xlu0 0
      %1159 = vperm.xlu0 %1158, %v1149
      %v1160 = vpop.permute.xlu0 %1159
      %1163 = vset.pattern.permute.xlu0 0
      %1164 = vperm.xlu0 %1163, %v1150
      %v1165 = vpop.permute.xlu0 %1164
      %1168 = vset.pattern.permute.xlu0 0
      %1169 = vperm.xlu0 %1168, %v1151
      %v1170 = vpop.permute.xlu0 %1169
      %v1172 = vmul.f32 %v1144, %v1155
      %v1173 = vmul.f32 %v1145, %v1160
      %v1174 = vmul.f32 %v1146, %v1165
      %v1175 = vmul.f32 %v1147, %v1170
      %v1176 = vld [vmem:[%s9] sm:$0xff]
      %v1177 = vld [vmem:[%s9 + $0x8] sm:$0xff]
      %v1178 = vld [vmem:[%s9 + $0x10] sm:$0xff]
      %v1179 = vld [vmem:[%s9 + $0x18] sm:$0xff]
      %1181 = vset.pattern.permute.xlu0 0
      %1182 = vperm.xlu0 %1181, %v1176
      %v1183 = vpop.permute.xlu0 %1182
      %1186 = vset.pattern.permute.xlu0 0
      %1187 = vperm.xlu0 %1186, %v1177
      %v1188 = vpop.permute.xlu0 %1187
      %1191 = vset.pattern.permute.xlu0 0
      %1192 = vperm.xlu0 %1191, %v1178
      %v1193 = vpop.permute.xlu0 %1192
      %1196 = vset.pattern.permute.xlu0 0
      %1197 = vperm.xlu0 %1196, %v1179
      %v1198 = vpop.permute.xlu0 %1197
      %v1200 = vadd.f32 %v1172, %v1183
      %v1201 = vadd.f32 %v1173, %v1188
      %v1202 = vadd.f32 %v1174, %v1193
      %v1203 = vadd.f32 %v1175, %v1198
      %v1204 = vmul.f32 %v1200, 0.5
      %v1205 = vmul.f32 %v1201, 0.5
      %v1206 = vmul.f32 %v1202, 0.5
      %v1207 = vmul.f32 %v1203, 0.5
      %v1208 = vmul.f32 %v1200, 0.70710677
      %v1209 = vmul.f32 %v1201, 0.70710677
      %v1210 = vmul.f32 %v1202, 0.70710677
      %v1211 = vmul.f32 %v1203, 0.70710677
      %v1212 = vmul.f32 %v1208, %v1208
      %v1213 = vmin.f32 16.0, %v1212
      %v1214 = vmul.f32 %v1213, 2.1237322e-06
      %v1215 = vadd.f32 %v1214, 0.00028619796
      %v1216 = vmul.f32 %v1213, %v1215
      %v1217 = vadd.f32 %v1216, 0.0036580483
      %v1218 = vmul.f32 %v1213, %v1217
      %v1219 = vadd.f32 %v1218, 0.05243302
      %v1220 = vmul.f32 %v1213, %v1219
      %v1221 = vadd.f32 %v1220, 0.18741608
      %v1222 = vmul.f32 %v1213, %v1221
      %v1223 = vadd.f32 %v1222, 1.1283791
      %v1224 = vmul.f32 %v1208, %v1223
      %v1225 = vmul.f32 %v1213, 3.8918573e-05
      %v1226 = vadd.f32 %v1225, 0.001143296
      %v1227 = vmul.f32 %v1213, %v1226
      %v1228 = vadd.f32 %v1227, 0.014752088
      %v1229 = vmul.f32 %v1213, %v1228
      %v1230 = vadd.f32 %v1229, 0.112945676
      %v1231 = vmul.f32 %v1213, %v1230
      %v1232 = vadd.f32 %v1231, 0.4994258
      %v1233 = vmul.f32 %v1213, %v1232
      %v1234 = vadd.f32 %v1233, 1.0
      %v1235 = vrcp.pop %v1234
      %v1236 = vmul.f32 %v1234, %v1235
      %v1237 = vsub.f32 1.0, %v1236
      %v1238 = vmul.f32 %v1235, %v1237
      %v1239 = vadd.f32 %v1235, %v1238
      %vm1240 = vweird.f32 %v1234
      %vm1241 = vweird.f32 %v1235
      %vm1242 = vmor %vm1240, %vm1241
      %v1243 = vsel %vm1242, %v1235, %v1239
      %v1244 = vand.u32 2147483647, %v1234
      %vm1245 = vcmp.eq.f32.partialorder %v1244, 8.507059e+37
      %v1246 = vand.u32 %v1234, 2147483648
      %v1247 = vor.u32 1.1754944e-38, %v1246
      %v1248 = vsel %vm1245, %v1247, %v1243
      %v1249 = vmul.f32 %v1224, %v1248
      %v1250 = vmin.f32 %v1249, 1.0
      %v1251 = vmax.f32 %v1250, -1.0
      %v1252 = vmul.f32 %v1209, %v1209
      %v1253 = vmin.f32 16.0, %v1252
      %v1254 = vmul.f32 %v1253, 2.1237322e-06
      %v1255 = vadd.f32 %v1254, 0.00028619796
      %v1256 = vmul.f32 %v1253, %v1255
      %v1257 = vadd.f32 %v1256, 0.0036580483
      %v1258 = vmul.f32 %v1253, %v1257
      %v1259 = vadd.f32 %v1258, 0.05243302
      %v1260 = vmul.f32 %v1253, %v1259
      %v1261 = vadd.f32 %v1260, 0.18741608
      %v1262 = vmul.f32 %v1253, %v1261
      %v1263 = vadd.f32 %v1262, 1.1283791
      %v1264 = vmul.f32 %v1209, %v1263
      %v1265 = vmul.f32 %v1253, 3.8918573e-05
      %v1266 = vadd.f32 %v1265, 0.001143296
      %v1267 = vmul.f32 %v1253, %v1266
      %v1268 = vadd.f32 %v1267, 0.014752088
      %v1269 = vmul.f32 %v1253, %v1268
      %v1270 = vadd.f32 %v1269, 0.112945676
      %v1271 = vmul.f32 %v1253, %v1270
      %v1272 = vadd.f32 %v1271, 0.4994258
      %v1273 = vmul.f32 %v1253, %v1272
      %v1274 = vadd.f32 %v1273, 1.0
      %v1275 = vrcp.pop %v1274
      %v1276 = vmul.f32 %v1274, %v1275
      %v1277 = vsub.f32 1.0, %v1276
      %v1278 = vmul.f32 %v1275, %v1277
      %v1279 = vadd.f32 %v1275, %v1278
      %vm1280 = vweird.f32 %v1274
      %vm1281 = vweird.f32 %v1275
      %vm1282 = vmor %vm1280, %vm1281
      %v1283 = vsel %vm1282, %v1275, %v1279
      %v1284 = vand.u32 2147483647, %v1274
      %vm1285 = vcmp.eq.f32.partialorder %v1284, 8.507059e+37
      %v1286 = vand.u32 %v1274, 2147483648
      %v1287 = vor.u32 1.1754944e-38, %v1286
      %v1288 = vsel %vm1285, %v1287, %v1283
      %v1289 = vmul.f32 %v1264, %v1288
      %v1290 = vmin.f32 %v1289, 1.0
      %v1291 = vmax.f32 %v1290, -1.0
      %v1292 = vmul.f32 %v1210, %v1210
      %v1293 = vmin.f32 16.0, %v1292
      %v1294 = vmul.f32 %v1293, 2.1237322e-06
      %v1295 = vadd.f32 %v1294, 0.00028619796
      %v1296 = vmul.f32 %v1293, %v1295
      %v1297 = vadd.f32 %v1296, 0.0036580483
      %v1298 = vmul.f32 %v1293, %v1297
      %v1299 = vadd.f32 %v1298, 0.05243302
      %v1300 = vmul.f32 %v1293, %v1299
      %v1301 = vadd.f32 %v1300, 0.18741608
      %v1302 = vmul.f32 %v1293, %v1301
      %v1303 = vadd.f32 %v1302, 1.1283791
      %v1304 = vmul.f32 %v1210, %v1303
      %v1305 = vmul.f32 %v1293, 3.8918573e-05
      %v1306 = vadd.f32 %v1305, 0.001143296
      %v1307 = vmul.f32 %v1293, %v1306
      %v1308 = vadd.f32 %v1307, 0.014752088
      %v1309 = vmul.f32 %v1293, %v1308
      %v1310 = vadd.f32 %v1309, 0.112945676
      %v1311 = vmul.f32 %v1293, %v1310
      %v1312 = vadd.f32 %v1311, 0.4994258
      %v1313 = vmul.f32 %v1293, %v1312
      %v1314 = vadd.f32 %v1313, 1.0
      %v1315 = vrcp.pop %v1314
      %v1316 = vmul.f32 %v1314, %v1315
      %v1317 = vsub.f32 1.0, %v1316
      %v1318 = vmul.f32 %v1315, %v1317
      %v1319 = vadd.f32 %v1315, %v1318
      %vm1320 = vweird.f32 %v1314
      %vm1321 = vweird.f32 %v1315
      %vm1322 = vmor %vm1320, %vm1321
      %v1323 = vsel %vm1322, %v1315, %v1319
      %v1324 = vand.u32 2147483647, %v1314
      %vm1325 = vcmp.eq.f32.partialorder %v1324, 8.507059e+37
      %v1326 = vand.u32 %v1314, 2147483648
      %v1327 = vor.u32 1.1754944e-38, %v1326
      %v1328 = vsel %vm1325, %v1327, %v1323
      %v1329 = vmul.f32 %v1304, %v1328
      %v1330 = vmin.f32 %v1329, 1.0
      %v1331 = vmax.f32 %v1330, -1.0
      %v1332 = vmul.f32 %v1211, %v1211
      %v1333 = vmin.f32 16.0, %v1332
      %v1334 = vmul.f32 %v1333, 2.1237322e-06
      %v1335 = vadd.f32 %v1334, 0.00028619796
      %v1336 = vmul.f32 %v1333, %v1335
      %v1337 = vadd.f32 %v1336, 0.0036580483
      %v1338 = vmul.f32 %v1333, %v1337
      %v1339 = vadd.f32 %v1338, 0.05243302
      %v1340 = vmul.f32 %v1333, %v1339
      %v1341 = vadd.f32 %v1340, 0.18741608
      %v1342 = vmul.f32 %v1333, %v1341
      %v1343 = vadd.f32 %v1342, 1.1283791
      %v1344 = vmul.f32 %v1211, %v1343
      %v1345 = vmul.f32 %v1333, 3.8918573e-05
      %v1346 = vadd.f32 %v1345, 0.001143296
      %v1347 = vmul.f32 %v1333, %v1346
      %v1348 = vadd.f32 %v1347, 0.014752088
      %v1349 = vmul.f32 %v1333, %v1348
      %v1350 = vadd.f32 %v1349, 0.112945676
      %v1351 = vmul.f32 %v1333, %v1350
      %v1352 = vadd.f32 %v1351, 0.4994258
      %v1353 = vmul.f32 %v1333, %v1352
      %v1354 = vadd.f32 %v1353, 1.0
      %v1355 = vrcp.pop %v1354
      %v1356 = vmul.f32 %v1354, %v1355
      %v1357 = vsub.f32 1.0, %v1356
      %v1358 = vmul.f32 %v1355, %v1357
      %v1359 = vadd.f32 %v1355, %v1358
      %vm1360 = vweird.f32 %v1354
      %vm1361 = vweird.f32 %v1355
      %vm1362 = vmor %vm1360, %vm1361
      %v1363 = vsel %vm1362, %v1355, %v1359
      %v1364 = vand.u32 2147483647, %v1354
      %vm1365 = vcmp.eq.f32.partialorder %v1364, 8.507059e+37
      %v1366 = vand.u32 %v1354, 2147483648
      %v1367 = vor.u32 1.1754944e-38, %v1366
      %v1368 = vsel %vm1365, %v1367, %v1363
      %v1369 = vmul.f32 %v1344, %v1368
      %v1370 = vmin.f32 %v1369, 1.0
      %v1371 = vmax.f32 %v1370, -1.0
      %v1372 = vadd.f32 %v1251, 1.0
      %v1373 = vadd.f32 %v1291, 1.0
      %v1374 = vadd.f32 %v1331, 1.0
      %v1375 = vadd.f32 %v1371, 1.0
      %v1376 = vmul.f32 %v1204, %v1372
      %v1377 = vmul.f32 %v1205, %v1373
      %v1378 = vmul.f32 %v1206, %v1374
      %v1379 = vmul.f32 %v1207, %v1375
      %1380 = vxpose.xlu0.b32.start [1/16] %v1376, 128
      %1381 = vxpose.xlu0.b32.cont [2/16] %v1377, 128
      %1382 = vxpose.xlu0.b32.cont [3/16] %v1378, 128
      %1383 = vxpose.xlu0.b32.cont [4/16] %v1379, 128
      %1384 = vxpose.xlu0.b32.cont [5/16] 0.0, 128
      %1385 = vxpose.xlu0.b32.cont [6/16] 0.0, 128
      %1386 = vxpose.xlu0.b32.cont [7/16] 0.0, 128
      %1387 = vxpose.xlu0.b32.cont [8/16] 0.0, 128
      %1388 = vxpose.xlu0.b32.cont [9/16] 0.0, 128
      %1389 = vxpose.xlu0.b32.cont [10/16] 0.0, 128
      %1390 = vxpose.xlu0.b32.cont [11/16] 0.0, 128
      %1391 = vxpose.xlu0.b32.cont [12/16] 0.0, 128
      %1392 = vxpose.xlu0.b32.cont [13/16] 0.0, 128
      %1393 = vxpose.xlu0.b32.cont [14/16] 0.0, 128
      %1394 = vxpose.xlu0.b32.cont [15/16] 0.0, 128
      %1395 = vxpose.xlu0.b32.end [16/16] 0.0, 128
      %v1396 = vpop.trf.xlu0
      %v1397 = vpop.trf.xlu0
      %v1398 = vpop.trf.xlu0
      %v1399 = vpop.trf.xlu0
      %v1400 = vpop.trf.xlu0
      %v1401 = vpop.trf.xlu0
      %v1402 = vpop.trf.xlu0
      %v1403 = vpop.trf.xlu0
      %v1404 = vpop.trf.xlu0
      %v1405 = vpop.trf.xlu0
      %v1406 = vpop.trf.xlu0
      %v1407 = vpop.trf.xlu0
      %v1408 = vpop.trf.xlu0
      %v1409 = vpop.trf.xlu0
      %v1410 = vpop.trf.xlu0
      %v1411 = vpop.trf.xlu0
      %vm1412 = vcmask 261120
      %1413 = vst.msk [vmem:[%s359] sm:$0xff] %vm1412, %v1396
      %1414 = vst.msk [vmem:[%s359 + $0x8] sm:$0xff] %vm1412, %v1397
      %1415 = vst.msk [vmem:[%s359 + $0x10] sm:$0xff] %vm1412, %v1398
      %1416 = vst.msk [vmem:[%s359 + $0x18] sm:$0xff] %vm1412, %v1399
      %1417 = vst.msk [vmem:[%s359 + $0x20] sm:$0xff] %vm1412, %v1400
      %1418 = vst.msk [vmem:[%s359 + $0x28] sm:$0xff] %vm1412, %v1401
      %1419 = vst.msk [vmem:[%s359 + $0x30] sm:$0xff] %vm1412, %v1402
      %1420 = vst.msk [vmem:[%s359 + $0x38] sm:$0xff] %vm1412, %v1403
      %1421 = vst.msk [vmem:[%s359 + $0x40] sm:$0xff] %vm1412, %v1404
      %1422 = vst.msk [vmem:[%s359 + $0x48] sm:$0xff] %vm1412, %v1405
      %1423 = vst.msk [vmem:[%s359 + $0x50] sm:$0xff] %vm1412, %v1406
      %1424 = vst.msk [vmem:[%s359 + $0x58] sm:$0xff] %vm1412, %v1407
      %1425 = vst.msk [vmem:[%s359 + $0x60] sm:$0xff] %vm1412, %v1408
      %1426 = vst.msk [vmem:[%s359 + $0x68] sm:$0xff] %vm1412, %v1409
      %1427 = vst.msk [vmem:[%s359 + $0x70] sm:$0xff] %vm1412, %v1410
      %1428 = vst.msk [vmem:[%s359 + $0x78] sm:$0xff] %vm1412, %v1411
      %p1429 = scmp.lt.s32.totalorder %s21, 1
      %s1430 = scalar_select %p1429, %s21, 1
      %s1431 = smul.addr %s1430, 16
      %s1432 = smul.addr %s1431, 8
      %s1433 = scalar_lea.vmem %s10, %s1432
      // Predicated region
      $region61: #{tpu_custom_call.1} parent=59 // pred_check
        %p1434 = pneg %p254
      $region62: #{tpu_custom_call.1} parent=59 // pred_check_branch
        %1436 = sbr.rel (%p1434) target = $region64
      $region63: #{tpu_custom_call.1} parent=59 // pred_region
        _
      $region64: #{tpu_custom_call.1} parent=59 // pred_fallthru
        _
    $region60: #{tpu_custom_call.1} parent=5 // pred_fallthru
      _
    %p1437 = scmp.le.s32.totalorder 2, %s16
    // Predicated region
    $region65: #{tpu_custom_call.1} parent=5 // pred_check
      %p1438 = pneg %p1437
    $region66: #{tpu_custom_call.1} parent=5 // pred_check_branch
      %1440 = sbr.rel (%p1438) target = $region68
    $region67: #{tpu_custom_call.1} parent=5 // pred_region
      %s1441 = ssub.s32 %s16, 2
      // Predicated region
      $region69: #{tpu_custom_call.1} parent=67 // pred_check
        %p1442 = pneg %p260
      $region70: #{tpu_custom_call.1} parent=67 // pred_check_branch
        %1444 = sbr.rel (%p1442) target = $region72
      $region71: #{tpu_custom_call.1} parent=67 // pred_region
        %p1445 = scmp.lt.s32.totalorder %s22, 1
        %s1446 = scalar_select %p1445, %s22, 1
        %s1447 = smul.addr %s1446, 16
        %s1448 = smul.addr %s1447, 8
        %s1449 = scalar_lea.vmem %s10, %s1448
      $region72: #{tpu_custom_call.1} parent=67 // pred_fallthru
        _
    $region68: #{tpu_custom_call.1} parent=5 // pred_fallthru
      _
  $region6: #{tpu_custom_call.1} parent=0 // loop_footer
    %s20 = sadd.s32 1, %s16
  $region7: #{tpu_custom_call.1} parent=0 // loop_footer_branch
    %15 = sbr.rel target = $region3
  $region8: #{tpu_custom_call.1} parent=0 // loop_exit
    _

// kernel: tpu_custom_call.1
$region0: #{tpu_custom_call.1}
  #allocation0 [shape = 'u32[]', space=smem, size = 0x4, offset = 0x4, fixed_abs, tag = 'smem constant byte address 0x4 - core index']
  #allocation1 [shape = 'u32[72,128]{1,0:T(1,128)}', space=vmem, size = 0x9000, scoped, tag = 'internal scratch']
  %s0 = inlined_call_operand.vmem [shape: f32[2,8,128], index: 0, kind: input, shape index: {}]
  %s1 = inlined_call_operand.vmem [shape: f32[3,8,8], index: 1, kind: input, shape index: {}]
  %s2 = inlined_call_operand.vmem [shape: f32[8,1], index: 2, kind: input, shape index: {}]
  %s3 = inlined_call_operand.vmem [shape: f32[8,1], index: 3, kind: input, shape index: {}]
  %s4 = inlined_call_operand.vmem [shape: f32[3,16,8], index: 4, kind: input, shape index: {}]
  %s5 = inlined_call_operand.vmem [shape: f32[16,1], index: 5, kind: input, shape index: {}]
  %s6 = inlined_call_operand.vmem [shape: f32[16,1], index: 6, kind: input, shape index: {}]
  %s7 = inlined_call_operand.vmem [shape: f32[3,32,16], index: 7, kind: input, shape index: {}]
  %s8 = inlined_call_operand.vmem [shape: f32[32,1], index: 8, kind: input, shape index: {}]
  %s9 = inlined_call_operand.vmem [shape: f32[32,1], index: 9, kind: input, shape index: {}]
  %s10 = inlined_call_operand.hbm [shape: f32[2,32,128], index: 10, kind: output, shape index: {}]
  %s11 = sld [smem:[#allocation0]]
  $region73: #{tpu_custom_call.1} parent=0
    _
  %s13 = ssub.s32 1, %s11
  %s14 = scalar_select 0, %s13, %s11
  $region1: #{tpu_custom_call.1} parent=0
    #allocation2 [shape = 'u8[32768]{0}', space=vmem, size = 0x8000, scoped, tag = 'output window, operand 0']
    #allocation3 [shape = 's32[2]{0}', space=sflag, size = 0x8, scoped, tag = 'scoped memory for tpu_custom_call.1']
    %15 = vsyncpa [#allocation3], 0
    %s16 = scalar_lea.sflag [#allocation3], 1
    %17 = vsyncpa %s16, 0
    loop: start=0, step=1, limit=4
    $region2: #{tpu_custom_call.1} parent=1 // loop_pre_header
      _
    $region3: #{tpu_custom_call.1} parent=1 // loop_header
      %s19 = sphi 0, %s23
      %p20 = scmp.ge.s32.totalorder %s19, 4
      %s29 = sphi 0, %s31
      %s32 = sphi 0, %s29
      %s33 = sphi 0, %s32
      %s49 = sphi 0, %s33
      %s53 = sphi 0, %s53
      %s55 = sphi 0, %s53
      %s56 = sphi 0, %s55
      %s70 = sphi 0, %s56
      %s74 = sphi 0, %s74
      %s76 = sphi 0, %s74
      %s77 = sphi 0, %s76
      %s91 = sphi 0, %s77
      %s95 = sphi 0, %s95
      %s97 = sphi 0, %s95
      %s98 = sphi 0, %s97
      %s112 = sphi 0, %s98
      %s116 = sphi 0, %s116
      %s118 = sphi 0, %s116
      %s119 = sphi 0, %s118
      %s133 = sphi 0, %s119
      %s137 = sphi 0, %s137
      %s139 = sphi 0, %s137
      %s140 = sphi 0, %s139
      %s154 = sphi 0, %s140
      %s158 = sphi 0, %s158
      %s160 = sphi 0, %s158
      %s161 = sphi 0, %s160
      %s175 = sphi 0, %s161
      %s179 = sphi 0, %s179
      %s181 = sphi 0, %s179
      %s182 = sphi 0, %s181
      %s196 = sphi 0, %s182
      %s200 = sphi 0, %s200
      %s202 = sphi 0, %s200
      %s203 = sphi 0, %s202
      %s217 = sphi 0, %s203
      %s221 = sphi 0, %s221
      %s223 = sphi 0, %s221
      %s224 = sphi 0, %s223
      %s238 = sphi 0, %s224
      %s244 = sphi 0, %s246
      %s247 = sphi 0, %s244
      %s248 = sphi 0, %s247
      %s264 = sphi 0, %s248
    $region4: #{tpu_custom_call.1} parent=1 // loop_header_branch
      %22 = sbr.rel (%p20) target = $region8
    $region5: #{tpu_custom_call.1} parent=1 // loop_body
      %s24 = ssub.s32 %s19, 1
      %s25 = ssub.s32 %s19, 2
      %s26 = sadd.s32 %s19, 1
      %s27 = ssub.s32 %s19, %s26
      %p28 = scmp.eq.s32.totalorder %s27, 0
      %s30 = sadd.s32 %s29, 1
      %s31 = scalar_select %p28, %s29, %s30
      %p34 = pneg %p28
      %p35 = scmp.eq.s32.totalorder %s19, 1
      %p36 = por %p34, %p35
      %p37 = scmp.ne.s32.totalorder %s29, %s32
      %p38 = scmp.eq.s32.totalorder %s19, 0
      %p39 = por %p37, %p38
      %p40 = scmp.ne.s32.totalorder %s29, %s32
      %p41 = scmp.eq.s32.totalorder %s24, 1
      %p42 = por %p40, %p41
      %p43 = scmp.ne.s32.totalorder %s32, %s33
      %p44 = scmp.eq.s32.totalorder %s24, 0
      %p45 = por %p43, %p44
      %p46 = scmp.ne.s32.totalorder %s32, %s33
      %p47 = scmp.eq.s32.totalorder %s25, 1
      %p48 = por %p46, %p47
      %p50 = scmp.ne.s32.totalorder %s33, %s49
      %p51 = scmp.eq.s32.totalorder %s25, 0
      %p52 = por %p50, %p51
      %s54 = sadd.s32 %s53, 1
      %p57 = scmp.eq.s32.totalorder %s19, 1
      %p58 = scmp.ne.s32.totalorder %s53, %s55
      %p59 = scmp.eq.s32.totalorder %s19, 0
      %p60 = por %p58, %p59
      %p61 = scmp.ne.s32.totalorder %s53, %s55
      %p62 = scmp.eq.s32.totalorder %s24, 1
      %p63 = por %p61, %p62
      %p64 = scmp.ne.s32.totalorder %s55, %s56
      %p65 = scmp.eq.s32.totalorder %s24, 0
      %p66 = por %p64, %p65
      %p67 = scmp.ne.s32.totalorder %s55, %s56
      %p68 = scmp.eq.s32.totalorder %s25, 1
      %p69 = por %p67, %p68
      %p71 = scmp.ne.s32.totalorder %s56, %s70
      %p72 = scmp.eq.s32.totalorder %s25, 0
      %p73 = por %p71, %p72
      %s75 = sadd.s32 %s74, 1
      %p78 = scmp.eq.s32.totalorder %s19, 1
      %p79 = scmp.ne.s32.totalorder %s74, %s76
      %p80 = scmp.eq.s32.totalorder %s19, 0
      %p81 = por %p79, %p80
      %p82 = scmp.ne.s32.totalorder %s74, %s76
      %p83 = scmp.eq.s32.totalorder %s24, 1
      %p84 = por %p82, %p83
      %p85 = scmp.ne.s32.totalorder %s76, %s77
      %p86 = scmp.eq.s32.totalorder %s24, 0
      %p87 = por %p85, %p86
      %p88 = scmp.ne.s32.totalorder %s76, %s77
      %p89 = scmp.eq.s32.totalorder %s25, 1
      %p90 = por %p88, %p89
      %p92 = scmp.ne.s32.totalorder %s77, %s91
      %p93 = scmp.eq.s32.totalorder %s25, 0
      %p94 = por %p92, %p93
      %s96 = sadd.s32 %s95, 1
      %p99 = scmp.eq.s32.totalorder %s19, 1
      %p100 = scmp.ne.s32.totalorder %s95, %s97
      %p101 = scmp.eq.s32.totalorder %s19, 0
      %p102 = por %p100, %p101
      %p103 = scmp.ne.s32.totalorder %s95, %s97
      %p104 = scmp.eq.s32.totalorder %s24, 1
      %p105 = por %p103, %p104
      %p106 = scmp.ne.s32.totalorder %s97, %s98
      %p107 = scmp.eq.s32.totalorder %s24, 0
      %p108 = por %p106, %p107
      %p109 = scmp.ne.s32.totalorder %s97, %s98
      %p110 = scmp.eq.s32.totalorder %s25, 1
      %p111 = por %p109, %p110
      %p113 = scmp.ne.s32.totalorder %s98, %s112
      %p114 = scmp.eq.s32.totalorder %s25, 0
      %p115 = por %p113, %p114
      %s117 = sadd.s32 %s116, 1
      %p120 = scmp.eq.s32.totalorder %s19, 1
      %p121 = scmp.ne.s32.totalorder %s116, %s118
      %p122 = scmp.eq.s32.totalorder %s19, 0
      %p123 = por %p121, %p122
      %p124 = scmp.ne.s32.totalorder %s116, %s118
      %p125 = scmp.eq.s32.totalorder %s24, 1
      %p126 = por %p124, %p125
      %p127 = scmp.ne.s32.totalorder %s118, %s119
      %p128 = scmp.eq.s32.totalorder %s24, 0
      %p129 = por %p127, %p128
      %p130 = scmp.ne.s32.totalorder %s118, %s119
      %p131 = scmp.eq.s32.totalorder %s25, 1
      %p132 = por %p130, %p131
      %p134 = scmp.ne.s32.totalorder %s119, %s133
      %p135 = scmp.eq.s32.totalorder %s25, 0
      %p136 = por %p134, %p135
      %s138 = sadd.s32 %s137, 1
      %p141 = scmp.eq.s32.totalorder %s19, 1
      %p142 = scmp.ne.s32.totalorder %s137, %s139
      %p143 = scmp.eq.s32.totalorder %s19, 0
      %p144 = por %p142, %p143
      %p145 = scmp.ne.s32.totalorder %s137, %s139
      %p146 = scmp.eq.s32.totalorder %s24, 1
      %p147 = por %p145, %p146
      %p148 = scmp.ne.s32.totalorder %s139, %s140
      %p149 = scmp.eq.s32.totalorder %s24, 0
      %p150 = por %p148, %p149
      %p151 = scmp.ne.s32.totalorder %s139, %s140
      %p152 = scmp.eq.s32.totalorder %s25, 1
      %p153 = por %p151, %p152
      %p155 = scmp.ne.s32.totalorder %s140, %s154
      %p156 = scmp.eq.s32.totalorder %s25, 0
      %p157 = por %p155, %p156
      %s159 = sadd.s32 %s158, 1
      %p162 = scmp.eq.s32.totalorder %s19, 1
      %p163 = scmp.ne.s32.totalorder %s158, %s160
      %p164 = scmp.eq.s32.totalorder %s19, 0
      %p165 = por %p163, %p164
      %p166 = scmp.ne.s32.totalorder %s158, %s160
      %p167 = scmp.eq.s32.totalorder %s24, 1
      %p168 = por %p166, %p167
      %p169 = scmp.ne.s32.totalorder %s160, %s161
      %p170 = scmp.eq.s32.totalorder %s24, 0
      %p171 = por %p169, %p170
      %p172 = scmp.ne.s32.totalorder %s160, %s161
      %p173 = scmp.eq.s32.totalorder %s25, 1
      %p174 = por %p172, %p173
      %p176 = scmp.ne.s32.totalorder %s161, %s175
      %p177 = scmp.eq.s32.totalorder %s25, 0
      %p178 = por %p176, %p177
      %s180 = sadd.s32 %s179, 1
      %p183 = scmp.eq.s32.totalorder %s19, 1
      %p184 = scmp.ne.s32.totalorder %s179, %s181
      %p185 = scmp.eq.s32.totalorder %s19, 0
      %p186 = por %p184, %p185
      %p187 = scmp.ne.s32.totalorder %s179, %s181
      %p188 = scmp.eq.s32.totalorder %s24, 1
      %p189 = por %p187, %p188
      %p190 = scmp.ne.s32.totalorder %s181, %s182
      %p191 = scmp.eq.s32.totalorder %s24, 0
      %p192 = por %p190, %p191
      %p193 = scmp.ne.s32.totalorder %s181, %s182
      %p194 = scmp.eq.s32.totalorder %s25, 1
      %p195 = por %p193, %p194
      %p197 = scmp.ne.s32.totalorder %s182, %s196
      %p198 = scmp.eq.s32.totalorder %s25, 0
      %p199 = por %p197, %p198
      %s201 = sadd.s32 %s200, 1
      %p204 = scmp.eq.s32.totalorder %s19, 1
      %p205 = scmp.ne.s32.totalorder %s200, %s202
      %p206 = scmp.eq.s32.totalorder %s19, 0
      %p207 = por %p205, %p206
      %p208 = scmp.ne.s32.totalorder %s200, %s202
      %p209 = scmp.eq.s32.totalorder %s24, 1
      %p210 = por %p208, %p209
      %p211 = scmp.ne.s32.totalorder %s202, %s203
      %p212 = scmp.eq.s32.totalorder %s24, 0
      %p213 = por %p211, %p212
      %p214 = scmp.ne.s32.totalorder %s202, %s203
      %p215 = scmp.eq.s32.totalorder %s25, 1
      %p216 = por %p214, %p215
      %p218 = scmp.ne.s32.totalorder %s203, %s217
      %p219 = scmp.eq.s32.totalorder %s25, 0
      %p220 = por %p218, %p219
      %s222 = sadd.s32 %s221, 1
      %p225 = scmp.eq.s32.totalorder %s19, 1
      %p226 = scmp.ne.s32.totalorder %s221, %s223
      %p227 = scmp.eq.s32.totalorder %s19, 0
      %p228 = por %p226, %p227
      %p229 = scmp.ne.s32.totalorder %s221, %s223
      %p230 = scmp.eq.s32.totalorder %s24, 1
      %p231 = por %p229, %p230
      %p232 = scmp.ne.s32.totalorder %s223, %s224
      %p233 = scmp.eq.s32.totalorder %s24, 0
      %p234 = por %p232, %p233
      %p235 = scmp.ne.s32.totalorder %s223, %s224
      %p236 = scmp.eq.s32.totalorder %s25, 1
      %p237 = por %p235, %p236
      %p239 = scmp.ne.s32.totalorder %s224, %s238
      %p240 = scmp.eq.s32.totalorder %s25, 0
      %p241 = por %p239, %p240
      %s242 = ssub.s32 %s19, %s26
      %p243 = scmp.eq.s32.totalorder %s242, 0
      %s245 = sadd.s32 %s244, 1
      %s246 = scalar_select %p243, %s244, %s245
      %p249 = pneg %p243
      %p250 = scmp.eq.s32.totalorder %s19, 1
      %p251 = por %p249, %p250
      %p252 = scmp.ne.s32.totalorder %s244, %s247
      %p253 = scmp.eq.s32.totalorder %s19, 0
      %p254 = por %p252, %p253
      %p255 = scmp.ne.s32.totalorder %s244, %s247
      %p256 = scmp.eq.s32.totalorder %s24, 1
      %p257 = por %p255, %p256
      %p258 = scmp.ne.s32.totalorder %s247, %s248
      %p259 = scmp.eq.s32.totalorder %s24, 0
      %p260 = por %p258, %p259
      %p261 = scmp.ne.s32.totalorder %s247, %s248
      %p262 = scmp.eq.s32.totalorder %s25, 1
      %p263 = por %p261, %p262
      %p265 = scmp.ne.s32.totalorder %s248, %s264
      %p266 = scmp.eq.s32.totalorder %s25, 0
      %p267 = por %p265, %p266
      %p268 = scmp.le.s32.totalorder 1, %s19
      %p269 = scmp.lt.s32.totalorder %s19, 3
      %p270 = pnand %p268, %p269
      %p271 = pneg %p270
      // Predicated region
      $region9: #{tpu_custom_call.1} parent=5 // pred_check
        _
      $region10: #{tpu_custom_call.1} parent=5 // pred_check_branch
        %273 = sbr.rel (%p270) target = $region12
      $region11: #{tpu_custom_call.1} parent=5 // pred_region
        %s274 = ssub.s32 %s19, 1
        // Predicated region
        $region13: #{tpu_custom_call.1} parent=11 // pred_check
          %p275 = pneg %p66
        $region14: #{tpu_custom_call.1} parent=11 // pred_check_branch
          %277 = sbr.rel (%p275) target = $region16
        $region15: #{tpu_custom_call.1} parent=11 // pred_region
          _
        $region16: #{tpu_custom_call.1} parent=11 // pred_fallthru
          _
        // Predicated region
        $region17: #{tpu_custom_call.1} parent=11 // pred_check
          %p278 = pneg %p87
        $region18: #{tpu_custom_call.1} parent=11 // pred_check_branch
          %280 = sbr.rel (%p278) target = $region20
        $region19: #{tpu_custom_call.1} parent=11 // pred_region
          _
        $region20: #{tpu_custom_call.1} parent=11 // pred_fallthru
          _
        // Predicated region
        $region21: #{tpu_custom_call.1} parent=11 // pred_check
          %p281 = pneg %p108
        $region22: #{tpu_custom_call.1} parent=11 // pred_check_branch
          %283 = sbr.rel (%p281) target = $region24
        $region23: #{tpu_custom_call.1} parent=11 // pred_region
          _
        $region24: #{tpu_custom_call.1} parent=11 // pred_fallthru
          _
        // Predicated region
        $region25: #{tpu_custom_call.1} parent=11 // pred_check
          %p284 = pneg %p129
        $region26: #{tpu_custom_call.1} parent=11 // pred_check_branch
          %286 = sbr.rel (%p284) target = $region28
        $region27: #{tpu_custom_call.1} parent=11 // pred_region
          _
        $region28: #{tpu_custom_call.1} parent=11 // pred_fallthru
          _
        // Predicated region
        $region29: #{tpu_custom_call.1} parent=11 // pred_check
          %p287 = pneg %p150
        $region30: #{tpu_custom_call.1} parent=11 // pred_check_branch
          %289 = sbr.rel (%p287) target = $region32
        $region31: #{tpu_custom_call.1} parent=11 // pred_region
          _
        $region32: #{tpu_custom_call.1} parent=11 // pred_fallthru
          _
        // Predicated region
        $region33: #{tpu_custom_call.1} parent=11 // pred_check
          %p290 = pneg %p171
        $region34: #{tpu_custom_call.1} parent=11 // pred_check_branch
          %292 = sbr.rel (%p290) target = $region36
        $region35: #{tpu_custom_call.1} parent=11 // pred_region
          _
        $region36: #{tpu_custom_call.1} parent=11 // pred_fallthru
          _
        // Predicated region
        $region37: #{tpu_custom_call.1} parent=11 // pred_check
          %p293 = pneg %p192
        $region38: #{tpu_custom_call.1} parent=11 // pred_check_branch
          %295 = sbr.rel (%p293) target = $region40
        $region39: #{tpu_custom_call.1} parent=11 // pred_region
          _
        $region40: #{tpu_custom_call.1} parent=11 // pred_fallthru
          _
        // Predicated region
        $region41: #{tpu_custom_call.1} parent=11 // pred_check
          %p296 = pneg %p213
        $region42: #{tpu_custom_call.1} parent=11 // pred_check_branch
          %298 = sbr.rel (%p296) target = $region44
        $region43: #{tpu_custom_call.1} parent=11 // pred_region
          _
        $region44: #{tpu_custom_call.1} parent=11 // pred_fallthru
          _
        // Predicated region
        $region45: #{tpu_custom_call.1} parent=11 // pred_check
          %p299 = pneg %p234
        $region46: #{tpu_custom_call.1} parent=11 // pred_check_branch
          %301 = sbr.rel (%p299) target = $region48
        $region47: #{tpu_custom_call.1} parent=11 // pred_region
          _
        $region48: #{tpu_custom_call.1} parent=11 // pred_fallthru
          _
      $region12: #{tpu_custom_call.1} parent=5 // pred_fallthru
        _
      %p302 = scmp.lt.s32.totalorder %s19, 2
      // Predicated region
      $region49: #{tpu_custom_call.1} parent=5 // pred_check
        %p303 = pneg %p302
      $region50: #{tpu_custom_call.1} parent=5 // pred_check_branch
        %305 = sbr.rel (%p303) target = $region52
      $region51: #{tpu_custom_call.1} parent=5 // pred_region
        // Predicated region
        $region53: #{tpu_custom_call.1} parent=51 // pred_check
          %p306 = pneg %p39
        $region54: #{tpu_custom_call.1} parent=51 // pred_check_branch
          %308 = sbr.rel (%p306) target = $region56
        $region55: #{tpu_custom_call.1} parent=51 // pred_region
          %p309 = scmp.lt.s32.totalorder %s19, 1
          %s310 = scalar_select %p309, %s19, 1
          %s311 = smul.addr %s310, 8
          %s312 = scalar_lea.vmem %s0, %s311
        $region56: #{tpu_custom_call.1} parent=51 // pred_fallthru
          _
      $region52: #{tpu_custom_call.1} parent=5 // pred_fallthru
        _
      %p313 = scmp.le.s32.totalorder 1, %s19
      %p314 = scmp.lt.s32.totalorder %s19, 3
      %p315 = pnand %p313, %p314
      %p316 = pneg %p315
      // Predicated region
      $region57: #{tpu_custom_call.1} parent=5 // pred_check
        _
      $region58: #{tpu_custom_call.1} parent=5 // pred_check_branch
        %318 = sbr.rel (%p315) target = $region60
      $region59: #{tpu_custom_call.1} parent=5 // pred_region
        %s319 = ssub.s32 %s19, 1
        %p320 = scmp.lt.s32.totalorder %s24, 1
        %s321 = scalar_select %p320, %s24, 1
        %s322 = smul.addr %s321, 8
        %s323 = scalar_lea.vmem %s0, %s322
        %p324 = pneg %p45
        %p325 = pneg %p42
        %p326 = pneg %p66
        %p327 = pneg %p63
        %p328 = pneg %p87
        %p329 = pneg %p84
        %p330 = pneg %p108
        %p331 = pneg %p105
        %p332 = pneg %p129
        %p333 = pneg %p126
        %p334 = pneg %p150
        %p335 = pneg %p147
        %p336 = pneg %p171
        %p337 = pneg %p168
        %p338 = pneg %p192
        %p339 = pneg %p189
        %p340 = pneg %p213
        %p341 = pneg %p210
        %p342 = pneg %p234
        %p343 = pneg %p231
        %p344 = pneg %p260
        %p345 = pneg %p257
        %s346 = sand.u32 %s247, 1
        %s347 = scalar_lea.sflag [#allocation3], %s346
        %s348 = sand.u32 %s247, 1
        %s349 = smul.addr %s348, 32
        %s350 = scalar_lea.vmem [#allocation2], %s349
        %p351 = scmp.lt.s32.totalorder %s24, 1
        %s352 = scalar_select %p351, %s24, 1
        %s353 = smul.addr %s352, 8
        %s354 = scalar_lea.vmem %s0, %s353
        %v355 = vld [vmem:[%s354] sm:$0xff]
        %v356 = vld [vmem:[%s1] sm:$0xff]
        %vm357 = vcmask 64512
        %v359 = vsel %vm357, %v356, 0
        %361 = vmatpush.msra.mxu0 0.0
        %362 = vmatpush.msra.mxu0 0.0
        %363 = vmatpush.msra.mxu0 0.0
        %364 = vmatpush.msra.mxu0 0.0
        %365 = vmatpush.msra.mxu0 0.0
        %366 = vmatpush.msra.mxu0 0.0
        %367 = vmatpush.msra.mxu0 0.0
        %368 = vmatpush.msra.mxu0 0.0
        %369 = vmatpush.msra.mxu0 0.0
        %370 = vmatpush.msra.mxu0 0.0
        %371 = vmatpush.msra.mxu0 0.0
        %372 = vmatpush.msra.mxu0 0.0
        %373 = vmatpush.msra.mxu0 0.0
        %374 = vmatpush.msra.mxu0 0.0
        %375 = vmatpush.msra.mxu0 0.0
        %376 = vmatpush.msra.mxu0 %v355
        %377 = vmatmul.f32.gmra.mxu0 %v359
        %v378 = vpop.f32.mrf.mxu0
        %v379 = vadd.f32 0.0, %v378
        %380 = vdwg.mxu0
        %s381 = scalar_lea.vmem %s1, 8
        %v382 = vld [vmem:[%s381] sm:$0xff]
        %v384 = vsel %vm357, %v382, 0
        %386 = vmatpush.msra.mxu0 0.0
        %387 = vmatpush.msra.mxu0 0.0
        %388 = vmatpush.msra.mxu0 0.0
        %389 = vmatpush.msra.mxu0 0.0
        %390 = vmatpush.msra.mxu0 0.0
        %391 = vmatpush.msra.mxu0 0.0
        %392 = vmatpush.msra.mxu0 0.0
        %393 = vmatpush.msra.mxu0 0.0
        %394 = vmatpush.msra.mxu0 0.0
        %395 = vmatpush.msra.mxu0 0.0
        %396 = vmatpush.msra.mxu0 0.0
        %397 = vmatpush.msra.mxu0 0.0
        %398 = vmatpush.msra.mxu0 0.0
        %399 = vmatpush.msra.mxu0 0.0
        %400 = vmatpush.msra.mxu0 0.0
        %401 = vmatpush.msra.mxu0 %v355
        %402 = vmatmul.f32.gmra.mxu0 %v384
        %v403 = vpop.f32.mrf.mxu0
        %v404 = vadd.f32 0.0, %v403
        %405 = vdwg.mxu0
        %s406 = scalar_lea.vmem %s1, 16
        %v407 = vld [vmem:[%s406] sm:$0xff]
        %v409 = vsel %vm357, %v407, 0
        %411 = vmatpush.msra.mxu0 0.0
        %412 = vmatpush.msra.mxu0 0.0
        %413 = vmatpush.msra.mxu0 0.0
        %414 = vmatpush.msra.mxu0 0.0
        %415 = vmatpush.msra.mxu0 0.0
        %416 = vmatpush.msra.mxu0 0.0
        %417 = vmatpush.msra.mxu0 0.0
        %418 = vmatpush.msra.mxu0 0.0
        %419 = vmatpush.msra.mxu0 0.0
        %420 = vmatpush.msra.mxu0 0.0
        %421 = vmatpush.msra.mxu0 0.0
        %422 = vmatpush.msra.mxu0 0.0
        %423 = vmatpush.msra.mxu0 0.0
        %424 = vmatpush.msra.mxu0 0.0
        %425 = vmatpush.msra.mxu0 0.0
        %426 = vmatpush.msra.mxu0 %v355
        %427 = vmatmul.f32.gmra.mxu0 %v409
        %v428 = vpop.f32.mrf.mxu0
        %v429 = vadd.f32 0.0, %v428
        %430 = vdwg.mxu0
        %v431 = vlaneseq
        %v432 = vand.u32 %v431, 127
        %vm433 = vcmp.eq.s32.totalorder %v432, 0
        %434 = vrot.lane.b32.xlu0 %v379, 1
        %v435 = vpop.permute.xlu0 %434
        %v436 = vsel %vm433, 0.0, %v435
        %vm437 = vcmp.eq.s32.totalorder %v432, 127
        %438 = vrot.lane.b32.xlu0 %v429, 127
        %v439 = vpop.permute.xlu0 %438
        %v440 = vsel %vm437, 0.0, %v439
        %v441 = vadd.f32 %v436, %v404
        %v442 = vadd.f32 %v441, %v440
        %443 = vadd.xlane.f32.xlu0 %v442
        %v444 = vpop.xlane.xlu0 %443
        %v445 = vrot.slane %v444, 4
        %v446 = vadd.f32 %v444, %v445
        %v447 = vrot.slane %v446, 2
        %v448 = vadd.f32 %v446, %v447
        %v449 = vrot.slane %v448, 1
        %v450 = vadd.f32 %v448, %v449
        %s451 = vtos %v450
        %v452 = vrcp.pop 1024.0
        %v453 = vmul.f32 1024.0, %v452
        %v454 = vsub.f32 1.0, %v453
        %v455 = vmul.f32 %v452, %v454
        %v456 = vadd.f32 %v452, %v455
        %vm457 = vweird.f32 %v452
        %v458 = vsel %vm457, %v452, %v456
        %s459 = vtos %v458
        %s460 = smul.f32 %s451, %s459
        %v461 = vstv %s460
        %v462 = vsub.f32 %v442, %v461
        %v463 = vmul.f32 %v462, %v462
        %464 = vadd.xlane.f32.xlu0 %v463
        %v465 = vpop.xlane.xlu0 %464
        %v466 = vrot.slane %v465, 4
        %v467 = vadd.f32 %v465, %v466
        %v468 = vrot.slane %v467, 2
        %v469 = vadd.f32 %v467, %v468
        %v470 = vrot.slane %v469, 1
        %v471 = vadd.f32 %v469, %v470
        %s472 = vtos %v471
        %v473 = vrcp.pop 1024.0
        %v474 = vmul.f32 1024.0, %v473
        %v475 = vsub.f32 1.0, %v474
        %v476 = vmul.f32 %v473, %v475
        %v477 = vadd.f32 %v473, %v476
        %vm478 = vweird.f32 %v473
        %v479 = vsel %vm478, %v473, %v477
        %s480 = vtos %v479
        %s481 = smul.f32 %s472, %s480
        %s482 = sadd.f32 %s481, 1e-05
        %v483 = vstv %s482
        %v484 = vrsqrt.pop %v483
        %v485 = vmul.f32 %v484, %v483
        %v486 = vmul.f32 %v485, %v484
        %v487 = vmul.f32 0.5, %v486
        %v488 = vsub.f32 1.5, %v487
        %v489 = vmul.f32 %v484, %v488
        %vm490 = vweird.f32 %v483
        %vm491 = vweird.f32 %v484
        %vm492 = vmor %vm490, %vm491
        %v493 = vsel %vm492, %v484, %v489
        %s494 = vtos %v493
        %v495 = vstv %s494
        %v496 = vmul.f32 %v462, %v495
        %v497 = vld [vmem:[%s2] sm:$0xff]
        %499 = vset.pattern.permute.xlu0 0
        %500 = vperm.xlu0 %499, %v497
        %v501 = vpop.permute.xlu0 %500
        %v503 = vmul.f32 %v496, %v501
        %v504 = vld [vmem:[%s3] sm:$0xff]
        %506 = vset.pattern.permute.xlu0 0
        %507 = vperm.xlu0 %506, %v504
        %v508 = vpop.permute.xlu0 %507
        %v510 = vadd.f32 %v503, %v508
        %v511 = vmul.f32 %v510, 0.5
        %v512 = vmul.f32 %v510, 0.70710677
        %v513 = vmul.f32 %v512, %v512
        %v514 = vmin.f32 16.0, %v513
        %v515 = vmul.f32 %v514, 2.1237322e-06
        %v516 = vadd.f32 %v515, 0.00028619796
        %v517 = vmul.f32 %v514, %v516
        %v518 = vadd.f32 %v517, 0.0036580483
        %v519 = vmul.f32 %v514, %v518
        %v520 = vadd.f32 %v519, 0.05243302
        %v521 = vmul.f32 %v514, %v520
        %v522 = vadd.f32 %v521, 0.18741608
        %v523 = vmul.f32 %v514, %v522
        %v524 = vadd.f32 %v523, 1.1283791
        %v525 = vmul.f32 %v512, %v524
        %v526 = vmul.f32 %v514, 3.8918573e-05
        %v527 = vadd.f32 %v526, 0.001143296
        %v528 = vmul.f32 %v514, %v527
        %v529 = vadd.f32 %v528, 0.014752088
        %v530 = vmul.f32 %v514, %v529
        %v531 = vadd.f32 %v530, 0.112945676
        %v532 = vmul.f32 %v514, %v531
        %v533 = vadd.f32 %v532, 0.4994258
        %v534 = vmul.f32 %v514, %v533
        %v535 = vadd.f32 %v534, 1.0
        %v536 = vrcp.pop %v535
        %v537 = vmul.f32 %v535, %v536
        %v538 = vsub.f32 1.0, %v537
        %v539 = vmul.f32 %v536, %v538
        %v540 = vadd.f32 %v536, %v539
        %vm541 = vweird.f32 %v535
        %vm542 = vweird.f32 %v536
        %vm543 = vmor %vm541, %vm542
        %v544 = vsel %vm543, %v536, %v540
        %v545 = vand.u32 2147483647, %v535
        %vm546 = vcmp.eq.f32.partialorder %v545, 8.507059e+37
        %v547 = vand.u32 %v535, 2147483648
        %v548 = vor.u32 1.1754944e-38, %v547
        %v549 = vsel %vm546, %v548, %v544
        %v550 = vmul.f32 %v525, %v549
        %v551 = vmin.f32 %v550, 1.0
        %v552 = vmax.f32 %v551, -1.0
        %v553 = vadd.f32 %v552, 1.0
        %v554 = vmul.f32 %v511, %v553
        %v555 = vld [vmem:[%s4] sm:$0xff]
        %v556 = vld [vmem:[%s4 + $0x8] sm:$0xff]
        %v558 = vsel %vm357, %v555, 0
        %v561 = vsel %vm357, %v556, 0
        %563 = vmatpush.msra.mxu0 0.0
        %564 = vmatpush.msra.mxu0 0.0
        %565 = vmatpush.msra.mxu0 0.0
        %566 = vmatpush.msra.mxu0 0.0
        %567 = vmatpush.msra.mxu0 0.0
        %568 = vmatpush.msra.mxu0 0.0
        %569 = vmatpush.msra.mxu0 0.0
        %570 = vmatpush.msra.mxu0 0.0
        %571 = vmatpush.msra.mxu0 0.0
        %572 = vmatpush.msra.mxu0 0.0
        %573 = vmatpush.msra.mxu0 0.0
        %574 = vmatpush.msra.mxu0 0.0
        %575 = vmatpush.msra.mxu0 0.0
        %576 = vmatpush.msra.mxu0 0.0
        %577 = vmatpush.msra.mxu0 0.0
        %578 = vmatpush.msra.mxu0 %v554
        %579 = vmatmul.f32.gmra.mxu0 %v558
        %v580 = vpop.f32.mrf.mxu0
        %v581 = vadd.f32 0.0, %v580
        %582 = vmatmul.f32.gmra.mxu0 %v561
        %v583 = vpop.f32.mrf.mxu0
        %v584 = vadd.f32 0.0, %v583
        %585 = vdwg.mxu0
        %s586 = scalar_lea.vmem %s4, 16
        %v587 = vld [vmem:[%s586] sm:$0xff]
        %v588 = vld [vmem:[%s586 + $0x8] sm:$0xff]
        %v590 = vsel %vm357, %v587, 0
        %v593 = vsel %vm357, %v588, 0
        %595 = vmatpush.msra.mxu0 0.0
        %596 = vmatpush.msra.mxu0 0.0
        %597 = vmatpush.msra.mxu0 0.0
        %598 = vmatpush.msra.mxu0 0.0
        %599 = vmatpush.msra.mxu0 0.0
        %600 = vmatpush.msra.mxu0 0.0
        %601 = vmatpush.msra.mxu0 0.0
        %602 = vmatpush.msra.mxu0 0.0
        %603 = vmatpush.msra.mxu0 0.0
        %604 = vmatpush.msra.mxu0 0.0
        %605 = vmatpush.msra.mxu0 0.0
        %606 = vmatpush.msra.mxu0 0.0
        %607 = vmatpush.msra.mxu0 0.0
        %608 = vmatpush.msra.mxu0 0.0
        %609 = vmatpush.msra.mxu0 0.0
        %610 = vmatpush.msra.mxu0 %v554
        %611 = vmatmul.f32.gmra.mxu0 %v590
        %v612 = vpop.f32.mrf.mxu0
        %v613 = vadd.f32 0.0, %v612
        %614 = vmatmul.f32.gmra.mxu0 %v593
        %v615 = vpop.f32.mrf.mxu0
        %v616 = vadd.f32 0.0, %v615
        %617 = vdwg.mxu0
        %s618 = scalar_lea.vmem %s4, 32
        %v619 = vld [vmem:[%s618] sm:$0xff]
        %v620 = vld [vmem:[%s618 + $0x8] sm:$0xff]
        %v622 = vsel %vm357, %v619, 0
        %v625 = vsel %vm357, %v620, 0
        %627 = vmatpush.msra.mxu0 0.0
        %628 = vmatpush.msra.mxu0 0.0
        %629 = vmatpush.msra.mxu0 0.0
        %630 = vmatpush.msra.mxu0 0.0
        %631 = vmatpush.msra.mxu0 0.0
        %632 = vmatpush.msra.mxu0 0.0
        %633 = vmatpush.msra.mxu0 0.0
        %634 = vmatpush.msra.mxu0 0.0
        %635 = vmatpush.msra.mxu0 0.0
        %636 = vmatpush.msra.mxu0 0.0
        %637 = vmatpush.msra.mxu0 0.0
        %638 = vmatpush.msra.mxu0 0.0
        %639 = vmatpush.msra.mxu0 0.0
        %640 = vmatpush.msra.mxu0 0.0
        %641 = vmatpush.msra.mxu0 0.0
        %642 = vmatpush.msra.mxu0 %v554
        %643 = vmatmul.f32.gmra.mxu0 %v622
        %v644 = vpop.f32.mrf.mxu0
        %v645 = vadd.f32 0.0, %v644
        %646 = vmatmul.f32.gmra.mxu0 %v625
        %v647 = vpop.f32.mrf.mxu0
        %v648 = vadd.f32 0.0, %v647
        %649 = vdwg.mxu0
        %650 = vrot.lane.b32.xlu0 %v581, 1
        %v651 = vpop.permute.xlu0 %650
        %652 = vrot.lane.b32.xlu0 %v584, 1
        %v653 = vpop.permute.xlu0 %652
        %v654 = vsel %vm433, 0.0, %v651
        %v655 = vsel %vm433, 0.0, %v653
        %656 = vrot.lane.b32.xlu0 %v645, 127
        %v657 = vpop.permute.xlu0 %656
        %658 = vrot.lane.b32.xlu0 %v648, 127
        %v659 = vpop.permute.xlu0 %658
        %v660 = vsel %vm437, 0.0, %v657
        %v661 = vsel %vm437, 0.0, %v659
        %v662 = vadd.f32 %v654, %v613
        %v663 = vadd.f32 %v655, %v616
        %v664 = vadd.f32 %v662, %v660
        %v665 = vadd.f32 %v663, %v661
        %v666 = vadd.f32 %v664, %v665
        %667 = vadd.xlane.f32.xlu0 %v666
        %v668 = vpop.xlane.xlu0 %667
        %v669 = vrot.slane %v668, 4
        %v670 = vadd.f32 %v668, %v669
        %v671 = vrot.slane %v670, 2
        %v672 = vadd.f32 %v670, %v671
        %v673 = vrot.slane %v672, 1
        %v674 = vadd.f32 %v672, %v673
        %s675 = vtos %v674
        %v676 = vrcp.pop 2048.0
        %v677 = vmul.f32 2048.0, %v676
        %v678 = vsub.f32 1.0, %v677
        %v679 = vmul.f32 %v676, %v678
        %v680 = vadd.f32 %v676, %v679
        %vm681 = vweird.f32 %v676
        %v682 = vsel %vm681, %v676, %v680
        %s683 = vtos %v682
        %s684 = smul.f32 %s675, %s683
        %v685 = vstv %s684
        %v686 = vsub.f32 %v664, %v685
        %v687 = vsub.f32 %v665, %v685
        %v688 = vmul.f32 %v686, %v686
        %v689 = vmul.f32 %v687, %v687
        %v690 = vadd.f32 %v688, %v689
        %691 = vadd.xlane.f32.xlu0 %v690
        %v692 = vpop.xlane.xlu0 %691
        %v693 = vrot.slane %v692, 4
        %v694 = vadd.f32 %v692, %v693
        %v695 = vrot.slane %v694, 2
        %v696 = vadd.f32 %v694, %v695
        %v697 = vrot.slane %v696, 1
        %v698 = vadd.f32 %v696, %v697
        %s699 = vtos %v698
        %v700 = vrcp.pop 2048.0
        %v701 = vmul.f32 2048.0, %v700
        %v702 = vsub.f32 1.0, %v701
        %v703 = vmul.f32 %v700, %v702
        %v704 = vadd.f32 %v700, %v703
        %vm705 = vweird.f32 %v700
        %v706 = vsel %vm705, %v700, %v704
        %s707 = vtos %v706
        %s708 = smul.f32 %s699, %s707
        %s709 = sadd.f32 %s708, 1e-05
        %v710 = vstv %s709
        %v711 = vrsqrt.pop %v710
        %v712 = vmul.f32 %v711, %v710
        %v713 = vmul.f32 %v712, %v711
        %v714 = vmul.f32 0.5, %v713
        %v715 = vsub.f32 1.5, %v714
        %v716 = vmul.f32 %v711, %v715
        %vm717 = vweird.f32 %v710
        %vm718 = vweird.f32 %v711
        %vm719 = vmor %vm717, %vm718
        %v720 = vsel %vm719, %v711, %v716
        %s721 = vtos %v720
        %v722 = vstv %s721
        %v723 = vmul.f32 %v686, %v722
        %v724 = vmul.f32 %v687, %v722
        %v725 = vld [vmem:[%s5] sm:$0xff]
        %v726 = vld [vmem:[%s5 + $0x8] sm:$0xff]
        %728 = vset.pattern.permute.xlu0 0
        %729 = vperm.xlu0 %728, %v725
        %v730 = vpop.permute.xlu0 %729
        %733 = vset.pattern.permute.xlu0 0
        %734 = vperm.xlu0 %733, %v726
        %v735 = vpop.permute.xlu0 %734
        %v737 = vmul.f32 %v723, %v730
        %v738 = vmul.f32 %v724, %v735
        %v739 = vld [vmem:[%s6] sm:$0xff]
        %v740 = vld [vmem:[%s6 + $0x8] sm:$0xff]
        %742 = vset.pattern.permute.xlu0 0
        %743 = vperm.xlu0 %742, %v739
        %v744 = vpop.permute.xlu0 %743
        %747 = vset.pattern.permute.xlu0 0
        %748 = vperm.xlu0 %747, %v740
        %v749 = vpop.permute.xlu0 %748
        %v751 = vadd.f32 %v737, %v744
        %v752 = vadd.f32 %v738, %v749
        %v753 = vmul.f32 %v751, 0.5
        %v754 = vmul.f32 %v752, 0.5
        %v755 = vmul.f32 %v751, 0.70710677
        %v756 = vmul.f32 %v752, 0.70710677
        %v757 = vmul.f32 %v755, %v755
        %v758 = vmin.f32 16.0, %v757
        %v759 = vmul.f32 %v758, 2.1237322e-06
        %v760 = vadd.f32 %v759, 0.00028619796
        %v761 = vmul.f32 %v758, %v760
        %v762 = vadd.f32 %v761, 0.0036580483
        %v763 = vmul.f32 %v758, %v762
        %v764 = vadd.f32 %v763, 0.05243302
        %v765 = vmul.f32 %v758, %v764
        %v766 = vadd.f32 %v765, 0.18741608
        %v767 = vmul.f32 %v758, %v766
        %v768 = vadd.f32 %v767, 1.1283791
        %v769 = vmul.f32 %v755, %v768
        %v770 = vmul.f32 %v758, 3.8918573e-05
        %v771 = vadd.f32 %v770, 0.001143296
        %v772 = vmul.f32 %v758, %v771
        %v773 = vadd.f32 %v772, 0.014752088
        %v774 = vmul.f32 %v758, %v773
        %v775 = vadd.f32 %v774, 0.112945676
        %v776 = vmul.f32 %v758, %v775
        %v777 = vadd.f32 %v776, 0.4994258
        %v778 = vmul.f32 %v758, %v777
        %v779 = vadd.f32 %v778, 1.0
        %v780 = vrcp.pop %v779
        %v781 = vmul.f32 %v779, %v780
        %v782 = vsub.f32 1.0, %v781
        %v783 = vmul.f32 %v780, %v782
        %v784 = vadd.f32 %v780, %v783
        %vm785 = vweird.f32 %v779
        %vm786 = vweird.f32 %v780
        %vm787 = vmor %vm785, %vm786
        %v788 = vsel %vm787, %v780, %v784
        %v789 = vand.u32 2147483647, %v779
        %vm790 = vcmp.eq.f32.partialorder %v789, 8.507059e+37
        %v791 = vand.u32 %v779, 2147483648
        %v792 = vor.u32 1.1754944e-38, %v791
        %v793 = vsel %vm790, %v792, %v788
        %v794 = vmul.f32 %v769, %v793
        %v795 = vmin.f32 %v794, 1.0
        %v796 = vmax.f32 %v795, -1.0
        %v797 = vmul.f32 %v756, %v756
        %v798 = vmin.f32 16.0, %v797
        %v799 = vmul.f32 %v798, 2.1237322e-06
        %v800 = vadd.f32 %v799, 0.00028619796
        %v801 = vmul.f32 %v798, %v800
        %v802 = vadd.f32 %v801, 0.0036580483
        %v803 = vmul.f32 %v798, %v802
        %v804 = vadd.f32 %v803, 0.05243302
        %v805 = vmul.f32 %v798, %v804
        %v806 = vadd.f32 %v805, 0.18741608
        %v807 = vmul.f32 %v798, %v806
        %v808 = vadd.f32 %v807, 1.1283791
        %v809 = vmul.f32 %v756, %v808
        %v810 = vmul.f32 %v798, 3.8918573e-05
        %v811 = vadd.f32 %v810, 0.001143296
        %v812 = vmul.f32 %v798, %v811
        %v813 = vadd.f32 %v812, 0.014752088
        %v814 = vmul.f32 %v798, %v813
        %v815 = vadd.f32 %v814, 0.112945676
        %v816 = vmul.f32 %v798, %v815
        %v817 = vadd.f32 %v816, 0.4994258
        %v818 = vmul.f32 %v798, %v817
        %v819 = vadd.f32 %v818, 1.0
        %v820 = vrcp.pop %v819
        %v821 = vmul.f32 %v819, %v820
        %v822 = vsub.f32 1.0, %v821
        %v823 = vmul.f32 %v820, %v822
        %v824 = vadd.f32 %v820, %v823
        %vm825 = vweird.f32 %v819
        %vm826 = vweird.f32 %v820
        %vm827 = vmor %vm825, %vm826
        %v828 = vsel %vm827, %v820, %v824
        %v829 = vand.u32 2147483647, %v819
        %vm830 = vcmp.eq.f32.partialorder %v829, 8.507059e+37
        %v831 = vand.u32 %v819, 2147483648
        %v832 = vor.u32 1.1754944e-38, %v831
        %v833 = vsel %vm830, %v832, %v828
        %v834 = vmul.f32 %v809, %v833
        %v835 = vmin.f32 %v834, 1.0
        %v836 = vmax.f32 %v835, -1.0
        %v837 = vadd.f32 %v796, 1.0
        %v838 = vadd.f32 %v836, 1.0
        %v839 = vmul.f32 %v753, %v837
        %v840 = vmul.f32 %v754, %v838
        %v841 = vld [vmem:[%s7] sm:$0xff]
        %v842 = vld [vmem:[%s7 + $0x8] sm:$0xff]
        %v843 = vld [vmem:[%s7 + $0x10] sm:$0xff]
        %v844 = vld [vmem:[%s7 + $0x18] sm:$0xff]
        %vm845 = vcmask 130048
        %v847 = vsel %vm845, %v841, 0
        %v850 = vsel %vm845, %v842, 0
        %v853 = vsel %vm845, %v843, 0
        %v856 = vsel %vm845, %v844, 0
        %858 = vmatpush.msra.mxu0 0.0
        %859 = vmatpush.msra.mxu0 0.0
        %860 = vmatpush.msra.mxu0 0.0
        %861 = vmatpush.msra.mxu0 0.0
        %862 = vmatpush.msra.mxu0 0.0
        %863 = vmatpush.msra.mxu0 0.0
        %864 = vmatpush.msra.mxu0 0.0
        %865 = vmatpush.msra.mxu0 0.0
        %866 = vmatpush.msra.mxu0 0.0
        %867 = vmatpush.msra.mxu0 0.0
        %868 = vmatpush.msra.mxu0 0.0
        %869 = vmatpush.msra.mxu0 0.0
        %870 = vmatpush.msra.mxu0 0.0
        %871 = vmatpush.msra.mxu0 0.0
        %872 = vmatpush.msra.mxu0 %v840
        %873 = vmatpush.msra.mxu0 %v839
        %874 = vmatmul.f32.gmra.mxu0 %v847
        %v875 = vpop.f32.mrf.mxu0
        %v876 = vadd.f32 0.0, %v875
        %877 = vmatmul.f32.gmra.mxu0 %v850
        %v878 = vpop.f32.mrf.mxu0
        %v879 = vadd.f32 0.0, %v878
        %880 = vmatmul.f32.gmra.mxu0 %v853
        %v881 = vpop.f32.mrf.mxu0
        %v882 = vadd.f32 0.0, %v881
        %883 = vmatmul.f32.gmra.mxu0 %v856
        %v884 = vpop.f32.mrf.mxu0
        %v885 = vadd.f32 0.0, %v884
        %886 = vdwg.mxu0
        %s887 = scalar_lea.vmem %s7, 32
        %v888 = vld [vmem:[%s887] sm:$0xff]
        %v889 = vld [vmem:[%s887 + $0x8] sm:$0xff]
        %v890 = vld [vmem:[%s887 + $0x10] sm:$0xff]
        %v891 = vld [vmem:[%s887 + $0x18] sm:$0xff]
        %v893 = vsel %vm845, %v888, 0
        %v896 = vsel %vm845, %v889, 0
        %v899 = vsel %vm845, %v890, 0
        %v902 = vsel %vm845, %v891, 0
        %904 = vmatpush.msra.mxu0 0.0
        %905 = vmatpush.msra.mxu0 0.0
        %906 = vmatpush.msra.mxu0 0.0
        %907 = vmatpush.msra.mxu0 0.0
        %908 = vmatpush.msra.mxu0 0.0
        %909 = vmatpush.msra.mxu0 0.0
        %910 = vmatpush.msra.mxu0 0.0
        %911 = vmatpush.msra.mxu0 0.0
        %912 = vmatpush.msra.mxu0 0.0
        %913 = vmatpush.msra.mxu0 0.0
        %914 = vmatpush.msra.mxu0 0.0
        %915 = vmatpush.msra.mxu0 0.0
        %916 = vmatpush.msra.mxu0 0.0
        %917 = vmatpush.msra.mxu0 0.0
        %918 = vmatpush.msra.mxu0 %v840
        %919 = vmatpush.msra.mxu0 %v839
        %920 = vmatmul.f32.gmra.mxu0 %v893
        %v921 = vpop.f32.mrf.mxu0
        %v922 = vadd.f32 0.0, %v921
        %923 = vmatmul.f32.gmra.mxu0 %v896
        %v924 = vpop.f32.mrf.mxu0
        %v925 = vadd.f32 0.0, %v924
        %926 = vmatmul.f32.gmra.mxu0 %v899
        %v927 = vpop.f32.mrf.mxu0
        %v928 = vadd.f32 0.0, %v927
        %929 = vmatmul.f32.gmra.mxu0 %v902
        %v930 = vpop.f32.mrf.mxu0
        %v931 = vadd.f32 0.0, %v930
        %932 = vdwg.mxu0
        %s933 = scalar_lea.vmem %s7, 64
        %v934 = vld [vmem:[%s933] sm:$0xff]
        %v935 = vld [vmem:[%s933 + $0x8] sm:$0xff]
        %v936 = vld [vmem:[%s933 + $0x10] sm:$0xff]
        %v937 = vld [vmem:[%s933 + $0x18] sm:$0xff]
        %v939 = vsel %vm845, %v934, 0
        %v942 = vsel %vm845, %v935, 0
        %v945 = vsel %vm845, %v936, 0
        %v948 = vsel %vm845, %v937, 0
        %950 = vmatpush.msra.mxu0 0.0
        %951 = vmatpush.msra.mxu0 0.0
        %952 = vmatpush.msra.mxu0 0.0
        %953 = vmatpush.msra.mxu0 0.0
        %954 = vmatpush.msra.mxu0 0.0
        %955 = vmatpush.msra.mxu0 0.0
        %956 = vmatpush.msra.mxu0 0.0
        %957 = vmatpush.msra.mxu0 0.0
        %958 = vmatpush.msra.mxu0 0.0
        %959 = vmatpush.msra.mxu0 0.0
        %960 = vmatpush.msra.mxu0 0.0
        %961 = vmatpush.msra.mxu0 0.0
        %962 = vmatpush.msra.mxu0 0.0
        %963 = vmatpush.msra.mxu0 0.0
        %964 = vmatpush.msra.mxu0 %v840
        %965 = vmatpush.msra.mxu0 %v839
        %966 = vmatmul.f32.gmra.mxu0 %v939
        %v967 = vpop.f32.mrf.mxu0
        %v968 = vadd.f32 0.0, %v967
        %969 = vmatmul.f32.gmra.mxu0 %v942
        %v970 = vpop.f32.mrf.mxu0
        %v971 = vadd.f32 0.0, %v970
        %972 = vmatmul.f32.gmra.mxu0 %v945
        %v973 = vpop.f32.mrf.mxu0
        %v974 = vadd.f32 0.0, %v973
        %975 = vmatmul.f32.gmra.mxu0 %v948
        %v976 = vpop.f32.mrf.mxu0
        %v977 = vadd.f32 0.0, %v976
        %978 = vdwg.mxu0
        %979 = vrot.lane.b32.xlu0 %v876, 1
        %v980 = vpop.permute.xlu0 %979
        %981 = vrot.lane.b32.xlu0 %v879, 1
        %v982 = vpop.permute.xlu0 %981
        %983 = vrot.lane.b32.xlu0 %v882, 1
        %v984 = vpop.permute.xlu0 %983
        %985 = vrot.lane.b32.xlu0 %v885, 1
        %v986 = vpop.permute.xlu0 %985
        %v987 = vsel %vm433, 0.0, %v980
        %v988 = vsel %vm433, 0.0, %v982
        %v989 = vsel %vm433, 0.0, %v984
        %v990 = vsel %vm433, 0.0, %v986
        %991 = vrot.lane.b32.xlu0 %v968, 127
        %v992 = vpop.permute.xlu0 %991
        %993 = vrot.lane.b32.xlu0 %v971, 127
        %v994 = vpop.permute.xlu0 %993
        %995 = vrot.lane.b32.xlu0 %v974, 127
        %v996 = vpop.permute.xlu0 %995
        %997 = vrot.lane.b32.xlu0 %v977, 127
        %v998 = vpop.permute.xlu0 %997
        %v999 = vsel %vm437, 0.0, %v992
        %v1000 = vsel %vm437, 0.0, %v994
        %v1001 = vsel %vm437, 0.0, %v996
        %v1002 = vsel %vm437, 0.0, %v998
        %v1003 = vadd.f32 %v987, %v922
        %v1004 = vadd.f32 %v988, %v925
        %v1005 = vadd.f32 %v989, %v928
        %v1006 = vadd.f32 %v990, %v931
        %v1007 = vadd.f32 %v1003, %v999
        %v1008 = vadd.f32 %v1004, %v1000
        %v1009 = vadd.f32 %v1005, %v1001
        %v1010 = vadd.f32 %v1006, %v1002
        %v1011 = vadd.f32 %v1007, %v1008
        %v1012 = vadd.f32 %v1011, %v1009
        %v1013 = vadd.f32 %v1012, %v1010
        %1014 = vadd.xlane.f32.xlu0 %v1013
        %v1015 = vpop.xlane.xlu0 %1014
        %v1016 = vrot.slane %v1015, 4
        %v1017 = vadd.f32 %v1015, %v1016
        %v1018 = vrot.slane %v1017, 2
        %v1019 = vadd.f32 %v1017, %v1018
        %v1020 = vrot.slane %v1019, 1
        %v1021 = vadd.f32 %v1019, %v1020
        %s1022 = vtos %v1021
        %v1023 = vrcp.pop 4096.0
        %v1024 = vmul.f32 4096.0, %v1023
        %v1025 = vsub.f32 1.0, %v1024
        %v1026 = vmul.f32 %v1023, %v1025
        %v1027 = vadd.f32 %v1023, %v1026
        %vm1028 = vweird.f32 %v1023
        %v1029 = vsel %vm1028, %v1023, %v1027
        %s1030 = vtos %v1029
        %s1031 = smul.f32 %s1022, %s1030
        %v1032 = vstv %s1031
        %v1033 = vsub.f32 %v1007, %v1032
        %v1034 = vsub.f32 %v1008, %v1032
        %v1035 = vsub.f32 %v1009, %v1032
        %v1036 = vsub.f32 %v1010, %v1032
        %v1037 = vmul.f32 %v1033, %v1033
        %v1038 = vmul.f32 %v1034, %v1034
        %v1039 = vmul.f32 %v1035, %v1035
        %v1040 = vmul.f32 %v1036, %v1036
        %v1041 = vadd.f32 %v1037, %v1038
        %v1042 = vadd.f32 %v1041, %v1039
        %v1043 = vadd.f32 %v1042, %v1040
        %1044 = vadd.xlane.f32.xlu0 %v1043
        %v1045 = vpop.xlane.xlu0 %1044
        %v1046 = vrot.slane %v1045, 4
        %v1047 = vadd.f32 %v1045, %v1046
        %v1048 = vrot.slane %v1047, 2
        %v1049 = vadd.f32 %v1047, %v1048
        %v1050 = vrot.slane %v1049, 1
        %v1051 = vadd.f32 %v1049, %v1050
        %s1052 = vtos %v1051
        %v1053 = vrcp.pop 4096.0
        %v1054 = vmul.f32 4096.0, %v1053
        %v1055 = vsub.f32 1.0, %v1054
        %v1056 = vmul.f32 %v1053, %v1055
        %v1057 = vadd.f32 %v1053, %v1056
        %vm1058 = vweird.f32 %v1053
        %v1059 = vsel %vm1058, %v1053, %v1057
        %s1060 = vtos %v1059
        %s1061 = smul.f32 %s1052, %s1060
        %s1062 = sadd.f32 %s1061, 1e-05
        %v1063 = vstv %s1062
        %v1064 = vrsqrt.pop %v1063
        %v1065 = vmul.f32 %v1064, %v1063
        %v1066 = vmul.f32 %v1065, %v1064
        %v1067 = vmul.f32 0.5, %v1066
        %v1068 = vsub.f32 1.5, %v1067
        %v1069 = vmul.f32 %v1064, %v1068
        %vm1070 = vweird.f32 %v1063
        %vm1071 = vweird.f32 %v1064
        %vm1072 = vmor %vm1070, %vm1071
        %v1073 = vsel %vm1072, %v1064, %v1069
        %s1074 = vtos %v1073
        %v1075 = vstv %s1074
        %v1076 = vmul.f32 %v1033, %v1075
        %v1077 = vmul.f32 %v1034, %v1075
        %v1078 = vmul.f32 %v1035, %v1075
        %v1079 = vmul.f32 %v1036, %v1075
        %v1080 = vld [vmem:[%s8] sm:$0xff]
        %v1081 = vld [vmem:[%s8 + $0x8] sm:$0xff]
        %v1082 = vld [vmem:[%s8 + $0x10] sm:$0xff]
        %v1083 = vld [vmem:[%s8 + $0x18] sm:$0xff]
        %1085 = vset.pattern.permute.xlu0 0
        %1086 = vperm.xlu0 %1085, %v1080
        %v1087 = vpop.permute.xlu0 %1086
        %1090 = vset.pattern.permute.xlu0 0
        %1091 = vperm.xlu0 %1090, %v1081
        %v1092 = vpop.permute.xlu0 %1091
        %1095 = vset.pattern.permute.xlu0 0
        %1096 = vperm.xlu0 %1095, %v1082
        %v1097 = vpop.permute.xlu0 %1096
        %1100 = vset.pattern.permute.xlu0 0
        %1101 = vperm.xlu0 %1100, %v1083
        %v1102 = vpop.permute.xlu0 %1101
        %v1104 = vmul.f32 %v1076, %v1087
        %v1105 = vmul.f32 %v1077, %v1092
        %v1106 = vmul.f32 %v1078, %v1097
        %v1107 = vmul.f32 %v1079, %v1102
        %v1108 = vld [vmem:[%s9] sm:$0xff]
        %v1109 = vld [vmem:[%s9 + $0x8] sm:$0xff]
        %v1110 = vld [vmem:[%s9 + $0x10] sm:$0xff]
        %v1111 = vld [vmem:[%s9 + $0x18] sm:$0xff]
        %1113 = vset.pattern.permute.xlu0 0
        %1114 = vperm.xlu0 %1113, %v1108
        %v1115 = vpop.permute.xlu0 %1114
        %1118 = vset.pattern.permute.xlu0 0
        %1119 = vperm.xlu0 %1118, %v1109
        %v1120 = vpop.permute.xlu0 %1119
        %1123 = vset.pattern.permute.xlu0 0
        %1124 = vperm.xlu0 %1123, %v1110
        %v1125 = vpop.permute.xlu0 %1124
        %1128 = vset.pattern.permute.xlu0 0
        %1129 = vperm.xlu0 %1128, %v1111
        %v1130 = vpop.permute.xlu0 %1129
        %v1132 = vadd.f32 %v1104, %v1115
        %v1133 = vadd.f32 %v1105, %v1120
        %v1134 = vadd.f32 %v1106, %v1125
        %v1135 = vadd.f32 %v1107, %v1130
        %v1136 = vmul.f32 %v1132, 0.5
        %v1137 = vmul.f32 %v1133, 0.5
        %v1138 = vmul.f32 %v1134, 0.5
        %v1139 = vmul.f32 %v1135, 0.5
        %v1140 = vmul.f32 %v1132, 0.70710677
        %v1141 = vmul.f32 %v1133, 0.70710677
        %v1142 = vmul.f32 %v1134, 0.70710677
        %v1143 = vmul.f32 %v1135, 0.70710677
        %v1144 = vmul.f32 %v1140, %v1140
        %v1145 = vmin.f32 16.0, %v1144
        %v1146 = vmul.f32 %v1145, 2.1237322e-06
        %v1147 = vadd.f32 %v1146, 0.00028619796
        %v1148 = vmul.f32 %v1145, %v1147
        %v1149 = vadd.f32 %v1148, 0.0036580483
        %v1150 = vmul.f32 %v1145, %v1149
        %v1151 = vadd.f32 %v1150, 0.05243302
        %v1152 = vmul.f32 %v1145, %v1151
        %v1153 = vadd.f32 %v1152, 0.18741608
        %v1154 = vmul.f32 %v1145, %v1153
        %v1155 = vadd.f32 %v1154, 1.1283791
        %v1156 = vmul.f32 %v1140, %v1155
        %v1157 = vmul.f32 %v1145, 3.8918573e-05
        %v1158 = vadd.f32 %v1157, 0.001143296
        %v1159 = vmul.f32 %v1145, %v1158
        %v1160 = vadd.f32 %v1159, 0.014752088
        %v1161 = vmul.f32 %v1145, %v1160
        %v1162 = vadd.f32 %v1161, 0.112945676
        %v1163 = vmul.f32 %v1145, %v1162
        %v1164 = vadd.f32 %v1163, 0.4994258
        %v1165 = vmul.f32 %v1145, %v1164
        %v1166 = vadd.f32 %v1165, 1.0
        %v1167 = vrcp.pop %v1166
        %v1168 = vmul.f32 %v1166, %v1167
        %v1169 = vsub.f32 1.0, %v1168
        %v1170 = vmul.f32 %v1167, %v1169
        %v1171 = vadd.f32 %v1167, %v1170
        %vm1172 = vweird.f32 %v1166
        %vm1173 = vweird.f32 %v1167
        %vm1174 = vmor %vm1172, %vm1173
        %v1175 = vsel %vm1174, %v1167, %v1171
        %v1176 = vand.u32 2147483647, %v1166
        %vm1177 = vcmp.eq.f32.partialorder %v1176, 8.507059e+37
        %v1178 = vand.u32 %v1166, 2147483648
        %v1179 = vor.u32 1.1754944e-38, %v1178
        %v1180 = vsel %vm1177, %v1179, %v1175
        %v1181 = vmul.f32 %v1156, %v1180
        %v1182 = vmin.f32 %v1181, 1.0
        %v1183 = vmax.f32 %v1182, -1.0
        %v1184 = vmul.f32 %v1141, %v1141
        %v1185 = vmin.f32 16.0, %v1184
        %v1186 = vmul.f32 %v1185, 2.1237322e-06
        %v1187 = vadd.f32 %v1186, 0.00028619796
        %v1188 = vmul.f32 %v1185, %v1187
        %v1189 = vadd.f32 %v1188, 0.0036580483
        %v1190 = vmul.f32 %v1185, %v1189
        %v1191 = vadd.f32 %v1190, 0.05243302
        %v1192 = vmul.f32 %v1185, %v1191
        %v1193 = vadd.f32 %v1192, 0.18741608
        %v1194 = vmul.f32 %v1185, %v1193
        %v1195 = vadd.f32 %v1194, 1.1283791
        %v1196 = vmul.f32 %v1141, %v1195
        %v1197 = vmul.f32 %v1185, 3.8918573e-05
        %v1198 = vadd.f32 %v1197, 0.001143296
        %v1199 = vmul.f32 %v1185, %v1198
        %v1200 = vadd.f32 %v1199, 0.014752088
        %v1201 = vmul.f32 %v1185, %v1200
        %v1202 = vadd.f32 %v1201, 0.112945676
        %v1203 = vmul.f32 %v1185, %v1202
        %v1204 = vadd.f32 %v1203, 0.4994258
        %v1205 = vmul.f32 %v1185, %v1204
        %v1206 = vadd.f32 %v1205, 1.0
        %v1207 = vrcp.pop %v1206
        %v1208 = vmul.f32 %v1206, %v1207
        %v1209 = vsub.f32 1.0, %v1208
        %v1210 = vmul.f32 %v1207, %v1209
        %v1211 = vadd.f32 %v1207, %v1210
        %vm1212 = vweird.f32 %v1206
        %vm1213 = vweird.f32 %v1207
        %vm1214 = vmor %vm1212, %vm1213
        %v1215 = vsel %vm1214, %v1207, %v1211
        %v1216 = vand.u32 2147483647, %v1206
        %vm1217 = vcmp.eq.f32.partialorder %v1216, 8.507059e+37
        %v1218 = vand.u32 %v1206, 2147483648
        %v1219 = vor.u32 1.1754944e-38, %v1218
        %v1220 = vsel %vm1217, %v1219, %v1215
        %v1221 = vmul.f32 %v1196, %v1220
        %v1222 = vmin.f32 %v1221, 1.0
        %v1223 = vmax.f32 %v1222, -1.0
        %v1224 = vmul.f32 %v1142, %v1142
        %v1225 = vmin.f32 16.0, %v1224
        %v1226 = vmul.f32 %v1225, 2.1237322e-06
        %v1227 = vadd.f32 %v1226, 0.00028619796
        %v1228 = vmul.f32 %v1225, %v1227
        %v1229 = vadd.f32 %v1228, 0.0036580483
        %v1230 = vmul.f32 %v1225, %v1229
        %v1231 = vadd.f32 %v1230, 0.05243302
        %v1232 = vmul.f32 %v1225, %v1231
        %v1233 = vadd.f32 %v1232, 0.18741608
        %v1234 = vmul.f32 %v1225, %v1233
        %v1235 = vadd.f32 %v1234, 1.1283791
        %v1236 = vmul.f32 %v1142, %v1235
        %v1237 = vmul.f32 %v1225, 3.8918573e-05
        %v1238 = vadd.f32 %v1237, 0.001143296
        %v1239 = vmul.f32 %v1225, %v1238
        %v1240 = vadd.f32 %v1239, 0.014752088
        %v1241 = vmul.f32 %v1225, %v1240
        %v1242 = vadd.f32 %v1241, 0.112945676
        %v1243 = vmul.f32 %v1225, %v1242
        %v1244 = vadd.f32 %v1243, 0.4994258
        %v1245 = vmul.f32 %v1225, %v1244
        %v1246 = vadd.f32 %v1245, 1.0
        %v1247 = vrcp.pop %v1246
        %v1248 = vmul.f32 %v1246, %v1247
        %v1249 = vsub.f32 1.0, %v1248
        %v1250 = vmul.f32 %v1247, %v1249
        %v1251 = vadd.f32 %v1247, %v1250
        %vm1252 = vweird.f32 %v1246
        %vm1253 = vweird.f32 %v1247
        %vm1254 = vmor %vm1252, %vm1253
        %v1255 = vsel %vm1254, %v1247, %v1251
        %v1256 = vand.u32 2147483647, %v1246
        %vm1257 = vcmp.eq.f32.partialorder %v1256, 8.507059e+37
        %v1258 = vand.u32 %v1246, 2147483648
        %v1259 = vor.u32 1.1754944e-38, %v1258
        %v1260 = vsel %vm1257, %v1259, %v1255
        %v1261 = vmul.f32 %v1236, %v1260
        %v1262 = vmin.f32 %v1261, 1.0
        %v1263 = vmax.f32 %v1262, -1.0
        %v1264 = vmul.f32 %v1143, %v1143
        %v1265 = vmin.f32 16.0, %v1264
        %v1266 = vmul.f32 %v1265, 2.1237322e-06
        %v1267 = vadd.f32 %v1266, 0.00028619796
        %v1268 = vmul.f32 %v1265, %v1267
        %v1269 = vadd.f32 %v1268, 0.0036580483
        %v1270 = vmul.f32 %v1265, %v1269
        %v1271 = vadd.f32 %v1270, 0.05243302
        %v1272 = vmul.f32 %v1265, %v1271
        %v1273 = vadd.f32 %v1272, 0.18741608
        %v1274 = vmul.f32 %v1265, %v1273
        %v1275 = vadd.f32 %v1274, 1.1283791
        %v1276 = vmul.f32 %v1143, %v1275
        %v1277 = vmul.f32 %v1265, 3.8918573e-05
        %v1278 = vadd.f32 %v1277, 0.001143296
        %v1279 = vmul.f32 %v1265, %v1278
        %v1280 = vadd.f32 %v1279, 0.014752088
        %v1281 = vmul.f32 %v1265, %v1280
        %v1282 = vadd.f32 %v1281, 0.112945676
        %v1283 = vmul.f32 %v1265, %v1282
        %v1284 = vadd.f32 %v1283, 0.4994258
        %v1285 = vmul.f32 %v1265, %v1284
        %v1286 = vadd.f32 %v1285, 1.0
        %v1287 = vrcp.pop %v1286
        %v1288 = vmul.f32 %v1286, %v1287
        %v1289 = vsub.f32 1.0, %v1288
        %v1290 = vmul.f32 %v1287, %v1289
        %v1291 = vadd.f32 %v1287, %v1290
        %vm1292 = vweird.f32 %v1286
        %vm1293 = vweird.f32 %v1287
        %vm1294 = vmor %vm1292, %vm1293
        %v1295 = vsel %vm1294, %v1287, %v1291
        %v1296 = vand.u32 2147483647, %v1286
        %vm1297 = vcmp.eq.f32.partialorder %v1296, 8.507059e+37
        %v1298 = vand.u32 %v1286, 2147483648
        %v1299 = vor.u32 1.1754944e-38, %v1298
        %v1300 = vsel %vm1297, %v1299, %v1295
        %v1301 = vmul.f32 %v1276, %v1300
        %v1302 = vmin.f32 %v1301, 1.0
        %v1303 = vmax.f32 %v1302, -1.0
        %v1304 = vadd.f32 %v1183, 1.0
        %v1305 = vadd.f32 %v1223, 1.0
        %v1306 = vadd.f32 %v1263, 1.0
        %v1307 = vadd.f32 %v1303, 1.0
        %v1308 = vmul.f32 %v1136, %v1304
        %v1309 = vmul.f32 %v1137, %v1305
        %v1310 = vmul.f32 %v1138, %v1306
        %v1311 = vmul.f32 %v1139, %v1307
        %1312 = vst [vmem:[%s350] sm:$0xff] %v1308
        %1313 = vst [vmem:[%s350 + $0x8] sm:$0xff] %v1309
        %1314 = vst [vmem:[%s350 + $0x10] sm:$0xff] %v1310
        %1315 = vst [vmem:[%s350 + $0x18] sm:$0xff] %v1311
        %s1316 = sand.u32 %s247, 1
        %s1317 = scalar_lea.sflag [#allocation3], %s1316
        %s1318 = sand.u32 %s247, 1
        %s1319 = smul.addr %s1318, 32
        %s1320 = scalar_lea.vmem [#allocation2], %s1319
        // Predicated region
        $region61: #{tpu_custom_call.1} parent=59 // pred_check
          %p1321 = pneg %p257
        $region62: #{tpu_custom_call.1} parent=59 // pred_check_branch
          %1323 = sbr.rel (%p1321) target = $region64
        $region63: #{tpu_custom_call.1} parent=59 // pred_region
          %1325 = vsyncadd %s1317, 0
          %s1326 = smul.addr %s24, 4
          %s1327 = smul.addr %s1326, 8
          %s1328 = scalar_lea.hbm %s10, %s1327
          %s1329 = sshll.u32 %s1320, 4
          %s1330 = int_to_ptr.vmem [resolvable:$true] %s1329
          %s1331 = sshll.u32 %s1328, 4
          %s1332 = int_to_ptr.hbm [resolvable:$true] %s1331
          %1337 = dma.vmem_to_hbm [thread:$0]  %s1330, 512, %s1332, %s1317, 128, 128, 8
        $region64: #{tpu_custom_call.1} parent=59 // pred_fallthru
          _
      $region60: #{tpu_custom_call.1} parent=5 // pred_fallthru
        _
      %p1338 = scmp.le.s32.totalorder 2, %s19
      // Predicated region
      $region65: #{tpu_custom_call.1} parent=5 // pred_check
        %p1339 = pneg %p1338
      $region66: #{tpu_custom_call.1} parent=5 // pred_check_branch
        %1341 = sbr.rel (%p1339) target = $region68
      $region67: #{tpu_custom_call.1} parent=5 // pred_region
        %s1342 = ssub.s32 %s19, 2
        // Predicated region
        $region69: #{tpu_custom_call.1} parent=67 // pred_check
          %p1343 = pneg %p263
        $region70: #{tpu_custom_call.1} parent=67 // pred_check_branch
          %1345 = sbr.rel (%p1343) target = $region72
        $region71: #{tpu_custom_call.1} parent=67 // pred_region
          %s1346 = sand.u32 %s248, 1
          %s1347 = scalar_lea.sflag [#allocation3], %s1346
          %s1348 = sand.u32 %s248, 1
          %s1349 = smul.addr %s1348, 32
          %s1350 = scalar_lea.vmem [#allocation2], %s1349
          %1352 = dma.done %s1347, 512
        $region72: #{tpu_custom_call.1} parent=67 // pred_fallthru
          _
      $region68: #{tpu_custom_call.1} parent=5 // pred_fallthru
        _
    $region6: #{tpu_custom_call.1} parent=1 // loop_footer
      %s23 = sadd.s32 1, %s19
    $region7: #{tpu_custom_call.1} parent=1 // loop_footer_branch
      %18 = sbr.rel target = $region3
    $region8: #{tpu_custom_call.1} parent=1 // loop_exit
      _
    %1353 = vsyncpa [#allocation3], 1
    %s1354 = scalar_lea.sflag [#allocation3], 1
    %1355 = vsyncpa %s1354, 1

</llo_original>
